<compile_context>
chip_gen: v6e
topology: v6e:2x2x1
jax: 0.10.0
libtpu: 0.0.40
codegen_flags: <defaults>
</compile_context>

<pallas_src>
import functools

import jax
import jax.numpy as jnp
from jax.experimental import pallas as pl
from jax.experimental.pallas import tpu as pltpu


# ---------------------------------------------------------------------------
# Per-generation VMEM budget (96 MiB on v5e/v6e, 48 MiB on v7x), clamped.
# Actual footprint at D=128 is tiny; this only matters if D / tm are scaled up.
# ---------------------------------------------------------------------------
@functools.lru_cache(maxsize=None)
def _vmem_limit_bytes():
    try:
        cap = int(pltpu.get_tpu_info().vmem_capacity_bytes)
        return max(32 << 20, min(100 << 20, cap * 3 // 4))
    except Exception:  # conservative fallback, safe on every generation
        return 48 << 20


# ---------------------------------------------------------------------------
# Shared in-kernel pieces
# ---------------------------------------------------------------------------
def _attn_readout(q, h, rhs_ref, gamma_ref, bln_ref, beff_ref, wo_ref, bo_ref):
    """Layer readout for one row tile: num/den, LayerNorm, gating, lin_out, ReLU."""
    d = gamma_ref.shape[-1]
    # [num | den] = Q @ [KV | kM]   (bf16 operands, f32 accumulation)
    num_den = jnp.dot(q, rhs_ref[...], preferred_element_type=jnp.float32)
    att = num_den[:, :d] * pl.reciprocal(num_den[:, d:], approx=True)   # EUP vrcp
    # LayerNorm over the feature dim (eps=1e-5, affine), in f32.
    mu = jnp.mean(att, axis=-1, keepdims=True)
    xc = att - mu
    var = jnp.mean(xc * xc, axis=-1, keepdims=True)
    ln = xc * jax.lax.rsqrt(var + 1e-5) * gamma_ref[...] + bln_ref[...]
    y = ln * (h.astype(jnp.float32) + beff_ref[...])
    out = jnp.dot(y.astype(jnp.bfloat16), wo_ref[...],
                  preferred_element_type=jnp.float32) + bo_ref[...]
    # TODO(synk): training-mode F.dropout omitted (eval-mode identity).
    return jnp.maximum(out, 0.0)


def _fused_proj_reduce(xb, nv_ref, w_ref, b_ref, h_ref, q_ref,
                       kv_ref, ksum_ref, kv_acc, ksum_acc):
    """Fused h/k/v projection of one row tile + resident K^T V / K-sum accumulation."""
    c, i = pl.program_id(0), pl.program_id(1)
    tm = xb.shape[0]
    d = h_ref.shape[-1]

    @pl.when(i == 0)
    def _():
        kv_acc[...] = jnp.zeros_like(kv_acc)
        ksum_acc[...] = jnp.zeros_like(ksum_acc)

    # One [tm,D]@[D,3D] MXU matmul instead of three [D,D] ones (bf16 -> f32 acc).
    hkv = jnp.dot(xb, w_ref[...], preferred_element_type=jnp.float32) + b_ref[...]
    kb = jax.nn.sigmoid(hkv[:, d:2 * d]).astype(jnp.bfloat16)
    vb = hkv[:, 2 * d:].astype(jnp.bfloat16)
    h_ref[...] = hkv[:, :d].astype(jnp.bfloat16)
    q_ref[...] = kb                                     # qk_shared=True -> q = k

    # Mask padded rows out of the global reductions (n_valid lives in SMEM).
    rows = ((c * pl.num_programs(1) + i) * tm
            + jax.lax.broadcasted_iota(jnp.int32, (tm, 1), 0))
    k_m = kb * (rows < nv_ref[0]).astype(jnp.bfloat16)  # 0/1 mask: exact in bf16

    # KV += K_tile^T @ V_tile (contract over rows on the MXU; per review #8 confirm in
    # the bundle dump that this lowers without a per-step vxpose of the k tile).
    kv_acc[...] += jax.lax.dot_general(
        k_m, vb, (((0,), (0,)), ((), ())), preferred_element_type=jnp.float32)
    ksum_acc[...] += jnp.sum(k_m.astype(jnp.float32), axis=0, keepdims=True)

    @pl.when(i == pl.num_programs(1) - 1)
    def _():
        kv_ref[0] = kv_acc[...]
        ksum_ref[0] = ksum_acc[...]


# ---------------------------------------------------------------------------
# Kernels
# ---------------------------------------------------------------------------
def _proj_reduce_kernel(nv_ref, x_ref, w_ref, b_ref,
                        h_ref, q_ref, kv_ref, ksum_ref, kv_acc, ksum_acc):
    """Layer 0: fused projection + global reduction."""
    _fused_proj_reduce(x_ref[...], nv_ref, w_ref, b_ref,
                       h_ref, q_ref, kv_ref, ksum_ref, kv_acc, ksum_acc)


def _boundary_kernel(nv_ref, q_ref, h_ref, rhs_ref, gamma_ref, bln_ref, beff_ref,
                     wo_ref, bo_ref, wn_ref, bn_ref,
                     h_out_ref, q_out_ref, kv_ref, ksum_ref, kv_acc, ksum_acc):
    """Layer boundary i -> i+1: layer-i readout fused with layer-(i+1) projection, so
    the inter-layer x never touches HBM."""
    x = _attn_readout(q_ref[...], h_ref[...], rhs_ref, gamma_ref, bln_ref,
                      beff_ref, wo_ref, bo_ref)
    _fused_proj_reduce(x.astype(jnp.bfloat16), nv_ref, wn_ref, bn_ref,
                       h_out_ref, q_out_ref, kv_ref, ksum_ref, kv_acc, ksum_acc)


def _attn_out_kernel(q_ref, h_ref, rhs_ref, gamma_ref, bln_ref, beff_ref,
                     wo_ref, bo_ref, o_ref):
    """Final layer readout (f32 output)."""
    o_ref[...] = _attn_readout(q_ref[...], h_ref[...], rhs_ref, gamma_ref,
                               bln_ref, beff_ref, wo_ref, bo_ref)


# ---------------------------------------------------------------------------
# pallas_call wrappers
# ---------------------------------------------------------------------------
def _call_proj_reduce(x_p, w_hkv, b_hkv, n_valid, *, tm, cores):
    n_pad, d = x_p.shape
    assert n_pad % (cores * tm) == 0
    t = n_pad // (cores * tm)
    row = pl.BlockSpec((tm, d), lambda c, i, nv: (c * t + i, 0))
    return pl.pallas_call(
        _proj_reduce_kernel,
        out_shape=(
            jax.ShapeDtypeStruct((n_pad, d), jnp.bfloat16),    # h stream
            jax.ShapeDtypeStruct((n_pad, d), jnp.bfloat16),    # q (= k) stream
            jax.ShapeDtypeStruct((cores, d, d), jnp.float32),  # per-core K^T V partials
            jax.ShapeDtypeStruct((cores, 1, d), jnp.float32),  # per-core K-sum partials
        ),
        grid_spec=pltpu.PrefetchScalarGridSpec(
            num_scalar_prefetch=1,
            grid=(cores, t),
            in_specs=[row,
                      pl.BlockSpec((d, 3 * d), lambda c, i, nv: (0, 0)),
                      pl.BlockSpec((1, 3 * d), lambda c, i, nv: (0, 0))],
            out_specs=(row, row,
                       pl.BlockSpec((1, d, d), lambda c, i, nv: (c, 0, 0)),
                       pl.BlockSpec((1, 1, d), lambda c, i, nv: (c, 0, 0))),
            scratch_shapes=[pltpu.VMEM((d, d), jnp.float32),
                            pltpu.VMEM((1, d), jnp.float32)]),
        compiler_params=pltpu.CompilerParams(
            dimension_semantics=("parallel", "arbitrary"),
            vmem_limit_bytes=_vmem_limit_bytes()),
    )(n_valid, x_p, w_hkv, b_hkv)


def _call_boundary(q, h, rhs, lp, wo_t, bo, w_next, b_next, n_valid, *, tm, cores):
    n_pad, d = q.shape
    assert n_pad % (cores * tm) == 0
    t = n_pad // (cores * tm)
    row = pl.BlockSpec((tm, d), lambda c, i, nv: (c * t + i, 0))
    vec = pl.BlockSpec((1, d), lambda c, i, nv: (0, 0))
    return pl.pallas_call(
        _boundary_kernel,
        out_shape=(
            jax.ShapeDtypeStruct((n_pad, d), jnp.bfloat16),    # h (next layer)
            jax.ShapeDtypeStruct((n_pad, d), jnp.bfloat16),    # q (next layer)
            jax.ShapeDtypeStruct((cores, d, d), jnp.float32),
            jax.ShapeDtypeStruct((cores, 1, d), jnp.float32),
        ),
        grid_spec=pltpu.PrefetchScalarGridSpec(
            num_scalar_prefetch=1,
            grid=(cores, t),
            in_specs=[row, row,
                      pl.BlockSpec((d, 2 * d), lambda c, i, nv: (0, 0)),  # [KV|kM]
                      vec, vec, vec,
                      pl.BlockSpec((d, d), lambda c, i, nv: (0, 0)),      # lin_out W^T
                      vec,
                      pl.BlockSpec((d, 3 * d), lambda c, i, nv: (0, 0)),  # next w_hkv
                      pl.BlockSpec((1, 3 * d), lambda c, i, nv: (0, 0))],
            out_specs=(row, row,
                       pl.BlockSpec((1, d, d), lambda c, i, nv: (c, 0, 0)),
                       pl.BlockSpec((1, 1, d), lambda c, i, nv: (c, 0, 0))),
            scratch_shapes=[pltpu.VMEM((d, d), jnp.float32),
                            pltpu.VMEM((1, d), jnp.float32)]),
        compiler_params=pltpu.CompilerParams(
            dimension_semantics=("parallel", "arbitrary"),
            vmem_limit_bytes=_vmem_limit_bytes()),
    )(n_valid, q, h, rhs, lp["gamma"], lp["beta_ln"], lp["beta_eff"],
      wo_t, bo, w_next, b_next)


def _call_attn_out(q, h, rhs, lp, wo_t, bo, *, tm):
    n_pad, d = q.shape
    row_in = pl.BlockSpec((tm, d), lambda i: (i, 0))
    vec = pl.BlockSpec((1, d), lambda i: (0, 0))
    return pl.pallas_call(
        _attn_out_kernel,
        out_shape=jax.ShapeDtypeStruct((n_pad, d), jnp.float32),
        grid=(n_pad // tm,),
        in_specs=[row_in, row_in,
                  pl.BlockSpec((d, 2 * d), lambda i: (0, 0)),
                  vec, vec, vec,
                  pl.BlockSpec((d, d), lambda i: (0, 0)),
                  vec],
        out_specs=row_in,
        compiler_params=pltpu.CompilerParams(
            dimension_semantics=("parallel",),
            vmem_limit_bytes=_vmem_limit_bytes()),
    )(q, h, rhs, lp["gamma"], lp["beta_ln"], lp["beta_eff"], wo_t, bo)


def _build_rhs(kv_parts, ksum_parts, head_mask_f32):
    """[KV | kM] = [ (K^T V) * head_mask | ksum_col * head_mask ] -> [D, 2D] bf16."""
    d = head_mask_f32.shape[0]
    kv = kv_parts.sum(axis=0)                       # [D, D]  f32 (per-core partial sum)
    ks = ksum_parts.sum(axis=0).reshape(d, 1)       # [D, 1]  f32
    return jnp.concatenate([kv * head_mask_f32, ks * head_mask_f32],
                           axis=1).astype(jnp.bfloat16)


# ---------------------------------------------------------------------------
# Full forward
# ---------------------------------------------------------------------------
def global_attn_forward(x, params, *, tm=512, cores=2):
    """x: [N, D]. Returns [N, D] f32 (eval-mode forward). D must be a multiple of 128."""
    n, d = x.shape
    assert d % 128 == 0 and tm % 8 == 0
    chunk = cores * tm
    n_pad = ((n + chunk - 1) // chunk) * chunk
    x_p = jnp.pad(x.astype(jnp.bfloat16), ((0, n_pad - n), (0, 0)))   # bf16 stream in
    n_valid = jnp.full((1,), n, dtype=jnp.int32)
    mask_f = params["head_mask"]
    layers = params["layers"]
    wo_t, bo = params["wo_t"], params["bo"]

    h, q, kvp, ksp = _call_proj_reduce(x_p, layers[0]["w_hkv"], layers[0]["b_hkv"],
                                       n_valid, tm=tm, cores=cores)
    rhs = _build_rhs(kvp, ksp, mask_f)
    for li in range(len(layers) - 1):
        h, q, kvp, ksp = _call_boundary(q, h, rhs, layers[li], wo_t, bo,
                                        layers[li + 1]["w_hkv"],
                                        layers[li + 1]["b_hkv"],
                                        n_valid, tm=tm, cores=cores)
        rhs = _build_rhs(kvp, ksp, mask_f)
    out = _call_attn_out(q, h, rhs, layers[-1], wo_t, bo, tm=tm)
    return out[:n]


# ---------------------------------------------------------------------------
# Parameter construction (torch layout) + kernel-side preprocessing
# ---------------------------------------------------------------------------
def make_params(key, hidden, heads, num_layers, beta):
    """Raw f32 parameters in torch layout (Linear weight [Dout, Din], bias [Dout])."""
    d = heads * hidden
    keys = iter(jax.random.split(key, 8 * num_layers + 8))
    w = lambda: jax.random.normal(next(keys), (d, d), jnp.float32) / jnp.sqrt(d)
    b = lambda: 0.1 * jax.random.normal(next(keys), (d,), jnp.float32)
    layers = []
    for _ in range(num_layers):
        layers.append(dict(
            h_w=w(), h_b=b(), k_w=w(), k_b=b(), v_w=w(), v_b=b(),
            ln_gamma=jnp.ones((d,), jnp.float32),
            ln_beta=jnp.zeros((d,), jnp.float32)))
    if beta < 0:  # betas parameter, beta = sigmoid(betas[i]) in forward
        betas = 0.5 * jax.random.normal(next(keys), (num_layers, d), jnp.float32)
    else:
        betas = jnp.full((num_layers, d), beta, jnp.float32)
    return dict(layers=layers, betas=betas, out_w=w(), out_b=b(),
                hidden=hidden, heads=heads, beta=float(beta))


def prep_params(raw):
    heads = raw["heads"]
    d = heads * raw["hidden"]
    f = jnp.arange(d)
    head_mask = (f[:, None] % heads == f[None, :] % heads).astype(jnp.float32)
    layers = []
    for i, lp in enumerate(raw["layers"]):
        beta_eff = (jax.nn.sigmoid(raw["betas"][i]) if raw["beta"] < 0
                    else raw["betas"][i])
        w_hkv = jnp.concatenate([lp["h_w"].T, lp["k_w"].T, lp["v_w"].T],
                                axis=1).astype(jnp.bfloat16)          # [D, 3D]
        b_hkv = jnp.concatenate([lp["h_b"], lp["k_b"], lp["v_b"]]).reshape(1, 3 * d)
        layers.append(dict(
            w_hkv=w_hkv, b_hkv=b_hkv,
            gamma=lp["ln_gamma"].reshape(1, d),
            beta_ln=lp["ln_beta"].reshape(1, d),
            beta_eff=beta_eff.reshape(1, d)))
    return dict(layers=layers, head_mask=head_mask,
                wo_t=raw["out_w"].T.astype(jnp.bfloat16),
                bo=raw["out_b"].reshape(1, d))


# ---------------------------------------------------------------------------
# References
# ---------------------------------------------------------------------------
def reference_forward(x, raw):
    """Pure f32 reference mirroring the torch forward exactly (eval mode)."""
    hidden, heads, beta_hp = raw["hidden"], raw["heads"], raw["beta"]
    n, _ = x.shape
    for i, lp in enumerate(raw["layers"]):
        h = x @ lp["h_w"].T + lp["h_b"]
        k = jax.nn.sigmoid(x @ lp["k_w"].T + lp["k_b"]).reshape(n, hidden, heads)
        q = k
        v = (x @ lp["v_w"].T + lp["v_b"]).reshape(n, hidden, heads)
        kv = jnp.einsum("ndh,nmh->dmh", k, v)
        num = jnp.einsum("ndh,dmh->nmh", q, kv)
        k_sum = jnp.einsum("ndh->dh", k)
        den = jnp.einsum("ndh,dh->nh", q, k_sum)[:, None, :]
        beta = (jax.nn.sigmoid(raw["betas"][i]) if beta_hp < 0
                else raw["betas"][i])[None, :]
        xx = (num / den).reshape(n, -1)
        mu = xx.mean(-1, keepdims=True)
        var = ((xx - mu) ** 2).mean(-1, keepdims=True)
        ln = (xx - mu) / jnp.sqrt(var + 1e-5) * lp["ln_gamma"] + lp["ln_beta"]
        x = jax.nn.relu(ln * (h + beta) @ raw["out_w"].T + raw["out_b"])
    return x


def reference_forward_bf16(x, raw):
    """Reference that mirrors the kernel's numeric path (bf16 MXU operands, bf16 h/k/v
    and [KV|kM] streams, f32 accumulation + f32 LayerNorm) via per-head einsums."""
    hidden, heads, beta_hp = raw["hidden"], raw["heads"], raw["beta"]
    n, dm = x.shape
    rd = lambda a: a.astype(jnp.bfloat16).astype(jnp.float32)       # bf16 round-trip
    mm = lambda a, b: jnp.dot(a.astype(jnp.bfloat16), b.astype(jnp.bfloat16),
                              preferred_element_type=jnp.float32)
    for i, lp in enumerate(raw["layers"]):
        h = rd(mm(x, lp["h_w"].T) + lp["h_b"])
        k = rd(jax.nn.sigmoid(mm(x, lp["k_w"].T) + lp["k_b"]))
        v = rd(mm(x, lp["v_w"].T) + lp["v_b"])
        q = k
        k3, q3, v3 = (a.reshape(n, hidden, heads) for a in (k, q, v))
        kv = rd(jnp.einsum("ndh,nmh->dmh", k3, v3))
        ksum = rd(jnp.einsum("ndh->dh", k3))
        num = jnp.einsum("ndh,dmh->nmh", q3, kv)
        den = jnp.einsum("ndh,dh->nh", q3, ksum)[:, None, :]
        beta = (jax.nn.sigmoid(raw["betas"][i]) if beta_hp < 0
                else raw["betas"][i])[None, :]
        att = (num / den).reshape(n, dm)
        mu = att.mean(-1, keepdims=True)
        var = ((att - mu) ** 2).mean(-1, keepdims=True)
        ln = (att - mu) / jnp.sqrt(var + 1e-5) * lp["ln_gamma"] + lp["ln_beta"]
        x = jax.nn.relu(mm(ln * (h + beta), raw["out_w"].T) + raw["out_b"])
    return x


# ---------------------------------------------------------------------------
if __name__ == "__main__":
    HIDDEN, HEADS, NUM_LAYERS, BETA = 64, 2, 2, -1.0
    N = 500                       # deliberately not a multiple of the row tile
    D = HEADS * HIDDEN            # 128 -> lane-dense feature dim

    key = jax.random.PRNGKey(0)
    kx, kp = jax.random.split(key)
    x = jax.random.normal(kx, (N, D), dtype=jnp.float32)

    raw = make_params(kp, HIDDEN, HEADS, NUM_LAYERS, BETA)
    params = prep_params(raw)

    # Demo uses tm=128 / cores=2 so the grid exercises both the per-core split and
    # multi-step accumulation; production default is tm=512 (review #6).
    fwd = jax.jit(functools.partial(global_attn_forward, tm=128, cores=2))
    out = jax.block_until_ready(fwd(x, params))
    assert out.shape == (N, D)
    assert bool(jnp.all(jnp.isfinite(out)))

    ref_bf16 = reference_forward_bf16(x, raw)   # same numeric path as the kernel
    ref_f32 = reference_forward(x, raw)         # exact torch semantics, f32
    err_hw = float(jnp.max(jnp.abs(out - ref_bf16)))
    err_f32 = float(jnp.max(jnp.abs(out - ref_f32)))
    # Tight check vs the bf16-path reference (headroom only for the approx reciprocal
    # and MXU accumulation-order differences).
    assert bool(jnp.allclose(out, ref_bf16, rtol=2e-2, atol=2e-2)), \
        f"bf16-path mismatch: max |err| = {err_hw}"
    # Loose semantic check vs the exact f32 reference (bf16 streams -> ~1% error).
    assert bool(jnp.allclose(out, ref_f32, rtol=2e-1, atol=2e-1)), \
        f"f32 reference mismatch: max |err| = {err_f32}"

    print("KERNEL_OK")
</pallas_src>

<mosaic_0001>
module attributes {stable_mosaic.version = 11 : i64} {
  func.func @_proj_reduce_kernel(%arg0: i32, %arg1: i32, %arg2: memref<1xi32, #tpu.memory_space<smem>>, %arg3: memref<128x128xbf16, #tpu.memory_space<vmem>>, %arg4: memref<128x384xbf16, #tpu.memory_space<vmem>>, %arg5: memref<1x384xf32, #tpu.memory_space<vmem>>, %arg6: memref<128x128xbf16, #tpu.memory_space<vmem>>, %arg7: memref<128x128xbf16, #tpu.memory_space<vmem>>, %arg8: memref<1x128x128xf32, #tpu.memory_space<vmem>>, %arg9: memref<1x1x128xf32, #tpu.memory_space<vmem>>, %arg10: memref<128x128xf32, #tpu.memory_space<vmem>>, %arg11: memref<1x128xf32, #tpu.memory_space<vmem>>) attributes {dimension_semantics = [#tpu.dimension_semantics<parallel>, #tpu.dimension_semantics<arbitrary>], iteration_bounds = array<i64: 2, 2>, scalar_prefetch = 1 : i64, scratch_operands = 2 : i64, tpu.core_type = #tpu.core_type<tc>, window_params = [{transform_indices = @transform_0, window_bounds = array<i64: 128, 128>}, {pipeline_mode = #tpu.pipeline_mode<synchronous>, transform_indices = @transform_1, window_bounds = array<i64: 128, 384>}, {pipeline_mode = #tpu.pipeline_mode<synchronous>, transform_indices = @transform_2, window_bounds = array<i64: 1, 384>}, {transform_indices = @transform_3, window_bounds = array<i64: 128, 128>}, {transform_indices = @transform_4, window_bounds = array<i64: 128, 128>}, {transform_indices = @transform_5, window_bounds = array<i64: 1, 128, 128>}, {transform_indices = @transform_6, window_bounds = array<i64: 1, 1, 128>}]} {
    %c0 = arith.constant 0 : index
    %c0_0 = arith.constant 0 : index
    %0 = vector.load %arg3[%c0, %c0_0] : memref<128x128xbf16, #tpu.memory_space<vmem>>, vector<128x128xbf16>
    %c0_i32 = arith.constant 0 : i32
    %1 = arith.cmpi eq, %arg1, %c0_i32 : i32
    %2 = arith.extui %1 : i1 to i32
    %c0_i32_1 = arith.constant 0 : i32
    %3 = arith.cmpi ne, %2, %c0_i32_1 : i32
    scf.if %3 {
      %cst_23 = arith.constant 0.000000e+00 : f32
      %49 = vector.broadcast %cst_23 : f32 to vector<128x128xf32>
      %c0_24 = arith.constant 0 : index
      %c0_25 = arith.constant 0 : index
      %50 = vector.load %arg10[%c0_24, %c0_25] : memref<128x128xf32, #tpu.memory_space<vmem>>, vector<128x128xf32>
      tpu.vector_store %arg10[%c0_24, %c0_25], %49 {strides = array<i32>} : memref<128x128xf32, #tpu.memory_space<vmem>>, vector<128x128xf32>,
      %cst_26 = arith.constant 0.000000e+00 : f32
      %51 = vector.broadcast %cst_26 : f32 to vector<1x128xf32>
      %c0_27 = arith.constant 0 : index
      %c0_28 = arith.constant 0 : index
      %52 = vector.load %arg11[%c0_27, %c0_28] : memref<1x128xf32, #tpu.memory_space<vmem>>, vector<1x128xf32>
      tpu.vector_store %arg11[%c0_27, %c0_28], %51 {strides = array<i32>} : memref<1x128xf32, #tpu.memory_space<vmem>>, vector<1x128xf32>,
    } else {
    }
    %c0_2 = arith.constant 0 : index
    %c0_3 = arith.constant 0 : index
    %4 = vector.load %arg4[%c0_2, %c0_3] : memref<128x384xbf16, #tpu.memory_space<vmem>>, vector<128x384xbf16>
    %cst = arith.constant dense<0.000000e+00> : vector<128x384xf32>
    %5 = tpu.matmul %0, %4, %cst {dimension_numbers = #tpu.dot_dimension_numbers<[1], [0], [0], [1], [0, 0, 1, 1], [], []>} : vector<128x128xbf16>, vector<128x384xbf16>, vector<128x384xf32> -> vector<128x384xf32>
    %c0_4 = arith.constant 0 : index
    %c0_5 = arith.constant 0 : index
    %6 = vector.load %arg5[%c0_4, %c0_5] : memref<1x384xf32, #tpu.memory_space<vmem>>, vector<1x384xf32>
    %7 = vector.broadcast %6 : vector<1x384xf32> to vector<128x384xf32>
    %8 = arith.addf %5, %7 : vector<128x384xf32>
    %9 = vector.extract_strided_slice %8 {offsets = [0, 128], sizes = [128, 128], strides = [1, 1]} : vector<128x384xf32> to vector<128x128xf32>
    %10 = arith.negf %9 : vector<128x128xf32>
    %11 = math.exp %10 : vector<128x128xf32>
    %cst_6 = arith.constant 1.000000e+00 : f32
    %12 = vector.broadcast %cst_6 : f32 to vector<128x128xf32>
    %13 = arith.addf %12, %11 : vector<128x128xf32>
    %14 = arith.divf %12, %13 : vector<128x128xf32>
    %15 = arith.truncf %14 : vector<128x128xf32> to vector<128x128xbf16>
    %16 = vector.extract_strided_slice %8 {offsets = [0, 256], sizes = [128, 128], strides = [1, 1]} : vector<128x384xf32> to vector<128x128xf32>
    %17 = arith.truncf %16 : vector<128x128xf32> to vector<128x128xbf16>
    %18 = vector.extract_strided_slice %8 {offsets = [0, 0], sizes = [128, 128], strides = [1, 1]} : vector<128x384xf32> to vector<128x128xf32>
    %19 = arith.truncf %18 : vector<128x128xf32> to vector<128x128xbf16>
    %c0_7 = arith.constant 0 : index
    %c0_8 = arith.constant 0 : index
    %20 = vector.load %arg6[%c0_7, %c0_8] : memref<128x128xbf16, #tpu.memory_space<vmem>>, vector<128x128xbf16>
    tpu.vector_store %arg6[%c0_7, %c0_8], %19 {strides = array<i32>} : memref<128x128xbf16, #tpu.memory_space<vmem>>, vector<128x128xbf16>,
    %c0_9 = arith.constant 0 : index
    %c0_10 = arith.constant 0 : index
    %21 = vector.load %arg7[%c0_9, %c0_10] : memref<128x128xbf16, #tpu.memory_space<vmem>>, vector<128x128xbf16>
    tpu.vector_store %arg7[%c0_9, %c0_10], %15 {strides = array<i32>} : memref<128x128xbf16, #tpu.memory_space<vmem>>, vector<128x128xbf16>,
    %c2_i32 = arith.constant 2 : i32
    %22 = arith.muli %arg0, %c2_i32 : i32
    %23 = arith.addi %22, %arg1 : i32
    %c128_i32 = arith.constant 128 : i32
    %24 = arith.muli %23, %c128_i32 : i32
    %25 = tpu.iota {dimensions = array<i32: 0>} : vector<128x1xi32>
    %26 = vector.broadcast %24 : i32 to vector<128x1xi32>
    %27 = arith.addi %26, %25 : vector<128x1xi32>
    %c0_11 = arith.constant 0 : index
    %28 = memref.load %arg2[%c0_11] : memref<1xi32, #tpu.memory_space<smem>>
    %29 = vector.broadcast %28 : i32 to vector<128x1xi32>
    %30 = arith.cmpi slt, %27, %29 : vector<128x1xi32>
    %31 = arith.extui %30 : vector<128x1xi1> to vector<128x1xi32>
    %32 = arith.sitofp %31 : vector<128x1xi32> to vector<128x1xf32>
    %33 = arith.truncf %32 : vector<128x1xf32> to vector<128x1xbf16>
    %34 = vector.broadcast %33 : vector<128x1xbf16> to vector<128x128xbf16>
    %35 = arith.mulf %15, %34 : vector<128x128xbf16>
    %c0_12 = arith.constant 0 : index
    %c0_13 = arith.constant 0 : index
    %36 = vector.load %arg10[%c0_12, %c0_13] : memref<128x128xf32, #tpu.memory_space<vmem>>, vector<128x128xf32>
    %cst_14 = arith.constant dense<0.000000e+00> : vector<128x128xf32>
    %37 = tpu.matmul %35, %17, %cst_14 {dimension_numbers = #tpu.dot_dimension_numbers<[0], [0], [1], [1], [0, 1, 1, 1], [], []>} : vector<128x128xbf16>, vector<128x128xbf16>, vector<128x128xf32> -> vector<128x128xf32>
    %38 = arith.addf %36, %37 : vector<128x128xf32>
    %c0_15 = arith.constant 0 : index
    %c0_16 = arith.constant 0 : index
    %39 = vector.load %arg10[%c0_15, %c0_16] : memref<128x128xf32, #tpu.memory_space<vmem>>, vector<128x128xf32>
    tpu.vector_store %arg10[%c0_15, %c0_16], %38 {strides = array<i32>} : memref<128x128xf32, #tpu.memory_space<vmem>>, vector<128x128xf32>,
    %c0_17 = arith.constant 0 : index
    %c0_18 = arith.constant 0 : index
    %40 = vector.load %arg11[%c0_17, %c0_18] : memref<1x128xf32, #tpu.memory_space<vmem>>, vector<1x128xf32>
    %41 = arith.extf %35 : vector<128x128xbf16> to vector<128x128xf32>
    %cst_19 = arith.constant dense<0.000000e+00> : vector<128xf32>
    %42 = vector.multi_reduction <add>, %41, %cst_19 [0] : vector<128x128xf32> to vector<128xf32>
    %43 = vector.shape_cast %42 : vector<128xf32> to vector<1x128xf32>
    %44 = arith.addf %40, %43 : vector<1x128xf32>
    %c0_20 = arith.constant 0 : index
    %c0_21 = arith.constant 0 : index
    %45 = vector.load %arg11[%c0_20, %c0_21] : memref<1x128xf32, #tpu.memory_space<vmem>>, vector<1x128xf32>
    tpu.vector_store %arg11[%c0_20, %c0_21], %44 {strides = array<i32>} : memref<1x128xf32, #tpu.memory_space<vmem>>, vector<1x128xf32>,
    %c1_i32 = arith.constant 1 : i32
    %46 = arith.cmpi eq, %arg1, %c1_i32 : i32
    %47 = arith.extui %46 : i1 to i32
    %c0_i32_22 = arith.constant 0 : i32
    %48 = arith.cmpi ne, %47, %c0_i32_22 : i32
    scf.if %48 {
      %c0_23 = arith.constant 0 : index
      %c0_24 = arith.constant 0 : index
      %49 = vector.load %arg10[%c0_23, %c0_24] : memref<128x128xf32, #tpu.memory_space<vmem>>, vector<128x128xf32>
      %c0_25 = arith.constant 0 : index
      %c0_26 = arith.constant 0 : index
      %c0_27 = arith.constant 0 : index
      %50 = vector.load %arg8[%c0_25, %c0_26, %c0_27] : memref<1x128x128xf32, #tpu.memory_space<vmem>>, vector<1x128x128xf32>
      %51 = vector.shape_cast %50 : vector<1x128x128xf32> to vector<128x128xf32>
      %52 = vector.shape_cast %49 : vector<128x128xf32> to vector<1x128x128xf32>
      tpu.vector_store %arg8[%c0_25, %c0_26, %c0_27], %52 {strides = array<i32>} : memref<1x128x128xf32, #tpu.memory_space<vmem>>, vector<1x128x128xf32>,
      %c0_28 = arith.constant 0 : index
      %c0_29 = arith.constant 0 : index
      %53 = vector.load %arg11[%c0_28, %c0_29] : memref<1x128xf32, #tpu.memory_space<vmem>>, vector<1x128xf32>
      %c0_30 = arith.constant 0 : index
      %c0_31 = arith.constant 0 : index
      %c0_32 = arith.constant 0 : index
      %54 = vector.load %arg9[%c0_30, %c0_31, %c0_32] : memref<1x1x128xf32, #tpu.memory_space<vmem>>, vector<1x1x128xf32>
      %55 = vector.shape_cast %54 : vector<1x1x128xf32> to vector<1x128xf32>
      %56 = vector.shape_cast %53 : vector<1x128xf32> to vector<1x1x128xf32>
      tpu.vector_store %arg9[%c0_30, %c0_31, %c0_32], %56 {strides = array<i32>} : memref<1x1x128xf32, #tpu.memory_space<vmem>>, vector<1x1x128xf32>,
    } else {
    }
    return
  }
  func.func @transform_0(%arg0: i32, %arg1: i32, %arg2: memref<1xi32, #tpu.memory_space<smem>>) -> (i32, i32) {
    %c2_i32 = arith.constant 2 : i32
    %0 = arith.muli %arg0, %c2_i32 : i32
    %1 = arith.addi %0, %arg1 : i32
    %c0_i32 = arith.constant 0 : i32
    %c0_i32_0 = arith.constant 0 : i32
    return %1, %c0_i32 : i32, i32
  }
  func.func @transform_1(%arg0: i32, %arg1: i32, %arg2: memref<1xi32, #tpu.memory_space<smem>>) -> (i32, i32) {
    %c0_i32 = arith.constant 0 : i32
    %c0_i32_0 = arith.constant 0 : i32
    %c0_i32_1 = arith.constant 0 : i32
    return %c0_i32, %c0_i32_0 : i32, i32
  }
  func.func @transform_2(%arg0: i32, %arg1: i32, %arg2: memref<1xi32, #tpu.memory_space<smem>>) -> (i32, i32) {
    %c0_i32 = arith.constant 0 : i32
    %c0_i32_0 = arith.constant 0 : i32
    %c0_i32_1 = arith.constant 0 : i32
    return %c0_i32, %c0_i32_0 : i32, i32
  }
  func.func @transform_3(%arg0: i32, %arg1: i32, %arg2: memref<1xi32, #tpu.memory_space<smem>>) -> (i32, i32) {
    %c2_i32 = arith.constant 2 : i32
    %0 = arith.muli %arg0, %c2_i32 : i32
    %1 = arith.addi %0, %arg1 : i32
    %c0_i32 = arith.constant 0 : i32
    %c0_i32_0 = arith.constant 0 : i32
    return %1, %c0_i32 : i32, i32
  }
  func.func @transform_4(%arg0: i32, %arg1: i32, %arg2: memref<1xi32, #tpu.memory_space<smem>>) -> (i32, i32) {
    %c2_i32 = arith.constant 2 : i32
    %0 = arith.muli %arg0, %c2_i32 : i32
    %1 = arith.addi %0, %arg1 : i32
    %c0_i32 = arith.constant 0 : i32
    %c0_i32_0 = arith.constant 0 : i32
    return %1, %c0_i32 : i32, i32
  }
  func.func @transform_5(%arg0: i32, %arg1: i32, %arg2: memref<1xi32, #tpu.memory_space<smem>>) -> (i32, i32, i32) {
    %c0_i32 = arith.constant 0 : i32
    %c0_i32_0 = arith.constant 0 : i32
    %c0_i32_1 = arith.constant 0 : i32
    return %arg0, %c0_i32, %c0_i32_0 : i32, i32, i32
  }
  func.func @transform_6(%arg0: i32, %arg1: i32, %arg2: memref<1xi32, #tpu.memory_space<smem>>) -> (i32, i32, i32) {
    %c0_i32 = arith.constant 0 : i32
    %c0_i32_0 = arith.constant 0 : i32
    %c0_i32_1 = arith.constant 0 : i32
    return %arg0, %c0_i32, %c0_i32_0 : i32, i32, i32
  }
}

module attributes {stable_mosaic.version = 11 : i64} {
  func.func @_boundary_kernel(%arg0: i32, %arg1: i32, %arg2: memref<1xi32, #tpu.memory_space<smem>>, %arg3: memref<128x128xbf16, #tpu.memory_space<vmem>>, %arg4: memref<128x128xbf16, #tpu.memory_space<vmem>>, %arg5: memref<128x256xbf16, #tpu.memory_space<vmem>>, %arg6: memref<1x128xf32, #tpu.memory_space<vmem>>, %arg7: memref<1x128xf32, #tpu.memory_space<vmem>>, %arg8: memref<1x128xf32, #tpu.memory_space<vmem>>, %arg9: memref<128x128xbf16, #tpu.memory_space<vmem>>, %arg10: memref<1x128xf32, #tpu.memory_space<vmem>>, %arg11: memref<128x384xbf16, #tpu.memory_space<vmem>>, %arg12: memref<1x384xf32, #tpu.memory_space<vmem>>, %arg13: memref<128x128xbf16, #tpu.memory_space<vmem>>, %arg14: memref<128x128xbf16, #tpu.memory_space<vmem>>, %arg15: memref<1x128x128xf32, #tpu.memory_space<vmem>>, %arg16: memref<1x1x128xf32, #tpu.memory_space<vmem>>, %arg17: memref<128x128xf32, #tpu.memory_space<vmem>>, %arg18: memref<1x128xf32, #tpu.memory_space<vmem>>) attributes {dimension_semantics = [#tpu.dimension_semantics<parallel>, #tpu.dimension_semantics<arbitrary>], iteration_bounds = array<i64: 2, 2>, scalar_prefetch = 1 : i64, scratch_operands = 2 : i64, tpu.core_type = #tpu.core_type<tc>, window_params = [{transform_indices = @transform_0, window_bounds = array<i64: 128, 128>}, {transform_indices = @transform_1, window_bounds = array<i64: 128, 128>}, {pipeline_mode = #tpu.pipeline_mode<synchronous>, transform_indices = @transform_2, window_bounds = array<i64: 128, 256>}, {pipeline_mode = #tpu.pipeline_mode<synchronous>, transform_indices = @transform_3, window_bounds = array<i64: 1, 128>}, {pipeline_mode = #tpu.pipeline_mode<synchronous>, transform_indices = @transform_4, window_bounds = array<i64: 1, 128>}, {pipeline_mode = #tpu.pipeline_mode<synchronous>, transform_indices = @transform_5, window_bounds = array<i64: 1, 128>}, {pipeline_mode = #tpu.pipeline_mode<synchronous>, transform_indices = @transform_6, window_bounds = array<i64: 128, 128>}, {pipeline_mode = #tpu.pipeline_mode<synchronous>, transform_indices = @transform_7, window_bounds = array<i64: 1, 128>}, {pipeline_mode = #tpu.pipeline_mode<synchronous>, transform_indices = @transform_8, window_bounds = array<i64: 128, 384>}, {pipeline_mode = #tpu.pipeline_mode<synchronous>, transform_indices = @transform_9, window_bounds = array<i64: 1, 384>}, {transform_indices = @transform_10, window_bounds = array<i64: 128, 128>}, {transform_indices = @transform_11, window_bounds = array<i64: 128, 128>}, {transform_indices = @transform_12, window_bounds = array<i64: 1, 128, 128>}, {transform_indices = @transform_13, window_bounds = array<i64: 1, 1, 128>}]} {
    %c0 = arith.constant 0 : index
    %c0_0 = arith.constant 0 : index
    %0 = vector.load %arg3[%c0, %c0_0] : memref<128x128xbf16, #tpu.memory_space<vmem>>, vector<128x128xbf16>
    %c0_1 = arith.constant 0 : index
    %c0_2 = arith.constant 0 : index
    %1 = vector.load %arg4[%c0_1, %c0_2] : memref<128x128xbf16, #tpu.memory_space<vmem>>, vector<128x128xbf16>
    %c0_3 = arith.constant 0 : index
    %c0_4 = arith.constant 0 : index
    %2 = vector.load %arg5[%c0_3, %c0_4] : memref<128x256xbf16, #tpu.memory_space<vmem>>, vector<128x256xbf16>
    %cst = arith.constant dense<0.000000e+00> : vector<128x256xf32>
    %3 = tpu.matmul %0, %2, %cst {dimension_numbers = #tpu.dot_dimension_numbers<[1], [0], [0], [1], [0, 0, 1, 1], [], []>} : vector<128x128xbf16>, vector<128x256xbf16>, vector<128x256xf32> -> vector<128x256xf32>
    %4 = vector.extract_strided_slice %3 {offsets = [0, 0], sizes = [128, 128], strides = [1, 1]} : vector<128x256xf32> to vector<128x128xf32>
    %5 = vector.extract_strided_slice %3 {offsets = [0, 128], sizes = [128, 128], strides = [1, 1]} : vector<128x256xf32> to vector<128x128xf32>
    %6 = tpu.reciprocal %5 {approx = true} : vector<128x128xf32> -> vector<128x128xf32>
    %7 = arith.mulf %4, %6 : vector<128x128xf32>
    %cst_5 = arith.constant dense<0.000000e+00> : vector<128xf32>
    %8 = vector.multi_reduction <add>, %7, %cst_5 [1] : vector<128x128xf32> to vector<128xf32>
    %9 = vector.shape_cast %8 : vector<128xf32> to vector<128x1xf32>
    %cst_6 = arith.constant 1.280000e+02 : f32
    %10 = vector.broadcast %cst_6 : f32 to vector<128x1xf32>
    %11 = arith.divf %9, %10 : vector<128x1xf32>
    %12 = vector.broadcast %11 : vector<128x1xf32> to vector<128x128xf32>
    %13 = arith.subf %7, %12 : vector<128x128xf32>
    %14 = arith.mulf %13, %13 : vector<128x128xf32>
    %cst_7 = arith.constant dense<0.000000e+00> : vector<128xf32>
    %15 = vector.multi_reduction <add>, %14, %cst_7 [1] : vector<128x128xf32> to vector<128xf32>
    %16 = vector.shape_cast %15 : vector<128xf32> to vector<128x1xf32>
    %cst_8 = arith.constant 1.280000e+02 : f32
    %17 = vector.broadcast %cst_8 : f32 to vector<128x1xf32>
    %18 = arith.divf %16, %17 : vector<128x1xf32>
    %cst_9 = arith.constant 9.99999974E-6 : f32
    %19 = vector.broadcast %cst_9 : f32 to vector<128x1xf32>
    %20 = arith.addf %18, %19 : vector<128x1xf32>
    %21 = math.rsqrt %20 : vector<128x1xf32>
    %22 = vector.broadcast %21 : vector<128x1xf32> to vector<128x128xf32>
    %23 = arith.mulf %13, %22 : vector<128x128xf32>
    %c0_10 = arith.constant 0 : index
    %c0_11 = arith.constant 0 : index
    %24 = vector.load %arg6[%c0_10, %c0_11] : memref<1x128xf32, #tpu.memory_space<vmem>>, vector<1x128xf32>
    %25 = vector.broadcast %24 : vector<1x128xf32> to vector<128x128xf32>
    %26 = arith.mulf %23, %25 : vector<128x128xf32>
    %c0_12 = arith.constant 0 : index
    %c0_13 = arith.constant 0 : index
    %27 = vector.load %arg7[%c0_12, %c0_13] : memref<1x128xf32, #tpu.memory_space<vmem>>, vector<1x128xf32>
    %28 = vector.broadcast %27 : vector<1x128xf32> to vector<128x128xf32>
    %29 = arith.addf %26, %28 : vector<128x128xf32>
    %30 = arith.extf %1 : vector<128x128xbf16> to vector<128x128xf32>
    %c0_14 = arith.constant 0 : index
    %c0_15 = arith.constant 0 : index
    %31 = vector.load %arg8[%c0_14, %c0_15] : memref<1x128xf32, #tpu.memory_space<vmem>>, vector<1x128xf32>
    %32 = vector.broadcast %31 : vector<1x128xf32> to vector<128x128xf32>
    %33 = arith.addf %30, %32 : vector<128x128xf32>
    %34 = arith.mulf %29, %33 : vector<128x128xf32>
    %35 = arith.truncf %34 : vector<128x128xf32> to vector<128x128xbf16>
    %c0_16 = arith.constant 0 : index
    %c0_17 = arith.constant 0 : index
    %36 = vector.load %arg9[%c0_16, %c0_17] : memref<128x128xbf16, #tpu.memory_space<vmem>>, vector<128x128xbf16>
    %cst_18 = arith.constant dense<0.000000e+00> : vector<128x128xf32>
    %37 = tpu.matmul %35, %36, %cst_18 {dimension_numbers = #tpu.dot_dimension_numbers<[1], [0], [0], [1], [0, 0, 1, 1], [], []>} : vector<128x128xbf16>, vector<128x128xbf16>, vector<128x128xf32> -> vector<128x128xf32>
    %c0_19 = arith.constant 0 : index
    %c0_20 = arith.constant 0 : index
    %38 = vector.load %arg10[%c0_19, %c0_20] : memref<1x128xf32, #tpu.memory_space<vmem>>, vector<1x128xf32>
    %39 = vector.broadcast %38 : vector<1x128xf32> to vector<128x128xf32>
    %40 = arith.addf %37, %39 : vector<128x128xf32>
    %cst_21 = arith.constant 0.000000e+00 : f32
    %41 = vector.broadcast %cst_21 : f32 to vector<128x128xf32>
    %42 = arith.maximumf %40, %41 : vector<128x128xf32>
    %43 = arith.truncf %42 : vector<128x128xf32> to vector<128x128xbf16>
    %c0_i32 = arith.constant 0 : i32
    %44 = arith.cmpi eq, %arg1, %c0_i32 : i32
    %45 = arith.extui %44 : i1 to i32
    %c0_i32_22 = arith.constant 0 : i32
    %46 = arith.cmpi ne, %45, %c0_i32_22 : i32
    scf.if %46 {
      %cst_45 = arith.constant 0.000000e+00 : f32
      %92 = vector.broadcast %cst_45 : f32 to vector<128x128xf32>
      %c0_46 = arith.constant 0 : index
      %c0_47 = arith.constant 0 : index
      %93 = vector.load %arg17[%c0_46, %c0_47] : memref<128x128xf32, #tpu.memory_space<vmem>>, vector<128x128xf32>
      tpu.vector_store %arg17[%c0_46, %c0_47], %92 {strides = array<i32>} : memref<128x128xf32, #tpu.memory_space<vmem>>, vector<128x128xf32>,
      %cst_48 = arith.constant 0.000000e+00 : f32
      %94 = vector.broadcast %cst_48 : f32 to vector<1x128xf32>
      %c0_49 = arith.constant 0 : index
      %c0_50 = arith.constant 0 : index
      %95 = vector.load %arg18[%c0_49, %c0_50] : memref<1x128xf32, #tpu.memory_space<vmem>>, vector<1x128xf32>
      tpu.vector_store %arg18[%c0_49, %c0_50], %94 {strides = array<i32>} : memref<1x128xf32, #tpu.memory_space<vmem>>, vector<1x128xf32>,
    } else {
    }
    %c0_23 = arith.constant 0 : index
    %c0_24 = arith.constant 0 : index
    %47 = vector.load %arg11[%c0_23, %c0_24] : memref<128x384xbf16, #tpu.memory_space<vmem>>, vector<128x384xbf16>
    %cst_25 = arith.constant dense<0.000000e+00> : vector<128x384xf32>
    %48 = tpu.matmul %43, %47, %cst_25 {dimension_numbers = #tpu.dot_dimension_numbers<[1], [0], [0], [1], [0, 0, 1, 1], [], []>} : vector<128x128xbf16>, vector<128x384xbf16>, vector<128x384xf32> -> vector<128x384xf32>
    %c0_26 = arith.constant 0 : index
    %c0_27 = arith.constant 0 : index
    %49 = vector.load %arg12[%c0_26, %c0_27] : memref<1x384xf32, #tpu.memory_space<vmem>>, vector<1x384xf32>
    %50 = vector.broadcast %49 : vector<1x384xf32> to vector<128x384xf32>
    %51 = arith.addf %48, %50 : vector<128x384xf32>
    %52 = vector.extract_strided_slice %51 {offsets = [0, 128], sizes = [128, 128], strides = [1, 1]} : vector<128x384xf32> to vector<128x128xf32>
    %53 = arith.negf %52 : vector<128x128xf32>
    %54 = math.exp %53 : vector<128x128xf32>
    %cst_28 = arith.constant 1.000000e+00 : f32
    %55 = vector.broadcast %cst_28 : f32 to vector<128x128xf32>
    %56 = arith.addf %55, %54 : vector<128x128xf32>
    %57 = arith.divf %55, %56 : vector<128x128xf32>
    %58 = arith.truncf %57 : vector<128x128xf32> to vector<128x128xbf16>
    %59 = vector.extract_strided_slice %51 {offsets = [0, 256], sizes = [128, 128], strides = [1, 1]} : vector<128x384xf32> to vector<128x128xf32>
    %60 = arith.truncf %59 : vector<128x128xf32> to vector<128x128xbf16>
    %61 = vector.extract_strided_slice %51 {offsets = [0, 0], sizes = [128, 128], strides = [1, 1]} : vector<128x384xf32> to vector<128x128xf32>
    %62 = arith.truncf %61 : vector<128x128xf32> to vector<128x128xbf16>
    %c0_29 = arith.constant 0 : index
    %c0_30 = arith.constant 0 : index
    %63 = vector.load %arg13[%c0_29, %c0_30] : memref<128x128xbf16, #tpu.memory_space<vmem>>, vector<128x128xbf16>
    tpu.vector_store %arg13[%c0_29, %c0_30], %62 {strides = array<i32>} : memref<128x128xbf16, #tpu.memory_space<vmem>>, vector<128x128xbf16>,
    %c0_31 = arith.constant 0 : index
    %c0_32 = arith.constant 0 : index
    %64 = vector.load %arg14[%c0_31, %c0_32] : memref<128x128xbf16, #tpu.memory_space<vmem>>, vector<128x128xbf16>
    tpu.vector_store %arg14[%c0_31, %c0_32], %58 {strides = array<i32>} : memref<128x128xbf16, #tpu.memory_space<vmem>>, vector<128x128xbf16>,
    %c2_i32 = arith.constant 2 : i32
    %65 = arith.muli %arg0, %c2_i32 : i32
    %66 = arith.addi %65, %arg1 : i32
    %c128_i32 = arith.constant 128 : i32
    %67 = arith.muli %66, %c128_i32 : i32
    %68 = tpu.iota {dimensions = array<i32: 0>} : vector<128x1xi32>
    %69 = vector.broadcast %67 : i32 to vector<128x1xi32>
    %70 = arith.addi %69, %68 : vector<128x1xi32>
    %c0_33 = arith.constant 0 : index
    %71 = memref.load %arg2[%c0_33] : memref<1xi32, #tpu.memory_space<smem>>
    %72 = vector.broadcast %71 : i32 to vector<128x1xi32>
    %73 = arith.cmpi slt, %70, %72 : vector<128x1xi32>
    %74 = arith.extui %73 : vector<128x1xi1> to vector<128x1xi32>
    %75 = arith.sitofp %74 : vector<128x1xi32> to vector<128x1xf32>
    %76 = arith.truncf %75 : vector<128x1xf32> to vector<128x1xbf16>
    %77 = vector.broadcast %76 : vector<128x1xbf16> to vector<128x128xbf16>
    %78 = arith.mulf %58, %77 : vector<128x128xbf16>
    %c0_34 = arith.constant 0 : index
    %c0_35 = arith.constant 0 : index
    %79 = vector.load %arg17[%c0_34, %c0_35] : memref<128x128xf32, #tpu.memory_space<vmem>>, vector<128x128xf32>
    %cst_36 = arith.constant dense<0.000000e+00> : vector<128x128xf32>
    %80 = tpu.matmul %78, %60, %cst_36 {dimension_numbers = #tpu.dot_dimension_numbers<[0], [0], [1], [1], [0, 1, 1, 1], [], []>} : vector<128x128xbf16>, vector<128x128xbf16>, vector<128x128xf32> -> vector<128x128xf32>
    %81 = arith.addf %79, %80 : vector<128x128xf32>
    %c0_37 = arith.constant 0 : index
    %c0_38 = arith.constant 0 : index
    %82 = vector.load %arg17[%c0_37, %c0_38] : memref<128x128xf32, #tpu.memory_space<vmem>>, vector<128x128xf32>
    tpu.vector_store %arg17[%c0_37, %c0_38], %81 {strides = array<i32>} : memref<128x128xf32, #tpu.memory_space<vmem>>, vector<128x128xf32>,
    %c0_39 = arith.constant 0 : index
    %c0_40 = arith.constant 0 : index
    %83 = vector.load %arg18[%c0_39, %c0_40] : memref<1x128xf32, #tpu.memory_space<vmem>>, vector<1x128xf32>
    %84 = arith.extf %78 : vector<128x128xbf16> to vector<128x128xf32>
    %cst_41 = arith.constant dense<0.000000e+00> : vector<128xf32>
    %85 = vector.multi_reduction <add>, %84, %cst_41 [0] : vector<128x128xf32> to vector<128xf32>
    %86 = vector.shape_cast %85 : vector<128xf32> to vector<1x128xf32>
    %87 = arith.addf %83, %86 : vector<1x128xf32>
    %c0_42 = arith.constant 0 : index
    %c0_43 = arith.constant 0 : index
    %88 = vector.load %arg18[%c0_42, %c0_43] : memref<1x128xf32, #tpu.memory_space<vmem>>, vector<1x128xf32>
    tpu.vector_store %arg18[%c0_42, %c0_43], %87 {strides = array<i32>} : memref<1x128xf32, #tpu.memory_space<vmem>>, vector<1x128xf32>,
    %c1_i32 = arith.constant 1 : i32
    %89 = arith.cmpi eq, %arg1, %c1_i32 : i32
    %90 = arith.extui %89 : i1 to i32
    %c0_i32_44 = arith.constant 0 : i32
    %91 = arith.cmpi ne, %90, %c0_i32_44 : i32
    scf.if %91 {
      %c0_45 = arith.constant 0 : index
      %c0_46 = arith.constant 0 : index
      %92 = vector.load %arg17[%c0_45, %c0_46] : memref<128x128xf32, #tpu.memory_space<vmem>>, vector<128x128xf32>
      %c0_47 = arith.constant 0 : index
      %c0_48 = arith.constant 0 : index
      %c0_49 = arith.constant 0 : index
      %93 = vector.load %arg15[%c0_47, %c0_48, %c0_49] : memref<1x128x128xf32, #tpu.memory_space<vmem>>, vector<1x128x128xf32>
      %94 = vector.shape_cast %93 : vector<1x128x128xf32> to vector<128x128xf32>
      %95 = vector.shape_cast %92 : vector<128x128xf32> to vector<1x128x128xf32>
      tpu.vector_store %arg15[%c0_47, %c0_48, %c0_49], %95 {strides = array<i32>} : memref<1x128x128xf32, #tpu.memory_space<vmem>>, vector<1x128x128xf32>,
      %c0_50 = arith.constant 0 : index
      %c0_51 = arith.constant 0 : index
      %96 = vector.load %arg18[%c0_50, %c0_51] : memref<1x128xf32, #tpu.memory_space<vmem>>, vector<1x128xf32>
      %c0_52 = arith.constant 0 : index
      %c0_53 = arith.constant 0 : index
      %c0_54 = arith.constant 0 : index
      %97 = vector.load %arg16[%c0_52, %c0_53, %c0_54] : memref<1x1x128xf32, #tpu.memory_space<vmem>>, vector<1x1x128xf32>
      %98 = vector.shape_cast %97 : vector<1x1x128xf32> to vector<1x128xf32>
      %99 = vector.shape_cast %96 : vector<1x128xf32> to vector<1x1x128xf32>
      tpu.vector_store %arg16[%c0_52, %c0_53, %c0_54], %99 {strides = array<i32>} : memref<1x1x128xf32, #tpu.memory_space<vmem>>, vector<1x1x128xf32>,
    } else {
    }
    return
  }
  func.func @transform_0(%arg0: i32, %arg1: i32, %arg2: memref<1xi32, #tpu.memory_space<smem>>) -> (i32, i32) {
    %c2_i32 = arith.constant 2 : i32
    %0 = arith.muli %arg0, %c2_i32 : i32
    %1 = arith.addi %0, %arg1 : i32
    %c0_i32 = arith.constant 0 : i32
    %c0_i32_0 = arith.constant 0 : i32
    return %1, %c0_i32 : i32, i32
  }
  func.func @transform_1(%arg0: i32, %arg1: i32, %arg2: memref<1xi32, #tpu.memory_space<smem>>) -> (i32, i32) {
    %c2_i32 = arith.constant 2 : i32
    %0 = arith.muli %arg0, %c2_i32 : i32
    %1 = arith.addi %0, %arg1 : i32
    %c0_i32 = arith.constant 0 : i32
    %c0_i32_0 = arith.constant 0 : i32
    return %1, %c0_i32 : i32, i32
  }
  func.func @transform_2(%arg0: i32, %arg1: i32, %arg2: memref<1xi32, #tpu.memory_space<smem>>) -> (i32, i32) {
    %c0_i32 = arith.constant 0 : i32
    %c0_i32_0 = arith.constant 0 : i32
    %c0_i32_1 = arith.constant 0 : i32
    return %c0_i32, %c0_i32_0 : i32, i32
  }
  func.func @transform_3(%arg0: i32, %arg1: i32, %arg2: memref<1xi32, #tpu.memory_space<smem>>) -> (i32, i32) {
    %c0_i32 = arith.constant 0 : i32
    %c0_i32_0 = arith.constant 0 : i32
    %c0_i32_1 = arith.constant 0 : i32
    return %c0_i32, %c0_i32_0 : i32, i32
  }
  func.func @transform_4(%arg0: i32, %arg1: i32, %arg2: memref<1xi32, #tpu.memory_space<smem>>) -> (i32, i32) {
    %c0_i32 = arith.constant 0 : i32
    %c0_i32_0 = arith.constant 0 : i32
    %c0_i32_1 = arith.constant 0 : i32
    return %c0_i32, %c0_i32_0 : i32, i32
  }
  func.func @transform_5(%arg0: i32, %arg1: i32, %arg2: memref<1xi32, #tpu.memory_space<smem>>) -> (i32, i32) {
    %c0_i32 = arith.constant 0 : i32
    %c0_i32_0 = arith.constant 0 : i32
    %c0_i32_1 = arith.constant 0 : i32
    return %c0_i32, %c0_i32_0 : i32, i32
  }
  func.func @transform_6(%arg0: i32, %arg1: i32, %arg2: memref<1xi32, #tpu.memory_space<smem>>) -> (i32, i32) {
    %c0_i32 = arith.constant 0 : i32
    %c0_i32_0 = arith.constant 0 : i32
    %c0_i32_1 = arith.constant 0 : i32
    return %c0_i32, %c0_i32_0 : i32, i32
  }
  func.func @transform_7(%arg0: i32, %arg1: i32, %arg2: memref<1xi32, #tpu.memory_space<smem>>) -> (i32, i32) {
    %c0_i32 = arith.constant 0 : i32
    %c0_i32_0 = arith.constant 0 : i32
    %c0_i32_1 = arith.constant 0 : i32
    return %c0_i32, %c0_i32_0 : i32, i32
  }
  func.func @transform_8(%arg0: i32, %arg1: i32, %arg2: memref<1xi32, #tpu.memory_space<smem>>) -> (i32, i32) {
    %c0_i32 = arith.constant 0 : i32
    %c0_i32_0 = arith.constant 0 : i32
    %c0_i32_1 = arith.constant 0 : i32
    return %c0_i32, %c0_i32_0 : i32, i32
  }
  func.func @transform_9(%arg0: i32, %arg1: i32, %arg2: memref<1xi32, #tpu.memory_space<smem>>) -> (i32, i32) {
    %c0_i32 = arith.constant 0 : i32
    %c0_i32_0 = arith.constant 0 : i32
    %c0_i32_1 = arith.constant 0 : i32
    return %c0_i32, %c0_i32_0 : i32, i32
  }
  func.func @transform_10(%arg0: i32, %arg1: i32, %arg2: memref<1xi32, #tpu.memory_space<smem>>) -> (i32, i32) {
    %c2_i32 = arith.constant 2 : i32
    %0 = arith.muli %arg0, %c2_i32 : i32
    %1 = arith.addi %0, %arg1 : i32
    %c0_i32 = arith.constant 0 : i32
    %c0_i32_0 = arith.constant 0 : i32
    return %1, %c0_i32 : i32, i32
  }
  func.func @transform_11(%arg0: i32, %arg1: i32, %arg2: memref<1xi32, #tpu.memory_space<smem>>) -> (i32, i32) {
    %c2_i32 = arith.constant 2 : i32
    %0 = arith.muli %arg0, %c2_i32 : i32
    %1 = arith.addi %0, %arg1 : i32
    %c0_i32 = arith.constant 0 : i32
    %c0_i32_0 = arith.constant 0 : i32
    return %1, %c0_i32 : i32, i32
  }
  func.func @transform_12(%arg0: i32, %arg1: i32, %arg2: memref<1xi32, #tpu.memory_space<smem>>) -> (i32, i32, i32) {
    %c0_i32 = arith.constant 0 : i32
    %c0_i32_0 = arith.constant 0 : i32
    %c0_i32_1 = arith.constant 0 : i32
    return %arg0, %c0_i32, %c0_i32_0 : i32, i32, i32
  }
  func.func @transform_13(%arg0: i32, %arg1: i32, %arg2: memref<1xi32, #tpu.memory_space<smem>>) -> (i32, i32, i32) {
    %c0_i32 = arith.constant 0 : i32
    %c0_i32_0 = arith.constant 0 : i32
    %c0_i32_1 = arith.constant 0 : i32
    return %arg0, %c0_i32, %c0_i32_0 : i32, i32, i32
  }
}

module attributes {stable_mosaic.version = 11 : i64} {
  func.func @_attn_out_kernel(%arg0: i32, %arg1: memref<128x128xbf16, #tpu.memory_space<vmem>>, %arg2: memref<128x128xbf16, #tpu.memory_space<vmem>>, %arg3: memref<128x256xbf16, #tpu.memory_space<vmem>>, %arg4: memref<1x128xf32, #tpu.memory_space<vmem>>, %arg5: memref<1x128xf32, #tpu.memory_space<vmem>>, %arg6: memref<1x128xf32, #tpu.memory_space<vmem>>, %arg7: memref<128x128xbf16, #tpu.memory_space<vmem>>, %arg8: memref<1x128xf32, #tpu.memory_space<vmem>>, %arg9: memref<128x128xf32, #tpu.memory_space<vmem>>) attributes {dimension_semantics = [#tpu.dimension_semantics<parallel>], iteration_bounds = array<i64: 4>, scalar_prefetch = 0 : i64, scratch_operands = 0 : i64, tpu.core_type = #tpu.core_type<tc>, window_params = [{transform_indices = @transform_0, window_bounds = array<i64: 128, 128>}, {transform_indices = @transform_1, window_bounds = array<i64: 128, 128>}, {pipeline_mode = #tpu.pipeline_mode<synchronous>, transform_indices = @transform_2, window_bounds = array<i64: 128, 256>}, {pipeline_mode = #tpu.pipeline_mode<synchronous>, transform_indices = @transform_3, window_bounds = array<i64: 1, 128>}, {pipeline_mode = #tpu.pipeline_mode<synchronous>, transform_indices = @transform_4, window_bounds = array<i64: 1, 128>}, {pipeline_mode = #tpu.pipeline_mode<synchronous>, transform_indices = @transform_5, window_bounds = array<i64: 1, 128>}, {pipeline_mode = #tpu.pipeline_mode<synchronous>, transform_indices = @transform_6, window_bounds = array<i64: 128, 128>}, {pipeline_mode = #tpu.pipeline_mode<synchronous>, transform_indices = @transform_7, window_bounds = array<i64: 1, 128>}, {transform_indices = @transform_8, window_bounds = array<i64: 128, 128>}]} {
    %c0 = arith.constant 0 : index
    %c0_0 = arith.constant 0 : index
    %0 = vector.load %arg1[%c0, %c0_0] : memref<128x128xbf16, #tpu.memory_space<vmem>>, vector<128x128xbf16>
    %c0_1 = arith.constant 0 : index
    %c0_2 = arith.constant 0 : index
    %1 = vector.load %arg2[%c0_1, %c0_2] : memref<128x128xbf16, #tpu.memory_space<vmem>>, vector<128x128xbf16>
    %c0_3 = arith.constant 0 : index
    %c0_4 = arith.constant 0 : index
    %2 = vector.load %arg3[%c0_3, %c0_4] : memref<128x256xbf16, #tpu.memory_space<vmem>>, vector<128x256xbf16>
    %cst = arith.constant dense<0.000000e+00> : vector<128x256xf32>
    %3 = tpu.matmul %0, %2, %cst {dimension_numbers = #tpu.dot_dimension_numbers<[1], [0], [0], [1], [0, 0, 1, 1], [], []>} : vector<128x128xbf16>, vector<128x256xbf16>, vector<128x256xf32> -> vector<128x256xf32>
    %4 = vector.extract_strided_slice %3 {offsets = [0, 0], sizes = [128, 128], strides = [1, 1]} : vector<128x256xf32> to vector<128x128xf32>
    %5 = vector.extract_strided_slice %3 {offsets = [0, 128], sizes = [128, 128], strides = [1, 1]} : vector<128x256xf32> to vector<128x128xf32>
    %6 = tpu.reciprocal %5 {approx = true} : vector<128x128xf32> -> vector<128x128xf32>
    %7 = arith.mulf %4, %6 : vector<128x128xf32>
    %cst_5 = arith.constant dense<0.000000e+00> : vector<128xf32>
    %8 = vector.multi_reduction <add>, %7, %cst_5 [1] : vector<128x128xf32> to vector<128xf32>
    %9 = vector.shape_cast %8 : vector<128xf32> to vector<128x1xf32>
    %cst_6 = arith.constant 1.280000e+02 : f32
    %10 = vector.broadcast %cst_6 : f32 to vector<128x1xf32>
    %11 = arith.divf %9, %10 : vector<128x1xf32>
    %12 = vector.broadcast %11 : vector<128x1xf32> to vector<128x128xf32>
    %13 = arith.subf %7, %12 : vector<128x128xf32>
    %14 = arith.mulf %13, %13 : vector<128x128xf32>
    %cst_7 = arith.constant dense<0.000000e+00> : vector<128xf32>
    %15 = vector.multi_reduction <add>, %14, %cst_7 [1] : vector<128x128xf32> to vector<128xf32>
    %16 = vector.shape_cast %15 : vector<128xf32> to vector<128x1xf32>
    %cst_8 = arith.constant 1.280000e+02 : f32
    %17 = vector.broadcast %cst_8 : f32 to vector<128x1xf32>
    %18 = arith.divf %16, %17 : vector<128x1xf32>
    %cst_9 = arith.constant 9.99999974E-6 : f32
    %19 = vector.broadcast %cst_9 : f32 to vector<128x1xf32>
    %20 = arith.addf %18, %19 : vector<128x1xf32>
    %21 = math.rsqrt %20 : vector<128x1xf32>
    %22 = vector.broadcast %21 : vector<128x1xf32> to vector<128x128xf32>
    %23 = arith.mulf %13, %22 : vector<128x128xf32>
    %c0_10 = arith.constant 0 : index
    %c0_11 = arith.constant 0 : index
    %24 = vector.load %arg4[%c0_10, %c0_11] : memref<1x128xf32, #tpu.memory_space<vmem>>, vector<1x128xf32>
    %25 = vector.broadcast %24 : vector<1x128xf32> to vector<128x128xf32>
    %26 = arith.mulf %23, %25 : vector<128x128xf32>
    %c0_12 = arith.constant 0 : index
    %c0_13 = arith.constant 0 : index
    %27 = vector.load %arg5[%c0_12, %c0_13] : memref<1x128xf32, #tpu.memory_space<vmem>>, vector<1x128xf32>
    %28 = vector.broadcast %27 : vector<1x128xf32> to vector<128x128xf32>
    %29 = arith.addf %26, %28 : vector<128x128xf32>
    %30 = arith.extf %1 : vector<128x128xbf16> to vector<128x128xf32>
    %c0_14 = arith.constant 0 : index
    %c0_15 = arith.constant 0 : index
    %31 = vector.load %arg6[%c0_14, %c0_15] : memref<1x128xf32, #tpu.memory_space<vmem>>, vector<1x128xf32>
    %32 = vector.broadcast %31 : vector<1x128xf32> to vector<128x128xf32>
    %33 = arith.addf %30, %32 : vector<128x128xf32>
    %34 = arith.mulf %29, %33 : vector<128x128xf32>
    %35 = arith.truncf %34 : vector<128x128xf32> to vector<128x128xbf16>
    %c0_16 = arith.constant 0 : index
    %c0_17 = arith.constant 0 : index
    %36 = vector.load %arg7[%c0_16, %c0_17] : memref<128x128xbf16, #tpu.memory_space<vmem>>, vector<128x128xbf16>
    %cst_18 = arith.constant dense<0.000000e+00> : vector<128x128xf32>
    %37 = tpu.matmul %35, %36, %cst_18 {dimension_numbers = #tpu.dot_dimension_numbers<[1], [0], [0], [1], [0, 0, 1, 1], [], []>} : vector<128x128xbf16>, vector<128x128xbf16>, vector<128x128xf32> -> vector<128x128xf32>
    %c0_19 = arith.constant 0 : index
    %c0_20 = arith.constant 0 : index
    %38 = vector.load %arg8[%c0_19, %c0_20] : memref<1x128xf32, #tpu.memory_space<vmem>>, vector<1x128xf32>
    %39 = vector.broadcast %38 : vector<1x128xf32> to vector<128x128xf32>
    %40 = arith.addf %37, %39 : vector<128x128xf32>
    %cst_21 = arith.constant 0.000000e+00 : f32
    %41 = vector.broadcast %cst_21 : f32 to vector<128x128xf32>
    %42 = arith.maximumf %40, %41 : vector<128x128xf32>
    %c0_22 = arith.constant 0 : index
    %c0_23 = arith.constant 0 : index
    %43 = vector.load %arg9[%c0_22, %c0_23] : memref<128x128xf32, #tpu.memory_space<vmem>>, vector<128x128xf32>
    tpu.vector_store %arg9[%c0_22, %c0_23], %42 {strides = array<i32>} : memref<128x128xf32, #tpu.memory_space<vmem>>, vector<128x128xf32>,
    return
  }
  func.func @transform_0(%arg0: i32) -> (i32, i32) {
    %c0_i32 = arith.constant 0 : i32
    %c0_i32_0 = arith.constant 0 : i32
    return %arg0, %c0_i32 : i32, i32
  }
  func.func @transform_1(%arg0: i32) -> (i32, i32) {
    %c0_i32 = arith.constant 0 : i32
    %c0_i32_0 = arith.constant 0 : i32
    return %arg0, %c0_i32 : i32, i32
  }
  func.func @transform_2(%arg0: i32) -> (i32, i32) {
    %c0_i32 = arith.constant 0 : i32
    %c0_i32_0 = arith.constant 0 : i32
    %c0_i32_1 = arith.constant 0 : i32
    return %c0_i32, %c0_i32_0 : i32, i32
  }
  func.func @transform_3(%arg0: i32) -> (i32, i32) {
    %c0_i32 = arith.constant 0 : i32
    %c0_i32_0 = arith.constant 0 : i32
    %c0_i32_1 = arith.constant 0 : i32
    return %c0_i32, %c0_i32_0 : i32, i32
  }
  func.func @transform_4(%arg0: i32) -> (i32, i32) {
    %c0_i32 = arith.constant 0 : i32
    %c0_i32_0 = arith.constant 0 : i32
    %c0_i32_1 = arith.constant 0 : i32
    return %c0_i32, %c0_i32_0 : i32, i32
  }
  func.func @transform_5(%arg0: i32) -> (i32, i32) {
    %c0_i32 = arith.constant 0 : i32
    %c0_i32_0 = arith.constant 0 : i32
    %c0_i32_1 = arith.constant 0 : i32
    return %c0_i32, %c0_i32_0 : i32, i32
  }
  func.func @transform_6(%arg0: i32) -> (i32, i32) {
    %c0_i32 = arith.constant 0 : i32
    %c0_i32_0 = arith.constant 0 : i32
    %c0_i32_1 = arith.constant 0 : i32
    return %c0_i32, %c0_i32_0 : i32, i32
  }
  func.func @transform_7(%arg0: i32) -> (i32, i32) {
    %c0_i32 = arith.constant 0 : i32
    %c0_i32_0 = arith.constant 0 : i32
    %c0_i32_1 = arith.constant 0 : i32
    return %c0_i32, %c0_i32_0 : i32, i32
  }
  func.func @transform_8(%arg0: i32) -> (i32, i32) {
    %c0_i32 = arith.constant 0 : i32
    %c0_i32_0 = arith.constant 0 : i32
    return %arg0, %c0_i32 : i32, i32
  }
}

</mosaic_0001>

<llo_original>
// kernel: global_attn_forward.5
$region0: #{global_attn_forward.5}
  #allocation0 [shape = 'u32[]', space=smem, size = 0x4, offset = 0x4, fixed_abs, tag = 'smem constant byte address 0x4 - core index']
  #allocation1 [shape = 'u32[144,128]{1,0:T(1,128)}', space=vmem, size = 0x12000, scoped, tag = 'internal scratch']
  %s0 = inlined_call_operand.vmem [shape: bf16[512,128], index: 0, kind: input, shape index: {}]
  %s1 = inlined_call_operand.vmem [shape: bf16[512,128], index: 1, kind: input, shape index: {}]
  %s2 = inlined_call_operand.vmem [shape: bf16[128,256], index: 2, kind: input, shape index: {}]
  %s3 = inlined_call_operand.vmem [shape: f32[1,128], index: 3, kind: input, shape index: {}]
  %s4 = inlined_call_operand.vmem [shape: f32[1,128], index: 4, kind: input, shape index: {}]
  %s5 = inlined_call_operand.vmem [shape: f32[1,128], index: 5, kind: input, shape index: {}]
  %s6 = inlined_call_operand.vmem [shape: bf16[128,128], index: 6, kind: input, shape index: {}]
  %s7 = inlined_call_operand.vmem [shape: f32[1,128], index: 7, kind: input, shape index: {}]
  %s8 = inlined_call_operand.vmem [shape: f32[512,128], index: 8, kind: output, shape index: {}]
  %s9 = sld [smem:[#allocation0]]
  $region65: #{global_attn_forward.5} parent=0
    _
  %s11 = ssub.s32 1, %s9
  %s12 = scalar_select 0, %s11, %s9
  loop: start=0, step=1, limit=6
  $region2: #{global_attn_forward.5} parent=0 // loop_pre_header
    _
  $region3: #{global_attn_forward.5} parent=0 // loop_header
    %s14 = sphi 0, %s18
    %p15 = scmp.ge.s32.totalorder %s14, 6
    %s24 = sphi 0, %s26
    %s27 = sphi 0, %s24
    %s28 = sphi 0, %s27
    %s44 = sphi 0, %s28
    %s50 = sphi 0, %s52
    %s53 = sphi 0, %s50
    %s54 = sphi 0, %s53
    %s70 = sphi 0, %s54
    %s74 = sphi 0, %s74
    %s76 = sphi 0, %s74
    %s77 = sphi 0, %s76
    %s91 = sphi 0, %s77
    %s95 = sphi 0, %s95
    %s97 = sphi 0, %s95
    %s98 = sphi 0, %s97
    %s112 = sphi 0, %s98
    %s116 = sphi 0, %s116
    %s118 = sphi 0, %s116
    %s119 = sphi 0, %s118
    %s133 = sphi 0, %s119
    %s137 = sphi 0, %s137
    %s139 = sphi 0, %s137
    %s140 = sphi 0, %s139
    %s154 = sphi 0, %s140
    %s158 = sphi 0, %s158
    %s160 = sphi 0, %s158
    %s161 = sphi 0, %s160
    %s175 = sphi 0, %s161
    %s179 = sphi 0, %s179
    %s181 = sphi 0, %s179
    %s182 = sphi 0, %s181
    %s196 = sphi 0, %s182
    %s202 = sphi 0, %s204
    %s205 = sphi 0, %s202
    %s206 = sphi 0, %s205
    %s222 = sphi 0, %s206
  $region4: #{global_attn_forward.5} parent=0 // loop_header_branch
    %17 = sbr.rel (%p15) target = $region8
  $region5: #{global_attn_forward.5} parent=0 // loop_body
    %s19 = ssub.s32 %s14, 1
    %s20 = ssub.s32 %s14, 2
    %s21 = sadd.s32 %s14, 1
    %s22 = ssub.s32 %s14, %s21
    %p23 = scmp.eq.s32.totalorder %s22, 0
    %s25 = sadd.s32 %s24, 1
    %s26 = scalar_select %p23, %s24, %s25
    %p29 = pneg %p23
    %p30 = scmp.eq.s32.totalorder %s14, 3
    %p31 = por %p29, %p30
    %p32 = scmp.ne.s32.totalorder %s24, %s27
    %p33 = scmp.eq.s32.totalorder %s14, 0
    %p34 = por %p32, %p33
    %p35 = scmp.ne.s32.totalorder %s24, %s27
    %p36 = scmp.eq.s32.totalorder %s19, 3
    %p37 = por %p35, %p36
    %p38 = scmp.ne.s32.totalorder %s27, %s28
    %p39 = scmp.eq.s32.totalorder %s19, 0
    %p40 = por %p38, %p39
    %p41 = scmp.ne.s32.totalorder %s27, %s28
    %p42 = scmp.eq.s32.totalorder %s20, 3
    %p43 = por %p41, %p42
    %p45 = scmp.ne.s32.totalorder %s28, %s44
    %p46 = scmp.eq.s32.totalorder %s20, 0
    %p47 = por %p45, %p46
    %s48 = ssub.s32 %s14, %s21
    %p49 = scmp.eq.s32.totalorder %s48, 0
    %s51 = sadd.s32 %s50, 1
    %s52 = scalar_select %p49, %s50, %s51
    %p55 = pneg %p49
    %p56 = scmp.eq.s32.totalorder %s14, 3
    %p57 = por %p55, %p56
    %p58 = scmp.ne.s32.totalorder %s50, %s53
    %p59 = scmp.eq.s32.totalorder %s14, 0
    %p60 = por %p58, %p59
    %p61 = scmp.ne.s32.totalorder %s50, %s53
    %p62 = scmp.eq.s32.totalorder %s19, 3
    %p63 = por %p61, %p62
    %p64 = scmp.ne.s32.totalorder %s53, %s54
    %p65 = scmp.eq.s32.totalorder %s19, 0
    %p66 = por %p64, %p65
    %p67 = scmp.ne.s32.totalorder %s53, %s54
    %p68 = scmp.eq.s32.totalorder %s20, 3
    %p69 = por %p67, %p68
    %p71 = scmp.ne.s32.totalorder %s54, %s70
    %p72 = scmp.eq.s32.totalorder %s20, 0
    %p73 = por %p71, %p72
    %s75 = sadd.s32 %s74, 1
    %p78 = scmp.eq.s32.totalorder %s14, 3
    %p79 = scmp.ne.s32.totalorder %s74, %s76
    %p80 = scmp.eq.s32.totalorder %s14, 0
    %p81 = por %p79, %p80
    %p82 = scmp.ne.s32.totalorder %s74, %s76
    %p83 = scmp.eq.s32.totalorder %s19, 3
    %p84 = por %p82, %p83
    %p85 = scmp.ne.s32.totalorder %s76, %s77
    %p86 = scmp.eq.s32.totalorder %s19, 0
    %p87 = por %p85, %p86
    %p88 = scmp.ne.s32.totalorder %s76, %s77
    %p89 = scmp.eq.s32.totalorder %s20, 3
    %p90 = por %p88, %p89
    %p92 = scmp.ne.s32.totalorder %s77, %s91
    %p93 = scmp.eq.s32.totalorder %s20, 0
    %p94 = por %p92, %p93
    %s96 = sadd.s32 %s95, 1
    %p99 = scmp.eq.s32.totalorder %s14, 3
    %p100 = scmp.ne.s32.totalorder %s95, %s97
    %p101 = scmp.eq.s32.totalorder %s14, 0
    %p102 = por %p100, %p101
    %p103 = scmp.ne.s32.totalorder %s95, %s97
    %p104 = scmp.eq.s32.totalorder %s19, 3
    %p105 = por %p103, %p104
    %p106 = scmp.ne.s32.totalorder %s97, %s98
    %p107 = scmp.eq.s32.totalorder %s19, 0
    %p108 = por %p106, %p107
    %p109 = scmp.ne.s32.totalorder %s97, %s98
    %p110 = scmp.eq.s32.totalorder %s20, 3
    %p111 = por %p109, %p110
    %p113 = scmp.ne.s32.totalorder %s98, %s112
    %p114 = scmp.eq.s32.totalorder %s20, 0
    %p115 = por %p113, %p114
    %s117 = sadd.s32 %s116, 1
    %p120 = scmp.eq.s32.totalorder %s14, 3
    %p121 = scmp.ne.s32.totalorder %s116, %s118
    %p122 = scmp.eq.s32.totalorder %s14, 0
    %p123 = por %p121, %p122
    %p124 = scmp.ne.s32.totalorder %s116, %s118
    %p125 = scmp.eq.s32.totalorder %s19, 3
    %p126 = por %p124, %p125
    %p127 = scmp.ne.s32.totalorder %s118, %s119
    %p128 = scmp.eq.s32.totalorder %s19, 0
    %p129 = por %p127, %p128
    %p130 = scmp.ne.s32.totalorder %s118, %s119
    %p131 = scmp.eq.s32.totalorder %s20, 3
    %p132 = por %p130, %p131
    %p134 = scmp.ne.s32.totalorder %s119, %s133
    %p135 = scmp.eq.s32.totalorder %s20, 0
    %p136 = por %p134, %p135
    %s138 = sadd.s32 %s137, 1
    %p141 = scmp.eq.s32.totalorder %s14, 3
    %p142 = scmp.ne.s32.totalorder %s137, %s139
    %p143 = scmp.eq.s32.totalorder %s14, 0
    %p144 = por %p142, %p143
    %p145 = scmp.ne.s32.totalorder %s137, %s139
    %p146 = scmp.eq.s32.totalorder %s19, 3
    %p147 = por %p145, %p146
    %p148 = scmp.ne.s32.totalorder %s139, %s140
    %p149 = scmp.eq.s32.totalorder %s19, 0
    %p150 = por %p148, %p149
    %p151 = scmp.ne.s32.totalorder %s139, %s140
    %p152 = scmp.eq.s32.totalorder %s20, 3
    %p153 = por %p151, %p152
    %p155 = scmp.ne.s32.totalorder %s140, %s154
    %p156 = scmp.eq.s32.totalorder %s20, 0
    %p157 = por %p155, %p156
    %s159 = sadd.s32 %s158, 1
    %p162 = scmp.eq.s32.totalorder %s14, 3
    %p163 = scmp.ne.s32.totalorder %s158, %s160
    %p164 = scmp.eq.s32.totalorder %s14, 0
    %p165 = por %p163, %p164
    %p166 = scmp.ne.s32.totalorder %s158, %s160
    %p167 = scmp.eq.s32.totalorder %s19, 3
    %p168 = por %p166, %p167
    %p169 = scmp.ne.s32.totalorder %s160, %s161
    %p170 = scmp.eq.s32.totalorder %s19, 0
    %p171 = por %p169, %p170
    %p172 = scmp.ne.s32.totalorder %s160, %s161
    %p173 = scmp.eq.s32.totalorder %s20, 3
    %p174 = por %p172, %p173
    %p176 = scmp.ne.s32.totalorder %s161, %s175
    %p177 = scmp.eq.s32.totalorder %s20, 0
    %p178 = por %p176, %p177
    %s180 = sadd.s32 %s179, 1
    %p183 = scmp.eq.s32.totalorder %s14, 3
    %p184 = scmp.ne.s32.totalorder %s179, %s181
    %p185 = scmp.eq.s32.totalorder %s14, 0
    %p186 = por %p184, %p185
    %p187 = scmp.ne.s32.totalorder %s179, %s181
    %p188 = scmp.eq.s32.totalorder %s19, 3
    %p189 = por %p187, %p188
    %p190 = scmp.ne.s32.totalorder %s181, %s182
    %p191 = scmp.eq.s32.totalorder %s19, 0
    %p192 = por %p190, %p191
    %p193 = scmp.ne.s32.totalorder %s181, %s182
    %p194 = scmp.eq.s32.totalorder %s20, 3
    %p195 = por %p193, %p194
    %p197 = scmp.ne.s32.totalorder %s182, %s196
    %p198 = scmp.eq.s32.totalorder %s20, 0
    %p199 = por %p197, %p198
    %s200 = ssub.s32 %s14, %s21
    %p201 = scmp.eq.s32.totalorder %s200, 0
    %s203 = sadd.s32 %s202, 1
    %s204 = scalar_select %p201, %s202, %s203
    %p207 = pneg %p201
    %p208 = scmp.eq.s32.totalorder %s14, 3
    %p209 = por %p207, %p208
    %p210 = scmp.ne.s32.totalorder %s202, %s205
    %p211 = scmp.eq.s32.totalorder %s14, 0
    %p212 = por %p210, %p211
    %p213 = scmp.ne.s32.totalorder %s202, %s205
    %p214 = scmp.eq.s32.totalorder %s19, 3
    %p215 = por %p213, %p214
    %p216 = scmp.ne.s32.totalorder %s205, %s206
    %p217 = scmp.eq.s32.totalorder %s19, 0
    %p218 = por %p216, %p217
    %p219 = scmp.ne.s32.totalorder %s205, %s206
    %p220 = scmp.eq.s32.totalorder %s20, 3
    %p221 = por %p219, %p220
    %p223 = scmp.ne.s32.totalorder %s206, %s222
    %p224 = scmp.eq.s32.totalorder %s20, 0
    %p225 = por %p223, %p224
    %p226 = scmp.le.s32.totalorder 1, %s14
    %p227 = scmp.lt.s32.totalorder %s14, 5
    %p228 = pnand %p226, %p227
    %p229 = pneg %p228
    // Predicated region
    $region9: #{global_attn_forward.5} parent=5 // pred_check
      _
    $region10: #{global_attn_forward.5} parent=5 // pred_check_branch
      %231 = sbr.rel (%p228) target = $region12
    $region11: #{global_attn_forward.5} parent=5 // pred_region
      %s232 = ssub.s32 %s14, 1
      // Predicated region
      $region13: #{global_attn_forward.5} parent=11 // pred_check
        %p233 = pneg %p87
      $region14: #{global_attn_forward.5} parent=11 // pred_check_branch
        %235 = sbr.rel (%p233) target = $region16
      $region15: #{global_attn_forward.5} parent=11 // pred_region
        _
      $region16: #{global_attn_forward.5} parent=11 // pred_fallthru
        _
      // Predicated region
      $region17: #{global_attn_forward.5} parent=11 // pred_check
        %p236 = pneg %p108
      $region18: #{global_attn_forward.5} parent=11 // pred_check_branch
        %238 = sbr.rel (%p236) target = $region20
      $region19: #{global_attn_forward.5} parent=11 // pred_region
        _
      $region20: #{global_attn_forward.5} parent=11 // pred_fallthru
        _
      // Predicated region
      $region21: #{global_attn_forward.5} parent=11 // pred_check
        %p239 = pneg %p129
      $region22: #{global_attn_forward.5} parent=11 // pred_check_branch
        %241 = sbr.rel (%p239) target = $region24
      $region23: #{global_attn_forward.5} parent=11 // pred_region
        _
      $region24: #{global_attn_forward.5} parent=11 // pred_fallthru
        _
      // Predicated region
      $region25: #{global_attn_forward.5} parent=11 // pred_check
        %p242 = pneg %p150
      $region26: #{global_attn_forward.5} parent=11 // pred_check_branch
        %244 = sbr.rel (%p242) target = $region28
      $region27: #{global_attn_forward.5} parent=11 // pred_region
        _
      $region28: #{global_attn_forward.5} parent=11 // pred_fallthru
        _
      // Predicated region
      $region29: #{global_attn_forward.5} parent=11 // pred_check
        %p245 = pneg %p171
      $region30: #{global_attn_forward.5} parent=11 // pred_check_branch
        %247 = sbr.rel (%p245) target = $region32
      $region31: #{global_attn_forward.5} parent=11 // pred_region
        _
      $region32: #{global_attn_forward.5} parent=11 // pred_fallthru
        _
      // Predicated region
      $region33: #{global_attn_forward.5} parent=11 // pred_check
        %p248 = pneg %p192
      $region34: #{global_attn_forward.5} parent=11 // pred_check_branch
        %250 = sbr.rel (%p248) target = $region36
      $region35: #{global_attn_forward.5} parent=11 // pred_region
        _
      $region36: #{global_attn_forward.5} parent=11 // pred_fallthru
        _
    $region12: #{global_attn_forward.5} parent=5 // pred_fallthru
      _
    %p251 = scmp.lt.s32.totalorder %s14, 4
    // Predicated region
    $region37: #{global_attn_forward.5} parent=5 // pred_check
      %p252 = pneg %p251
    $region38: #{global_attn_forward.5} parent=5 // pred_check_branch
      %254 = sbr.rel (%p252) target = $region40
    $region39: #{global_attn_forward.5} parent=5 // pred_region
      // Predicated region
      $region41: #{global_attn_forward.5} parent=39 // pred_check
        %p255 = pneg %p34
      $region42: #{global_attn_forward.5} parent=39 // pred_check_branch
        %257 = sbr.rel (%p255) target = $region44
      $region43: #{global_attn_forward.5} parent=39 // pred_region
        %s258 = smul.u32 16, %s14
        %p259 = scmp.lt.s32.totalorder %s258, 63
        %s260 = scalar_select %p259, %s258, 63
        %s261 = smul.addr %s260, 4
        %s262 = scalar_lea.vmem %s0, %s261
        %s263 = smul.u32 16, %s14
      $region44: #{global_attn_forward.5} parent=39 // pred_fallthru
        _
      // Predicated region
      $region45: #{global_attn_forward.5} parent=39 // pred_check
        %p264 = pneg %p60
      $region46: #{global_attn_forward.5} parent=39 // pred_check_branch
        %266 = sbr.rel (%p264) target = $region48
      $region47: #{global_attn_forward.5} parent=39 // pred_region
        %s267 = smul.u32 16, %s14
        %p268 = scmp.lt.s32.totalorder %s267, 63
        %s269 = scalar_select %p268, %s267, 63
        %s270 = smul.addr %s269, 4
        %s271 = scalar_lea.vmem %s1, %s270
        %s272 = smul.u32 16, %s14
      $region48: #{global_attn_forward.5} parent=39 // pred_fallthru
        _
    $region40: #{global_attn_forward.5} parent=5 // pred_fallthru
      _
    %p273 = scmp.le.s32.totalorder 1, %s14
    %p274 = scmp.lt.s32.totalorder %s14, 5
    %p275 = pnand %p273, %p274
    %p276 = pneg %p275
    // Predicated region
    $region49: #{global_attn_forward.5} parent=5 // pred_check
      _
    $region50: #{global_attn_forward.5} parent=5 // pred_check_branch
      %278 = sbr.rel (%p275) target = $region52
    $region51: #{global_attn_forward.5} parent=5 // pred_region
      %s279 = ssub.s32 %s14, 1
      %s280 = smul.u32 16, %s19
      %p281 = scmp.lt.s32.totalorder %s280, 63
      %s282 = scalar_select %p281, %s280, 63
      %s283 = smul.addr %s282, 4
      %s284 = scalar_lea.vmem %s0, %s283
      %p285 = pneg %p40
      %p286 = pneg %p37
      %s287 = smul.u32 16, %s19
      %p288 = scmp.lt.s32.totalorder %s287, 63
      %s289 = scalar_select %p288, %s287, 63
      %s290 = smul.addr %s289, 4
      %s291 = scalar_lea.vmem %s1, %s290
      %p292 = pneg %p66
      %p293 = pneg %p63
      %p294 = pneg %p87
      %p295 = pneg %p84
      %p296 = pneg %p108
      %p297 = pneg %p105
      %p298 = pneg %p129
      %p299 = pneg %p126
      %p300 = pneg %p150
      %p301 = pneg %p147
      %p302 = pneg %p171
      %p303 = pneg %p168
      %p304 = pneg %p192
      %p305 = pneg %p189
      %p306 = pneg %p218
      %p307 = pneg %p215
      %s308 = smul.u32 16, %s19
      %p309 = scmp.lt.s32.totalorder %s308, 63
      %s310 = scalar_select %p309, %s308, 63
      %s311 = smul.addr %s310, 8
      %s312 = scalar_lea.vmem %s8, %s311
      %s313 = smul.u32 16, %s19
      %p314 = scmp.lt.s32.totalorder %s313, 63
      %s315 = scalar_select %p314, %s313, 63
      %s316 = smul.addr %s315, 4
      %s317 = scalar_lea.vmem %s0, %s316
      %s318 = smul.u32 16, %s19
      %s319 = smul.u32 16, %s19
      %p320 = scmp.lt.s32.totalorder %s319, 63
      %s321 = scalar_select %p320, %s319, 63
      %s322 = smul.addr %s321, 4
      %s323 = scalar_lea.vmem %s1, %s322
      %s324 = smul.u32 16, %s19
      %s325 = smul.u32 16, %s19
      %p326 = scmp.lt.s32.totalorder %s325, 63
      %s327 = scalar_select %p326, %s325, 63
      %s328 = smul.addr %s327, 8
      %s329 = scalar_lea.vmem %s8, %s328
      %s330 = smul.u32 16, %s19
      %v332 = vld [vmem:[%s317] sm:$0xf]
      %v333 = vld [vmem:[%s317 + $0x4] sm:$0xf]
      %v334 = vld [vmem:[%s317 + $0x8] sm:$0xf]
      %v335 = vld [vmem:[%s317 + $0xc] sm:$0xf]
      %v336 = vld [vmem:[%s317 + $0x10] sm:$0xf]
      %v337 = vld [vmem:[%s317 + $0x14] sm:$0xf]
      %v338 = vld [vmem:[%s317 + $0x18] sm:$0xf]
      %v339 = vld [vmem:[%s317 + $0x1c] sm:$0xf]
      %v340 = vld [vmem:[%s317 + $0x20] sm:$0xf]
      %v341 = vld [vmem:[%s317 + $0x24] sm:$0xf]
      %v342 = vld [vmem:[%s317 + $0x28] sm:$0xf]
      %v343 = vld [vmem:[%s317 + $0x2c] sm:$0xf]
      %v344 = vld [vmem:[%s317 + $0x30] sm:$0xf]
      %v345 = vld [vmem:[%s317 + $0x34] sm:$0xf]
      %v346 = vld [vmem:[%s317 + $0x38] sm:$0xf]
      %v347 = vld [vmem:[%s317 + $0x3c] sm:$0xf]
      %v348 = vld [vmem:[%s323] sm:$0xf]
      %v349 = vld [vmem:[%s323 + $0x4] sm:$0xf]
      %v350 = vld [vmem:[%s323 + $0x8] sm:$0xf]
      %v351 = vld [vmem:[%s323 + $0xc] sm:$0xf]
      %v352 = vld [vmem:[%s323 + $0x10] sm:$0xf]
      %v353 = vld [vmem:[%s323 + $0x14] sm:$0xf]
      %v354 = vld [vmem:[%s323 + $0x18] sm:$0xf]
      %v355 = vld [vmem:[%s323 + $0x1c] sm:$0xf]
      %v356 = vld [vmem:[%s323 + $0x20] sm:$0xf]
      %v357 = vld [vmem:[%s323 + $0x24] sm:$0xf]
      %v358 = vld [vmem:[%s323 + $0x28] sm:$0xf]
      %v359 = vld [vmem:[%s323 + $0x2c] sm:$0xf]
      %v360 = vld [vmem:[%s323 + $0x30] sm:$0xf]
      %v361 = vld [vmem:[%s323 + $0x34] sm:$0xf]
      %v362 = vld [vmem:[%s323 + $0x38] sm:$0xf]
      %v363 = vld [vmem:[%s323 + $0x3c] sm:$0xf]
      %v364 = vld [vmem:[%s2] sm:$0xff]
      %v365 = vld [vmem:[%s2 + $0x8] sm:$0xff]
      %v366 = vld [vmem:[%s2 + $0x10] sm:$0xff]
      %v367 = vld [vmem:[%s2 + $0x18] sm:$0xff]
      %v368 = vld [vmem:[%s2 + $0x20] sm:$0xff]
      %v369 = vld [vmem:[%s2 + $0x28] sm:$0xff]
      %v370 = vld [vmem:[%s2 + $0x30] sm:$0xff]
      %v371 = vld [vmem:[%s2 + $0x38] sm:$0xff]
      %v372 = vld [vmem:[%s2 + $0x40] sm:$0xff]
      %v373 = vld [vmem:[%s2 + $0x48] sm:$0xff]
      %v374 = vld [vmem:[%s2 + $0x50] sm:$0xff]
      %v375 = vld [vmem:[%s2 + $0x58] sm:$0xff]
      %v376 = vld [vmem:[%s2 + $0x60] sm:$0xff]
      %v377 = vld [vmem:[%s2 + $0x68] sm:$0xff]
      %v378 = vld [vmem:[%s2 + $0x70] sm:$0xff]
      %v379 = vld [vmem:[%s2 + $0x78] sm:$0xff]
      %v396 = vunpack.c.l.b16 %v332
      %v397 = vunpack.c.l.b16 %v333
      %v398 = vunpack.c.l.b16 %v334
      %v399 = vunpack.c.l.b16 %v335
      %v400 = vunpack.c.l.b16 %v336
      %v401 = vunpack.c.l.b16 %v337
      %v402 = vunpack.c.l.b16 %v338
      %v403 = vunpack.c.l.b16 %v339
      %v404 = vunpack.c.l.b16 %v340
      %v405 = vunpack.c.l.b16 %v341
      %v406 = vunpack.c.l.b16 %v342
      %v407 = vunpack.c.l.b16 %v343
      %v408 = vunpack.c.l.b16 %v344
      %v409 = vunpack.c.l.b16 %v345
      %v410 = vunpack.c.l.b16 %v346
      %v411 = vunpack.c.l.b16 %v347
      %v412 = vpack.c.b16 %v397, %v396
      %v413 = vpack.c.b16 %v399, %v398
      %v414 = vpack.c.b16 %v401, %v400
      %v415 = vpack.c.b16 %v403, %v402
      %v416 = vpack.c.b16 %v405, %v404
      %v417 = vpack.c.b16 %v407, %v406
      %v418 = vpack.c.b16 %v409, %v408
      %v419 = vpack.c.b16 %v411, %v410
      %v444 = vunpack.c.l.b16 %v364
      %v445 = vunpack.c.h.b16 %v364
      %v446 = vunpack.c.l.b16 %v365
      %v447 = vunpack.c.h.b16 %v365
      %v448 = vunpack.c.l.b16 %v366
      %v449 = vunpack.c.h.b16 %v366
      %v450 = vunpack.c.l.b16 %v367
      %v451 = vunpack.c.h.b16 %v367
      %v452 = vunpack.c.l.b16 %v368
      %v453 = vunpack.c.h.b16 %v368
      %v454 = vunpack.c.l.b16 %v369
      %v455 = vunpack.c.h.b16 %v369
      %v456 = vunpack.c.l.b16 %v370
      %v457 = vunpack.c.h.b16 %v370
      %v458 = vunpack.c.l.b16 %v371
      %v459 = vunpack.c.h.b16 %v371
      %v460 = vunpack.c.l.b16 %v372
      %v461 = vunpack.c.h.b16 %v372
      %v462 = vunpack.c.l.b16 %v373
      %v463 = vunpack.c.h.b16 %v373
      %v464 = vunpack.c.l.b16 %v374
      %v465 = vunpack.c.h.b16 %v374
      %v466 = vunpack.c.l.b16 %v375
      %v467 = vunpack.c.h.b16 %v375
      %v468 = vunpack.c.l.b16 %v376
      %v469 = vunpack.c.h.b16 %v376
      %v470 = vunpack.c.l.b16 %v377
      %v471 = vunpack.c.h.b16 %v377
      %v472 = vunpack.c.l.b16 %v378
      %v473 = vunpack.c.h.b16 %v378
      %v474 = vunpack.c.l.b16 %v379
      %v475 = vunpack.c.h.b16 %v379
      %v476 = vpack.c.b16 %v446, %v444
      %v477 = vpack.c.b16 %v447, %v445
      %v478 = vpack.c.b16 %v450, %v448
      %v479 = vpack.c.b16 %v451, %v449
      %v480 = vpack.c.b16 %v454, %v452
      %v481 = vpack.c.b16 %v455, %v453
      %v482 = vpack.c.b16 %v458, %v456
      %v483 = vpack.c.b16 %v459, %v457
      %v484 = vpack.c.b16 %v462, %v460
      %v485 = vpack.c.b16 %v463, %v461
      %v486 = vpack.c.b16 %v466, %v464
      %v487 = vpack.c.b16 %v467, %v465
      %v488 = vpack.c.b16 %v470, %v468
      %v489 = vpack.c.b16 %v471, %v469
      %v490 = vpack.c.b16 %v474, %v472
      %v491 = vpack.c.b16 %v475, %v473
      %508 = vmatprep.subr.bf16.mxu0 %v491
      %509 = vmatpush1.bf16.msra.mxu0 %v490
      %510 = vmatprep.subr.bf16.mxu0 %v489
      %511 = vmatpush1.bf16.msra.mxu0 %v488
      %512 = vmatprep.subr.bf16.mxu0 %v487
      %513 = vmatpush1.bf16.msra.mxu0 %v486
      %514 = vmatprep.subr.bf16.mxu0 %v485
      %515 = vmatpush1.bf16.msra.mxu0 %v484
      %516 = vmatprep.subr.bf16.mxu0 %v483
      %517 = vmatpush1.bf16.msra.mxu0 %v482
      %518 = vmatprep.subr.bf16.mxu0 %v481
      %519 = vmatpush1.bf16.msra.mxu0 %v480
      %520 = vmatprep.subr.bf16.mxu0 %v479
      %521 = vmatpush1.bf16.msra.mxu0 %v478
      %522 = vmatprep.subr.bf16.mxu0 %v477
      %523 = vmatpush1.bf16.msra.mxu0 %v476
      %524 = vmatprep.subr.bf16.mxu0 0
      %525 = vmatpush2.bf16.msra.mxu0 0
      %526 = vmatprep.subr.bf16.mxu0 0
      %527 = vmatpush2.bf16.msra.mxu0 0
      %528 = vmatprep.subr.bf16.mxu0 0
      %529 = vmatpush2.bf16.msra.mxu0 0
      %530 = vmatprep.subr.bf16.mxu0 0
      %531 = vmatpush2.bf16.msra.mxu0 0
      %532 = vmatprep.subr.bf16.mxu0 0
      %533 = vmatpush2.bf16.msra.mxu0 0
      %534 = vmatprep.subr.bf16.mxu0 0
      %535 = vmatpush2.bf16.msra.mxu0 0
      %536 = vmatprep.subr.bf16.mxu0 0
      %537 = vmatpush2.bf16.msra.mxu0 0
      %538 = vmatprep.subr.bf16.mxu0 0
      %539 = vmatpush2.bf16.msra.mxu0 0
      %540 = vmatprep.mubr.bf16.mxu0 0
      %541 = vmatmul.mubr.bf16.gmra.mxu0 %v412
      %v542 = vpop.f32.mrf.mxu0
      %v543 = vadd.f32 0.0, %v542
      %v544 = vpop.f32.mrf.mxu0
      %v545 = vadd.f32 0.0, %v544
      %v546 = vpop.f32.mrf.mxu0
      %v547 = vadd.f32 0.0, %v546
      %v548 = vpop.f32.mrf.mxu0
      %v549 = vadd.f32 0.0, %v548
      %550 = vmatprep.mubr.bf16.mxu0 0
      %551 = vmatmul.mubr.bf16.gmra.mxu0 %v413
      %v552 = vpop.f32.mrf.mxu0
      %v553 = vadd.f32 0.0, %v552
      %v554 = vpop.f32.mrf.mxu0
      %v555 = vadd.f32 0.0, %v554
      %v556 = vpop.f32.mrf.mxu0
      %v557 = vadd.f32 0.0, %v556
      %v558 = vpop.f32.mrf.mxu0
      %v559 = vadd.f32 0.0, %v558
      %560 = vmatprep.mubr.bf16.mxu0 0
      %561 = vmatmul.mubr.bf16.gmra.mxu0 %v414
      %v562 = vpop.f32.mrf.mxu0
      %v563 = vadd.f32 0.0, %v562
      %v564 = vpop.f32.mrf.mxu0
      %v565 = vadd.f32 0.0, %v564
      %v566 = vpop.f32.mrf.mxu0
      %v567 = vadd.f32 0.0, %v566
      %v568 = vpop.f32.mrf.mxu0
      %v569 = vadd.f32 0.0, %v568
      %570 = vmatprep.mubr.bf16.mxu0 0
      %571 = vmatmul.mubr.bf16.gmra.mxu0 %v415
      %v572 = vpop.f32.mrf.mxu0
      %v573 = vadd.f32 0.0, %v572
      %v574 = vpop.f32.mrf.mxu0
      %v575 = vadd.f32 0.0, %v574
      %v576 = vpop.f32.mrf.mxu0
      %v577 = vadd.f32 0.0, %v576
      %v578 = vpop.f32.mrf.mxu0
      %v579 = vadd.f32 0.0, %v578
      %580 = vmatprep.mubr.bf16.mxu0 0
      %581 = vmatmul.mubr.bf16.gmra.mxu0 %v416
      %v582 = vpop.f32.mrf.mxu0
      %v583 = vadd.f32 0.0, %v582
      %v584 = vpop.f32.mrf.mxu0
      %v585 = vadd.f32 0.0, %v584
      %v586 = vpop.f32.mrf.mxu0
      %v587 = vadd.f32 0.0, %v586
      %v588 = vpop.f32.mrf.mxu0
      %v589 = vadd.f32 0.0, %v588
      %590 = vmatprep.mubr.bf16.mxu0 0
      %591 = vmatmul.mubr.bf16.gmra.mxu0 %v417
      %v592 = vpop.f32.mrf.mxu0
      %v593 = vadd.f32 0.0, %v592
      %v594 = vpop.f32.mrf.mxu0
      %v595 = vadd.f32 0.0, %v594
      %v596 = vpop.f32.mrf.mxu0
      %v597 = vadd.f32 0.0, %v596
      %v598 = vpop.f32.mrf.mxu0
      %v599 = vadd.f32 0.0, %v598
      %600 = vmatprep.mubr.bf16.mxu0 0
      %601 = vmatmul.mubr.bf16.gmra.mxu0 %v418
      %v602 = vpop.f32.mrf.mxu0
      %v603 = vadd.f32 0.0, %v602
      %v604 = vpop.f32.mrf.mxu0
      %v605 = vadd.f32 0.0, %v604
      %v606 = vpop.f32.mrf.mxu0
      %v607 = vadd.f32 0.0, %v606
      %v608 = vpop.f32.mrf.mxu0
      %v609 = vadd.f32 0.0, %v608
      %610 = vmatprep.mubr.bf16.mxu0 0
      %611 = vmatmul.mubr.bf16.gmra.mxu0 %v419
      %v612 = vpop.f32.mrf.mxu0
      %v613 = vadd.f32 0.0, %v612
      %v614 = vpop.f32.mrf.mxu0
      %v615 = vadd.f32 0.0, %v614
      %v616 = vpop.f32.mrf.mxu0
      %v617 = vadd.f32 0.0, %v616
      %v618 = vpop.f32.mrf.mxu0
      %v619 = vadd.f32 0.0, %v618
      %620 = vdwg.mxu0
      %v621 = vrcp.pop %v545
      %v622 = vrcp.pop %v549
      %v623 = vrcp.pop %v555
      %v624 = vrcp.pop %v559
      %v625 = vrcp.pop %v565
      %v626 = vrcp.pop %v569
      %v627 = vrcp.pop %v575
      %v628 = vrcp.pop %v579
      %v629 = vrcp.pop %v585
      %v630 = vrcp.pop %v589
      %v631 = vrcp.pop %v595
      %v632 = vrcp.pop %v599
      %v633 = vrcp.pop %v605
      %v634 = vrcp.pop %v609
      %v635 = vrcp.pop %v615
      %v636 = vrcp.pop %v619
      %v637 = vmul.f32 %v543, %v621
      %v638 = vmul.f32 %v547, %v622
      %v639 = vmul.f32 %v553, %v623
      %v640 = vmul.f32 %v557, %v624
      %v641 = vmul.f32 %v563, %v625
      %v642 = vmul.f32 %v567, %v626
      %v643 = vmul.f32 %v573, %v627
      %v644 = vmul.f32 %v577, %v628
      %v645 = vmul.f32 %v583, %v629
      %v646 = vmul.f32 %v587, %v630
      %v647 = vmul.f32 %v593, %v631
      %v648 = vmul.f32 %v597, %v632
      %v649 = vmul.f32 %v603, %v633
      %v650 = vmul.f32 %v607, %v634
      %v651 = vmul.f32 %v613, %v635
      %v652 = vmul.f32 %v617, %v636
      %653 = vadd.xlane.f32.xlu0 %v637
      %v654 = vpop.xlane.xlu0 %653
      %655 = vadd.xlane.f32.xlu0 %v638
      %v656 = vpop.xlane.xlu0 %655
      %657 = vadd.xlane.f32.xlu0 %v639
      %v658 = vpop.xlane.xlu0 %657
      %659 = vadd.xlane.f32.xlu0 %v640
      %v660 = vpop.xlane.xlu0 %659
      %661 = vadd.xlane.f32.xlu0 %v641
      %v662 = vpop.xlane.xlu0 %661
      %663 = vadd.xlane.f32.xlu0 %v642
      %v664 = vpop.xlane.xlu0 %663
      %665 = vadd.xlane.f32.xlu0 %v643
      %v666 = vpop.xlane.xlu0 %665
      %667 = vadd.xlane.f32.xlu0 %v644
      %v668 = vpop.xlane.xlu0 %667
      %669 = vadd.xlane.f32.xlu0 %v645
      %v670 = vpop.xlane.xlu0 %669
      %671 = vadd.xlane.f32.xlu0 %v646
      %v672 = vpop.xlane.xlu0 %671
      %673 = vadd.xlane.f32.xlu0 %v647
      %v674 = vpop.xlane.xlu0 %673
      %675 = vadd.xlane.f32.xlu0 %v648
      %v676 = vpop.xlane.xlu0 %675
      %677 = vadd.xlane.f32.xlu0 %v649
      %v678 = vpop.xlane.xlu0 %677
      %679 = vadd.xlane.f32.xlu0 %v650
      %v680 = vpop.xlane.xlu0 %679
      %681 = vadd.xlane.f32.xlu0 %v651
      %v682 = vpop.xlane.xlu0 %681
      %683 = vadd.xlane.f32.xlu0 %v652
      %v684 = vpop.xlane.xlu0 %683
      %v685 = vrcp.pop 128.0
      %v686 = vmul.f32 %v654, %v685
      %v687 = vmul.f32 %v656, %v685
      %v688 = vmul.f32 %v658, %v685
      %v689 = vmul.f32 %v660, %v685
      %v690 = vmul.f32 %v662, %v685
      %v691 = vmul.f32 %v664, %v685
      %v692 = vmul.f32 %v666, %v685
      %v693 = vmul.f32 %v668, %v685
      %v694 = vmul.f32 %v670, %v685
      %v695 = vmul.f32 %v672, %v685
      %v696 = vmul.f32 %v674, %v685
      %v697 = vmul.f32 %v676, %v685
      %v698 = vmul.f32 %v678, %v685
      %v699 = vmul.f32 %v680, %v685
      %v700 = vmul.f32 %v682, %v685
      %v701 = vmul.f32 %v684, %v685
      %v702 = vsub.f32 %v637, %v686
      %v703 = vsub.f32 %v638, %v687
      %v704 = vsub.f32 %v639, %v688
      %v705 = vsub.f32 %v640, %v689
      %v706 = vsub.f32 %v641, %v690
      %v707 = vsub.f32 %v642, %v691
      %v708 = vsub.f32 %v643, %v692
      %v709 = vsub.f32 %v644, %v693
      %v710 = vsub.f32 %v645, %v694
      %v711 = vsub.f32 %v646, %v695
      %v712 = vsub.f32 %v647, %v696
      %v713 = vsub.f32 %v648, %v697
      %v714 = vsub.f32 %v649, %v698
      %v715 = vsub.f32 %v650, %v699
      %v716 = vsub.f32 %v651, %v700
      %v717 = vsub.f32 %v652, %v701
      %v718 = vmul.f32 %v702, %v702
      %v719 = vmul.f32 %v703, %v703
      %v720 = vmul.f32 %v704, %v704
      %v721 = vmul.f32 %v705, %v705
      %v722 = vmul.f32 %v706, %v706
      %v723 = vmul.f32 %v707, %v707
      %v724 = vmul.f32 %v708, %v708
      %v725 = vmul.f32 %v709, %v709
      %v726 = vmul.f32 %v710, %v710
      %v727 = vmul.f32 %v711, %v711
      %v728 = vmul.f32 %v712, %v712
      %v729 = vmul.f32 %v713, %v713
      %v730 = vmul.f32 %v714, %v714
      %v731 = vmul.f32 %v715, %v715
      %v732 = vmul.f32 %v716, %v716
      %v733 = vmul.f32 %v717, %v717
      %734 = vadd.xlane.f32.xlu0 %v718
      %v735 = vpop.xlane.xlu0 %734
      %736 = vadd.xlane.f32.xlu0 %v719
      %v737 = vpop.xlane.xlu0 %736
      %738 = vadd.xlane.f32.xlu0 %v720
      %v739 = vpop.xlane.xlu0 %738
      %740 = vadd.xlane.f32.xlu0 %v721
      %v741 = vpop.xlane.xlu0 %740
      %742 = vadd.xlane.f32.xlu0 %v722
      %v743 = vpop.xlane.xlu0 %742
      %744 = vadd.xlane.f32.xlu0 %v723
      %v745 = vpop.xlane.xlu0 %744
      %746 = vadd.xlane.f32.xlu0 %v724
      %v747 = vpop.xlane.xlu0 %746
      %748 = vadd.xlane.f32.xlu0 %v725
      %v749 = vpop.xlane.xlu0 %748
      %750 = vadd.xlane.f32.xlu0 %v726
      %v751 = vpop.xlane.xlu0 %750
      %752 = vadd.xlane.f32.xlu0 %v727
      %v753 = vpop.xlane.xlu0 %752
      %754 = vadd.xlane.f32.xlu0 %v728
      %v755 = vpop.xlane.xlu0 %754
      %756 = vadd.xlane.f32.xlu0 %v729
      %v757 = vpop.xlane.xlu0 %756
      %758 = vadd.xlane.f32.xlu0 %v730
      %v759 = vpop.xlane.xlu0 %758
      %760 = vadd.xlane.f32.xlu0 %v731
      %v761 = vpop.xlane.xlu0 %760
      %762 = vadd.xlane.f32.xlu0 %v732
      %v763 = vpop.xlane.xlu0 %762
      %764 = vadd.xlane.f32.xlu0 %v733
      %v765 = vpop.xlane.xlu0 %764
      %v766 = vmul.f32 %v735, %v685
      %v767 = vmul.f32 %v737, %v685
      %v768 = vmul.f32 %v739, %v685
      %v769 = vmul.f32 %v741, %v685
      %v770 = vmul.f32 %v743, %v685
      %v771 = vmul.f32 %v745, %v685
      %v772 = vmul.f32 %v747, %v685
      %v773 = vmul.f32 %v749, %v685
      %v774 = vmul.f32 %v751, %v685
      %v775 = vmul.f32 %v753, %v685
      %v776 = vmul.f32 %v755, %v685
      %v777 = vmul.f32 %v757, %v685
      %v778 = vmul.f32 %v759, %v685
      %v779 = vmul.f32 %v761, %v685
      %v780 = vmul.f32 %v763, %v685
      %v781 = vmul.f32 %v765, %v685
      %v782 = vadd.f32 %v766, 1e-05
      %v783 = vadd.f32 %v767, 1e-05
      %v784 = vadd.f32 %v768, 1e-05
      %v785 = vadd.f32 %v769, 1e-05
      %v786 = vadd.f32 %v770, 1e-05
      %v787 = vadd.f32 %v771, 1e-05
      %v788 = vadd.f32 %v772, 1e-05
      %v789 = vadd.f32 %v773, 1e-05
      %v790 = vadd.f32 %v774, 1e-05
      %v791 = vadd.f32 %v775, 1e-05
      %v792 = vadd.f32 %v776, 1e-05
      %v793 = vadd.f32 %v777, 1e-05
      %v794 = vadd.f32 %v778, 1e-05
      %v795 = vadd.f32 %v779, 1e-05
      %v796 = vadd.f32 %v780, 1e-05
      %v797 = vadd.f32 %v781, 1e-05
      %v798 = vrsqrt.pop %v782
      %v799 = vrsqrt.pop %v783
      %v800 = vrsqrt.pop %v784
      %v801 = vrsqrt.pop %v785
      %v802 = vrsqrt.pop %v786
      %v803 = vrsqrt.pop %v787
      %v804 = vrsqrt.pop %v788
      %v805 = vrsqrt.pop %v789
      %v806 = vrsqrt.pop %v790
      %v807 = vrsqrt.pop %v791
      %v808 = vrsqrt.pop %v792
      %v809 = vrsqrt.pop %v793
      %v810 = vrsqrt.pop %v794
      %v811 = vrsqrt.pop %v795
      %v812 = vrsqrt.pop %v796
      %v813 = vrsqrt.pop %v797
      %v814 = vmul.f32 %v702, %v798
      %v815 = vmul.f32 %v703, %v799
      %v816 = vmul.f32 %v704, %v800
      %v817 = vmul.f32 %v705, %v801
      %v818 = vmul.f32 %v706, %v802
      %v819 = vmul.f32 %v707, %v803
      %v820 = vmul.f32 %v708, %v804
      %v821 = vmul.f32 %v709, %v805
      %v822 = vmul.f32 %v710, %v806
      %v823 = vmul.f32 %v711, %v807
      %v824 = vmul.f32 %v712, %v808
      %v825 = vmul.f32 %v713, %v809
      %v826 = vmul.f32 %v714, %v810
      %v827 = vmul.f32 %v715, %v811
      %v828 = vmul.f32 %v716, %v812
      %v829 = vmul.f32 %v717, %v813
      %v830 = vld [vmem:[%s3] sm:$0x1]
      %v832 = vlaneseq
      %v833 = vshrl.u32 %v832, 7
      %v834 = vsub.s32 0, %v833
      %v835 = vrot.slane %v830, %v834
      %v837 = vmul.f32 %v814, %v835
      %v838 = vmul.f32 %v815, %v835
      %v839 = vmul.f32 %v816, %v835
      %v840 = vmul.f32 %v817, %v835
      %v841 = vmul.f32 %v818, %v835
      %v842 = vmul.f32 %v819, %v835
      %v843 = vmul.f32 %v820, %v835
      %v844 = vmul.f32 %v821, %v835
      %v845 = vmul.f32 %v822, %v835
      %v846 = vmul.f32 %v823, %v835
      %v847 = vmul.f32 %v824, %v835
      %v848 = vmul.f32 %v825, %v835
      %v849 = vmul.f32 %v826, %v835
      %v850 = vmul.f32 %v827, %v835
      %v851 = vmul.f32 %v828, %v835
      %v852 = vmul.f32 %v829, %v835
      %v853 = vld [vmem:[%s4] sm:$0x1]
      %v855 = vlaneseq
      %v856 = vshrl.u32 %v855, 7
      %v857 = vsub.s32 0, %v856
      %v858 = vrot.slane %v853, %v857
      %v860 = vadd.f32 %v837, %v858
      %v861 = vadd.f32 %v838, %v858
      %v862 = vadd.f32 %v839, %v858
      %v863 = vadd.f32 %v840, %v858
      %v864 = vadd.f32 %v841, %v858
      %v865 = vadd.f32 %v842, %v858
      %v866 = vadd.f32 %v843, %v858
      %v867 = vadd.f32 %v844, %v858
      %v868 = vadd.f32 %v845, %v858
      %v869 = vadd.f32 %v846, %v858
      %v870 = vadd.f32 %v847, %v858
      %v871 = vadd.f32 %v848, %v858
      %v872 = vadd.f32 %v849, %v858
      %v873 = vadd.f32 %v850, %v858
      %v874 = vadd.f32 %v851, %v858
      %v875 = vadd.f32 %v852, %v858
      %v876 = vunpack.c.l.bf16 %v348
      %v877 = vunpack.c.l.bf16 %v349
      %v878 = vunpack.c.l.bf16 %v350
      %v879 = vunpack.c.l.bf16 %v351
      %v880 = vunpack.c.l.bf16 %v352
      %v881 = vunpack.c.l.bf16 %v353
      %v882 = vunpack.c.l.bf16 %v354
      %v883 = vunpack.c.l.bf16 %v355
      %v884 = vunpack.c.l.bf16 %v356
      %v885 = vunpack.c.l.bf16 %v357
      %v886 = vunpack.c.l.bf16 %v358
      %v887 = vunpack.c.l.bf16 %v359
      %v888 = vunpack.c.l.bf16 %v360
      %v889 = vunpack.c.l.bf16 %v361
      %v890 = vunpack.c.l.bf16 %v362
      %v891 = vunpack.c.l.bf16 %v363
      %v892 = vld [vmem:[%s5] sm:$0x1]
      %v894 = vlaneseq
      %v895 = vshrl.u32 %v894, 7
      %v896 = vsub.s32 0, %v895
      %v897 = vrot.slane %v892, %v896
      %v899 = vadd.f32 %v876, %v897
      %v900 = vadd.f32 %v877, %v897
      %v901 = vadd.f32 %v878, %v897
      %v902 = vadd.f32 %v879, %v897
      %v903 = vadd.f32 %v880, %v897
      %v904 = vadd.f32 %v881, %v897
      %v905 = vadd.f32 %v882, %v897
      %v906 = vadd.f32 %v883, %v897
      %v907 = vadd.f32 %v884, %v897
      %v908 = vadd.f32 %v885, %v897
      %v909 = vadd.f32 %v886, %v897
      %v910 = vadd.f32 %v887, %v897
      %v911 = vadd.f32 %v888, %v897
      %v912 = vadd.f32 %v889, %v897
      %v913 = vadd.f32 %v890, %v897
      %v914 = vadd.f32 %v891, %v897
      %v915 = vmul.f32 %v860, %v899
      %v916 = vmul.f32 %v861, %v900
      %v917 = vmul.f32 %v862, %v901
      %v918 = vmul.f32 %v863, %v902
      %v919 = vmul.f32 %v864, %v903
      %v920 = vmul.f32 %v865, %v904
      %v921 = vmul.f32 %v866, %v905
      %v922 = vmul.f32 %v867, %v906
      %v923 = vmul.f32 %v868, %v907
      %v924 = vmul.f32 %v869, %v908
      %v925 = vmul.f32 %v870, %v909
      %v926 = vmul.f32 %v871, %v910
      %v927 = vmul.f32 %v872, %v911
      %v928 = vmul.f32 %v873, %v912
      %v929 = vmul.f32 %v874, %v913
      %v930 = vmul.f32 %v875, %v914
      %v931 = vpack.c.bf16 %v916, %v915
      %v932 = vpack.c.bf16 %v918, %v917
      %v933 = vpack.c.bf16 %v920, %v919
      %v934 = vpack.c.bf16 %v922, %v921
      %v935 = vpack.c.bf16 %v924, %v923
      %v936 = vpack.c.bf16 %v926, %v925
      %v937 = vpack.c.bf16 %v928, %v927
      %v938 = vpack.c.bf16 %v930, %v929
      %v939 = vld [vmem:[%s6] sm:$0xf]
      %v940 = vld [vmem:[%s6 + $0x4] sm:$0xf]
      %v941 = vld [vmem:[%s6 + $0x8] sm:$0xf]
      %v942 = vld [vmem:[%s6 + $0xc] sm:$0xf]
      %v943 = vld [vmem:[%s6 + $0x10] sm:$0xf]
      %v944 = vld [vmem:[%s6 + $0x14] sm:$0xf]
      %v945 = vld [vmem:[%s6 + $0x18] sm:$0xf]
      %v946 = vld [vmem:[%s6 + $0x1c] sm:$0xf]
      %v947 = vld [vmem:[%s6 + $0x20] sm:$0xf]
      %v948 = vld [vmem:[%s6 + $0x24] sm:$0xf]
      %v949 = vld [vmem:[%s6 + $0x28] sm:$0xf]
      %v950 = vld [vmem:[%s6 + $0x2c] sm:$0xf]
      %v951 = vld [vmem:[%s6 + $0x30] sm:$0xf]
      %v952 = vld [vmem:[%s6 + $0x34] sm:$0xf]
      %v953 = vld [vmem:[%s6 + $0x38] sm:$0xf]
      %v954 = vld [vmem:[%s6 + $0x3c] sm:$0xf]
      %v955 = vld [vmem:[%s7] sm:$0x1]
      %v957 = vlaneseq
      %v958 = vshrl.u32 %v957, 7
      %v959 = vsub.s32 0, %v958
      %v960 = vrot.slane %v955, %v959
      %v978 = vunpack.c.l.b16 %v939
      %v979 = vunpack.c.l.b16 %v940
      %v980 = vunpack.c.l.b16 %v941
      %v981 = vunpack.c.l.b16 %v942
      %v982 = vunpack.c.l.b16 %v943
      %v983 = vunpack.c.l.b16 %v944
      %v984 = vunpack.c.l.b16 %v945
      %v985 = vunpack.c.l.b16 %v946
      %v986 = vunpack.c.l.b16 %v947
      %v987 = vunpack.c.l.b16 %v948
      %v988 = vunpack.c.l.b16 %v949
      %v989 = vunpack.c.l.b16 %v950
      %v990 = vunpack.c.l.b16 %v951
      %v991 = vunpack.c.l.b16 %v952
      %v992 = vunpack.c.l.b16 %v953
      %v993 = vunpack.c.l.b16 %v954
      %v994 = vpack.c.b16 %v979, %v978
      %v995 = vpack.c.b16 %v981, %v980
      %v996 = vpack.c.b16 %v983, %v982
      %v997 = vpack.c.b16 %v985, %v984
      %v998 = vpack.c.b16 %v987, %v986
      %v999 = vpack.c.b16 %v989, %v988
      %v1000 = vpack.c.b16 %v991, %v990
      %v1001 = vpack.c.b16 %v993, %v992
      %1010 = vmatprep.subr.bf16.mxu0 0
      %1011 = vmatpush1.bf16.msra.mxu0 %v1001
      %1012 = vmatprep.subr.bf16.mxu0 0
      %1013 = vmatpush1.bf16.msra.mxu0 %v1000
      %1014 = vmatprep.subr.bf16.mxu0 0
      %1015 = vmatpush1.bf16.msra.mxu0 %v999
      %1016 = vmatprep.subr.bf16.mxu0 0
      %1017 = vmatpush1.bf16.msra.mxu0 %v998
      %1018 = vmatprep.subr.bf16.mxu0 0
      %1019 = vmatpush1.bf16.msra.mxu0 %v997
      %1020 = vmatprep.subr.bf16.mxu0 0
      %1021 = vmatpush1.bf16.msra.mxu0 %v996
      %1022 = vmatprep.subr.bf16.mxu0 0
      %1023 = vmatpush1.bf16.msra.mxu0 %v995
      %1024 = vmatprep.subr.bf16.mxu0 0
      %1025 = vmatpush1.bf16.msra.mxu0 %v994
      %1026 = vmatprep.subr.bf16.mxu0 0
      %1027 = vmatpush2.bf16.msra.mxu0 0
      %1028 = vmatprep.subr.bf16.mxu0 0
      %1029 = vmatpush2.bf16.msra.mxu0 0
      %1030 = vmatprep.subr.bf16.mxu0 0
      %1031 = vmatpush2.bf16.msra.mxu0 0
      %1032 = vmatprep.subr.bf16.mxu0 0
      %1033 = vmatpush2.bf16.msra.mxu0 0
      %1034 = vmatprep.subr.bf16.mxu0 0
      %1035 = vmatpush2.bf16.msra.mxu0 0
      %1036 = vmatprep.subr.bf16.mxu0 0
      %1037 = vmatpush2.bf16.msra.mxu0 0
      %1038 = vmatprep.subr.bf16.mxu0 0
      %1039 = vmatpush2.bf16.msra.mxu0 0
      %1040 = vmatprep.subr.bf16.mxu0 0
      %1041 = vmatpush2.bf16.msra.mxu0 0
      %1042 = vmatprep.mubr.bf16.mxu0 0
      %1043 = vmatmul.mubr.bf16.gmra.mxu0 %v931
      %v1044 = vpop.f32.mrf.mxu0
      %v1045 = vadd.f32 %v960, %v1044
      %v1046 = vpop.f32.mrf.mxu0
      %v1047 = vpop.f32.mrf.mxu0
      %v1048 = vadd.f32 %v960, %v1047
      %v1049 = vpop.f32.mrf.mxu0
      %1050 = vmatprep.mubr.bf16.mxu0 0
      %1051 = vmatmul.mubr.bf16.gmra.mxu0 %v932
      %v1052 = vpop.f32.mrf.mxu0
      %v1053 = vadd.f32 %v960, %v1052
      %v1054 = vpop.f32.mrf.mxu0
      %v1055 = vpop.f32.mrf.mxu0
      %v1056 = vadd.f32 %v960, %v1055
      %v1057 = vpop.f32.mrf.mxu0
      %1058 = vmatprep.mubr.bf16.mxu0 0
      %1059 = vmatmul.mubr.bf16.gmra.mxu0 %v933
      %v1060 = vpop.f32.mrf.mxu0
      %v1061 = vadd.f32 %v960, %v1060
      %v1062 = vpop.f32.mrf.mxu0
      %v1063 = vpop.f32.mrf.mxu0
      %v1064 = vadd.f32 %v960, %v1063
      %v1065 = vpop.f32.mrf.mxu0
      %1066 = vmatprep.mubr.bf16.mxu0 0
      %1067 = vmatmul.mubr.bf16.gmra.mxu0 %v934
      %v1068 = vpop.f32.mrf.mxu0
      %v1069 = vadd.f32 %v960, %v1068
      %v1070 = vpop.f32.mrf.mxu0
      %v1071 = vpop.f32.mrf.mxu0
      %v1072 = vadd.f32 %v960, %v1071
      %v1073 = vpop.f32.mrf.mxu0
      %1074 = vmatprep.mubr.bf16.mxu0 0
      %1075 = vmatmul.mubr.bf16.gmra.mxu0 %v935
      %v1076 = vpop.f32.mrf.mxu0
      %v1077 = vadd.f32 %v960, %v1076
      %v1078 = vpop.f32.mrf.mxu0
      %v1079 = vpop.f32.mrf.mxu0
      %v1080 = vadd.f32 %v960, %v1079
      %v1081 = vpop.f32.mrf.mxu0
      %1082 = vmatprep.mubr.bf16.mxu0 0
      %1083 = vmatmul.mubr.bf16.gmra.mxu0 %v936
      %v1084 = vpop.f32.mrf.mxu0
      %v1085 = vadd.f32 %v960, %v1084
      %v1086 = vpop.f32.mrf.mxu0
      %v1087 = vpop.f32.mrf.mxu0
      %v1088 = vadd.f32 %v960, %v1087
      %v1089 = vpop.f32.mrf.mxu0
      %1090 = vmatprep.mubr.bf16.mxu0 0
      %1091 = vmatmul.mubr.bf16.gmra.mxu0 %v937
      %v1092 = vpop.f32.mrf.mxu0
      %v1093 = vadd.f32 %v960, %v1092
      %v1094 = vpop.f32.mrf.mxu0
      %v1095 = vpop.f32.mrf.mxu0
      %v1096 = vadd.f32 %v960, %v1095
      %v1097 = vpop.f32.mrf.mxu0
      %1098 = vmatprep.mubr.bf16.mxu0 0
      %1099 = vmatmul.mubr.bf16.gmra.mxu0 %v938
      %v1100 = vpop.f32.mrf.mxu0
      %v1101 = vadd.f32 %v960, %v1100
      %v1102 = vpop.f32.mrf.mxu0
      %v1103 = vpop.f32.mrf.mxu0
      %v1104 = vadd.f32 %v960, %v1103
      %v1105 = vpop.f32.mrf.mxu0
      %1106 = vdwg.mxu0
      %v1107 = vmax.f32 %v1045, 0.0
      %v1108 = vmax.f32 %v1048, 0.0
      %v1109 = vmax.f32 %v1053, 0.0
      %v1110 = vmax.f32 %v1056, 0.0
      %v1111 = vmax.f32 %v1061, 0.0
      %v1112 = vmax.f32 %v1064, 0.0
      %v1113 = vmax.f32 %v1069, 0.0
      %v1114 = vmax.f32 %v1072, 0.0
      %v1115 = vmax.f32 %v1077, 0.0
      %v1116 = vmax.f32 %v1080, 0.0
      %v1117 = vmax.f32 %v1085, 0.0
      %v1118 = vmax.f32 %v1088, 0.0
      %v1119 = vmax.f32 %v1093, 0.0
      %v1120 = vmax.f32 %v1096, 0.0
      %v1121 = vmax.f32 %v1101, 0.0
      %v1122 = vmax.f32 %v1104, 0.0
      %1123 = vst [vmem:[%s329] sm:$0xff] %v1107
      %1124 = vst [vmem:[%s329 + $0x8] sm:$0xff] %v1108
      %1125 = vst [vmem:[%s329 + $0x10] sm:$0xff] %v1109
      %1126 = vst [vmem:[%s329 + $0x18] sm:$0xff] %v1110
      %1127 = vst [vmem:[%s329 + $0x20] sm:$0xff] %v1111
      %1128 = vst [vmem:[%s329 + $0x28] sm:$0xff] %v1112
      %1129 = vst [vmem:[%s329 + $0x30] sm:$0xff] %v1113
      %1130 = vst [vmem:[%s329 + $0x38] sm:$0xff] %v1114
      %1131 = vst [vmem:[%s329 + $0x40] sm:$0xff] %v1115
      %1132 = vst [vmem:[%s329 + $0x48] sm:$0xff] %v1116
      %1133 = vst [vmem:[%s329 + $0x50] sm:$0xff] %v1117
      %1134 = vst [vmem:[%s329 + $0x58] sm:$0xff] %v1118
      %1135 = vst [vmem:[%s329 + $0x60] sm:$0xff] %v1119
      %1136 = vst [vmem:[%s329 + $0x68] sm:$0xff] %v1120
      %1137 = vst [vmem:[%s329 + $0x70] sm:$0xff] %v1121
      %1138 = vst [vmem:[%s329 + $0x78] sm:$0xff] %v1122
      %s1139 = smul.u32 16, %s19
      %p1140 = scmp.lt.s32.totalorder %s1139, 63
      %s1141 = scalar_select %p1140, %s1139, 63
      %s1142 = smul.addr %s1141, 8
      %s1143 = scalar_lea.vmem %s8, %s1142
      // Predicated region
      $region53: #{global_attn_forward.5} parent=51 // pred_check
        %p1144 = pneg %p215
      $region54: #{global_attn_forward.5} parent=51 // pred_check_branch
        %1146 = sbr.rel (%p1144) target = $region56
      $region55: #{global_attn_forward.5} parent=51 // pred_region
        %s1147 = smul.u32 16, %s19
      $region56: #{global_attn_forward.5} parent=51 // pred_fallthru
        _
    $region52: #{global_attn_forward.5} parent=5 // pred_fallthru
      _
    %p1148 = scmp.le.s32.totalorder 2, %s14
    // Predicated region
    $region57: #{global_attn_forward.5} parent=5 // pred_check
      %p1149 = pneg %p1148
    $region58: #{global_attn_forward.5} parent=5 // pred_check_branch
      %1151 = sbr.rel (%p1149) target = $region60
    $region59: #{global_attn_forward.5} parent=5 // pred_region
      %s1152 = ssub.s32 %s14, 2
      // Predicated region
      $region61: #{global_attn_forward.5} parent=59 // pred_check
        %p1153 = pneg %p221
      $region62: #{global_attn_forward.5} parent=59 // pred_check_branch
        %1155 = sbr.rel (%p1153) target = $region64
      $region63: #{global_attn_forward.5} parent=59 // pred_region
        %s1156 = smul.u32 16, %s20
        %p1157 = scmp.lt.s32.totalorder %s1156, 63
        %s1158 = scalar_select %p1157, %s1156, 63
        %s1159 = smul.addr %s1158, 8
        %s1160 = scalar_lea.vmem %s8, %s1159
      $region64: #{global_attn_forward.5} parent=59 // pred_fallthru
        _
    $region60: #{global_attn_forward.5} parent=5 // pred_fallthru
      _
  $region6: #{global_attn_forward.5} parent=0 // loop_footer
    %s18 = sadd.s32 1, %s14
  $region7: #{global_attn_forward.5} parent=0 // loop_footer_branch
    %13 = sbr.rel target = $region3
  $region8: #{global_attn_forward.5} parent=0 // loop_exit
    _

// kernel: global_attn_forward.3
$region0: #{global_attn_forward.3}
  #allocation0 [shape = 'u32[]', space=smem, size = 0x4, offset = 0x4, fixed_abs, tag = 'smem constant byte address 0x4 - core index']
  #allocation1 [shape = 'u32[144,128]{1,0:T(1,128)}', space=vmem, size = 0x12000, scoped, tag = 'internal scratch']
  #allocation2 [shape = 'f32[128,128]{1,0:T(8,128)}', space=vmem, size = 0x10000, scoped, tag = 'scratch operand']
  #allocation3 [shape = 'f32[1,128]{1,0:T(1,128)}', space=vmem, size = 0x200, scoped, tag = 'scratch operand']
  #allocation4 [shape = 's32[1]{0}', space=sflag, size = 0x4, scoped, tag = 'scoped memory for global_attn_forward.3']
  #allocation5 [shape = 's32[1]{0:T(128)S(6)}', space=smem, size = 0x200, scoped, tag = 'prefetched SMEM operand 0']
  %s0 = inlined_call_operand.<no memory space> [shape: s32[1], index: 0, kind: input, shape index: {}]
  %s1 = inlined_call_operand.vmem [shape: bf16[512,128], index: 1, kind: input, shape index: {}]
  %s2 = inlined_call_operand.vmem [shape: bf16[128,384], index: 2, kind: input, shape index: {}]
  %s3 = inlined_call_operand.vmem [shape: f32[1,384], index: 3, kind: input, shape index: {}]
  %s4 = inlined_call_operand.vmem [shape: bf16[512,128], index: 4, kind: output, shape index: {0}]
  %s5 = inlined_call_operand.vmem [shape: bf16[512,128], index: 5, kind: output, shape index: {1}]
  %s6 = inlined_call_operand.vmem [shape: f32[2,128,128], index: 6, kind: output, shape index: {2}]
  %s7 = inlined_call_operand.vmem [shape: f32[2,1,128], index: 7, kind: output, shape index: {3}]
  %8 = xla_tuple %s4, %s5, %s6, %s7
  %s9 = sld [smem:[#allocation0]]
  $region77: #{global_attn_forward.3} parent=0
    _
  %s11 = ssub.s32 1, %s9
  %s12 = scalar_select 0, %s11, %s9
  %13 = sst [smem:[#allocation5]] %s0
  loop: start=0, step=1, limit=6
  $region2: #{global_attn_forward.3} parent=0 // loop_pre_header
    _
  $region3: #{global_attn_forward.3} parent=0 // loop_header
    %s15 = sphi 0, %s19
    %p16 = scmp.ge.s32.totalorder %s15, 6
    %s22 = sphi 0, %s34
    %s23 = sphi 0, %s30
    %s24 = sphi 0, %s22
    %s25 = sphi 0, %s23
    %s26 = sphi 0, %s24
    %s27 = sphi 0, %s25
    %s41 = sphi 0, %s43
    %s44 = sphi 0, %s41
    %s45 = sphi 0, %s44
    %s61 = sphi 0, %s45
    %s65 = sphi 0, %s65
    %s67 = sphi 0, %s65
    %s68 = sphi 0, %s67
    %s82 = sphi 0, %s68
    %s86 = sphi 0, %s86
    %s88 = sphi 0, %s86
    %s89 = sphi 0, %s88
    %s103 = sphi 0, %s89
    %s113 = sphi 0, %s115
    %s116 = sphi 0, %s113
    %s117 = sphi 0, %s116
    %s133 = sphi 0, %s117
    %s143 = sphi 0, %s145
    %s146 = sphi 0, %s143
    %s147 = sphi 0, %s146
    %s163 = sphi 0, %s147
    %s169 = sphi 0, %s171
    %s172 = sphi 0, %s169
    %s173 = sphi 0, %s172
    %s189 = sphi 0, %s173
    %s195 = sphi 0, %s197
    %s198 = sphi 0, %s195
    %s199 = sphi 0, %s198
    %s215 = sphi 0, %s199
  $region4: #{global_attn_forward.3} parent=0 // loop_header_branch
    %18 = sbr.rel (%p16) target = $region8
  $region5: #{global_attn_forward.3} parent=0 // loop_body
    %s20 = ssub.s32 %s15, 1
    %s21 = ssub.s32 %s15, 2
    %s28 = sadd.s32 1, %s23
    %p29 = scmp.ge.s32.totalorder %s28, 2
    %s30 = scalar_select %p29, 0, %s28
    %s31 = sadd.s32 1, %s22
    %s32 = scalar_select %p29, %s31, %s22
    %p33 = scmp.ge.s32.totalorder %s32, 2
    %s34 = scalar_select %p33, 0, %s32
    %s35 = smul.u32 %s22, 2
    %s36 = sadd.s32 %s35, %s23
    %s37 = smul.u32 %s34, 2
    %s38 = sadd.s32 %s37, %s30
    %s39 = ssub.s32 %s36, %s38
    %p40 = scmp.eq.s32.totalorder %s39, 0
    %s42 = sadd.s32 %s41, 1
    %s43 = scalar_select %p40, %s41, %s42
    %p46 = pneg %p40
    %p47 = scmp.eq.s32.totalorder %s15, 3
    %p48 = por %p46, %p47
    %p49 = scmp.ne.s32.totalorder %s41, %s44
    %p50 = scmp.eq.s32.totalorder %s15, 0
    %p51 = por %p49, %p50
    %p52 = scmp.ne.s32.totalorder %s41, %s44
    %p53 = scmp.eq.s32.totalorder %s20, 3
    %p54 = por %p52, %p53
    %p55 = scmp.ne.s32.totalorder %s44, %s45
    %p56 = scmp.eq.s32.totalorder %s20, 0
    %p57 = por %p55, %p56
    %p58 = scmp.ne.s32.totalorder %s44, %s45
    %p59 = scmp.eq.s32.totalorder %s21, 3
    %p60 = por %p58, %p59
    %p62 = scmp.ne.s32.totalorder %s45, %s61
    %p63 = scmp.eq.s32.totalorder %s21, 0
    %p64 = por %p62, %p63
    %s66 = sadd.s32 %s65, 1
    %p69 = scmp.eq.s32.totalorder %s15, 3
    %p70 = scmp.ne.s32.totalorder %s65, %s67
    %p71 = scmp.eq.s32.totalorder %s15, 0
    %p72 = por %p70, %p71
    %p73 = scmp.ne.s32.totalorder %s65, %s67
    %p74 = scmp.eq.s32.totalorder %s20, 3
    %p75 = por %p73, %p74
    %p76 = scmp.ne.s32.totalorder %s67, %s68
    %p77 = scmp.eq.s32.totalorder %s20, 0
    %p78 = por %p76, %p77
    %p79 = scmp.ne.s32.totalorder %s67, %s68
    %p80 = scmp.eq.s32.totalorder %s21, 3
    %p81 = por %p79, %p80
    %p83 = scmp.ne.s32.totalorder %s68, %s82
    %p84 = scmp.eq.s32.totalorder %s21, 0
    %p85 = por %p83, %p84
    %s87 = sadd.s32 %s86, 1
    %p90 = scmp.eq.s32.totalorder %s15, 3
    %p91 = scmp.ne.s32.totalorder %s86, %s88
    %p92 = scmp.eq.s32.totalorder %s15, 0
    %p93 = por %p91, %p92
    %p94 = scmp.ne.s32.totalorder %s86, %s88
    %p95 = scmp.eq.s32.totalorder %s20, 3
    %p96 = por %p94, %p95
    %p97 = scmp.ne.s32.totalorder %s88, %s89
    %p98 = scmp.eq.s32.totalorder %s20, 0
    %p99 = por %p97, %p98
    %p100 = scmp.ne.s32.totalorder %s88, %s89
    %p101 = scmp.eq.s32.totalorder %s21, 3
    %p102 = por %p100, %p101
    %p104 = scmp.ne.s32.totalorder %s89, %s103
    %p105 = scmp.eq.s32.totalorder %s21, 0
    %p106 = por %p104, %p105
    %s107 = smul.u32 %s22, 2
    %s108 = sadd.s32 %s107, %s23
    %s109 = smul.u32 %s34, 2
    %s110 = sadd.s32 %s109, %s30
    %s111 = ssub.s32 %s108, %s110
    %p112 = scmp.eq.s32.totalorder %s111, 0
    %s114 = sadd.s32 %s113, 1
    %s115 = scalar_select %p112, %s113, %s114
    %p118 = pneg %p112
    %p119 = scmp.eq.s32.totalorder %s15, 3
    %p120 = por %p118, %p119
    %p121 = scmp.ne.s32.totalorder %s113, %s116
    %p122 = scmp.eq.s32.totalorder %s15, 0
    %p123 = por %p121, %p122
    %p124 = scmp.ne.s32.totalorder %s113, %s116
    %p125 = scmp.eq.s32.totalorder %s20, 3
    %p126 = por %p124, %p125
    %p127 = scmp.ne.s32.totalorder %s116, %s117
    %p128 = scmp.eq.s32.totalorder %s20, 0
    %p129 = por %p127, %p128
    %p130 = scmp.ne.s32.totalorder %s116, %s117
    %p131 = scmp.eq.s32.totalorder %s21, 3
    %p132 = por %p130, %p131
    %p134 = scmp.ne.s32.totalorder %s117, %s133
    %p135 = scmp.eq.s32.totalorder %s21, 0
    %p136 = por %p134, %p135
    %s137 = smul.u32 %s22, 2
    %s138 = sadd.s32 %s137, %s23
    %s139 = smul.u32 %s34, 2
    %s140 = sadd.s32 %s139, %s30
    %s141 = ssub.s32 %s138, %s140
    %p142 = scmp.eq.s32.totalorder %s141, 0
    %s144 = sadd.s32 %s143, 1
    %s145 = scalar_select %p142, %s143, %s144
    %p148 = pneg %p142
    %p149 = scmp.eq.s32.totalorder %s15, 3
    %p150 = por %p148, %p149
    %p151 = scmp.ne.s32.totalorder %s143, %s146
    %p152 = scmp.eq.s32.totalorder %s15, 0
    %p153 = por %p151, %p152
    %p154 = scmp.ne.s32.totalorder %s143, %s146
    %p155 = scmp.eq.s32.totalorder %s20, 3
    %p156 = por %p154, %p155
    %p157 = scmp.ne.s32.totalorder %s146, %s147
    %p158 = scmp.eq.s32.totalorder %s20, 0
    %p159 = por %p157, %p158
    %p160 = scmp.ne.s32.totalorder %s146, %s147
    %p161 = scmp.eq.s32.totalorder %s21, 3
    %p162 = por %p160, %p161
    %p164 = scmp.ne.s32.totalorder %s147, %s163
    %p165 = scmp.eq.s32.totalorder %s21, 0
    %p166 = por %p164, %p165
    %s167 = ssub.s32 %s22, %s34
    %p168 = scmp.eq.s32.totalorder %s167, 0
    %s170 = sadd.s32 %s169, 1
    %s171 = scalar_select %p168, %s169, %s170
    %p174 = pneg %p168
    %p175 = scmp.eq.s32.totalorder %s15, 3
    %p176 = por %p174, %p175
    %p177 = scmp.ne.s32.totalorder %s169, %s172
    %p178 = scmp.eq.s32.totalorder %s15, 0
    %p179 = por %p177, %p178
    %p180 = scmp.ne.s32.totalorder %s169, %s172
    %p181 = scmp.eq.s32.totalorder %s20, 3
    %p182 = por %p180, %p181
    %p183 = scmp.ne.s32.totalorder %s172, %s173
    %p184 = scmp.eq.s32.totalorder %s20, 0
    %p185 = por %p183, %p184
    %p186 = scmp.ne.s32.totalorder %s172, %s173
    %p187 = scmp.eq.s32.totalorder %s21, 3
    %p188 = por %p186, %p187
    %p190 = scmp.ne.s32.totalorder %s173, %s189
    %p191 = scmp.eq.s32.totalorder %s21, 0
    %p192 = por %p190, %p191
    %s193 = ssub.s32 %s22, %s34
    %p194 = scmp.eq.s32.totalorder %s193, 0
    %s196 = sadd.s32 %s195, 1
    %s197 = scalar_select %p194, %s195, %s196
    %p200 = pneg %p194
    %p201 = scmp.eq.s32.totalorder %s15, 3
    %p202 = por %p200, %p201
    %p203 = scmp.ne.s32.totalorder %s195, %s198
    %p204 = scmp.eq.s32.totalorder %s15, 0
    %p205 = por %p203, %p204
    %p206 = scmp.ne.s32.totalorder %s195, %s198
    %p207 = scmp.eq.s32.totalorder %s20, 3
    %p208 = por %p206, %p207
    %p209 = scmp.ne.s32.totalorder %s198, %s199
    %p210 = scmp.eq.s32.totalorder %s20, 0
    %p211 = por %p209, %p210
    %p212 = scmp.ne.s32.totalorder %s198, %s199
    %p213 = scmp.eq.s32.totalorder %s21, 3
    %p214 = por %p212, %p213
    %p216 = scmp.ne.s32.totalorder %s199, %s215
    %p217 = scmp.eq.s32.totalorder %s21, 0
    %p218 = por %p216, %p217
    %p219 = scmp.le.s32.totalorder 1, %s15
    %p220 = scmp.lt.s32.totalorder %s15, 5
    %p221 = pnand %p219, %p220
    %p222 = pneg %p221
    // Predicated region
    $region9: #{global_attn_forward.3} parent=5 // pred_check
      _
    $region10: #{global_attn_forward.3} parent=5 // pred_check_branch
      %224 = sbr.rel (%p221) target = $region12
    $region11: #{global_attn_forward.3} parent=5 // pred_region
      %s225 = ssub.s32 %s15, 1
      // Predicated region
      $region13: #{global_attn_forward.3} parent=11 // pred_check
        %p226 = pneg %p78
      $region14: #{global_attn_forward.3} parent=11 // pred_check_branch
        %228 = sbr.rel (%p226) target = $region16
      $region15: #{global_attn_forward.3} parent=11 // pred_region
        _
      $region16: #{global_attn_forward.3} parent=11 // pred_fallthru
        _
      // Predicated region
      $region17: #{global_attn_forward.3} parent=11 // pred_check
        %p229 = pneg %p99
      $region18: #{global_attn_forward.3} parent=11 // pred_check_branch
        %231 = sbr.rel (%p229) target = $region20
      $region19: #{global_attn_forward.3} parent=11 // pred_region
        _
      $region20: #{global_attn_forward.3} parent=11 // pred_fallthru
        _
    $region12: #{global_attn_forward.3} parent=5 // pred_fallthru
      _
    %p232 = scmp.lt.s32.totalorder %s15, 4
    // Predicated region
    $region21: #{global_attn_forward.3} parent=5 // pred_check
      %p233 = pneg %p232
    $region22: #{global_attn_forward.3} parent=5 // pred_check_branch
      %235 = sbr.rel (%p233) target = $region24
    $region23: #{global_attn_forward.3} parent=5 // pred_region
      // Predicated region
      $region25: #{global_attn_forward.3} parent=23 // pred_check
        %p236 = pneg %p51
      $region26: #{global_attn_forward.3} parent=23 // pred_check_branch
        %238 = sbr.rel (%p236) target = $region28
      $region27: #{global_attn_forward.3} parent=23 // pred_region
        %s239 = smul.u32 %s22, 2
        %s240 = sadd.s32 %s239, %s23
        %s241 = smul.u32 16, %s240
        %p242 = scmp.lt.s32.totalorder %s241, 63
        %s243 = scalar_select %p242, %s241, 63
        %s244 = smul.addr %s243, 4
        %s245 = scalar_lea.vmem %s1, %s244
        %s246 = smul.u32 %s22, 2
        %s247 = sadd.s32 %s246, %s23
        %s248 = smul.u32 16, %s247
      $region28: #{global_attn_forward.3} parent=23 // pred_fallthru
        _
    $region24: #{global_attn_forward.3} parent=5 // pred_fallthru
      _
    %p249 = scmp.le.s32.totalorder 1, %s15
    %p250 = scmp.lt.s32.totalorder %s15, 5
    %p251 = pnand %p249, %p250
    %p252 = pneg %p251
    // Predicated region
    $region29: #{global_attn_forward.3} parent=5 // pred_check
      _
    $region30: #{global_attn_forward.3} parent=5 // pred_check_branch
      %254 = sbr.rel (%p251) target = $region32
    $region31: #{global_attn_forward.3} parent=5 // pred_region
      %s255 = ssub.s32 %s15, 1
      %s256 = smul.u32 %s24, 2
      %s257 = sadd.s32 %s256, %s25
      %s258 = smul.u32 16, %s257
      %p259 = scmp.lt.s32.totalorder %s258, 63
      %s260 = scalar_select %p259, %s258, 63
      %s261 = smul.addr %s260, 4
      %s262 = scalar_lea.vmem %s1, %s261
      %p263 = pneg %p57
      %p264 = pneg %p54
      %p265 = pneg %p78
      %p266 = pneg %p75
      %p267 = pneg %p99
      %p268 = pneg %p96
      %p269 = pneg %p129
      %p270 = pneg %p126
      %s271 = smul.u32 %s24, 2
      %s272 = sadd.s32 %s271, %s25
      %s273 = smul.u32 16, %s272
      %p274 = scmp.lt.s32.totalorder %s273, 63
      %s275 = scalar_select %p274, %s273, 63
      %s276 = smul.addr %s275, 4
      %s277 = scalar_lea.vmem %s4, %s276
      %p278 = pneg %p159
      %p279 = pneg %p156
      %s280 = smul.u32 %s24, 2
      %s281 = sadd.s32 %s280, %s25
      %s282 = smul.u32 16, %s281
      %p283 = scmp.lt.s32.totalorder %s282, 63
      %s284 = scalar_select %p283, %s282, 63
      %s285 = smul.addr %s284, 4
      %s286 = scalar_lea.vmem %s5, %s285
      %p287 = pneg %p185
      %p288 = pneg %p182
      %p289 = scmp.lt.s32.totalorder %s24, 1
      %s290 = scalar_select %p289, %s24, 1
      %s291 = smul.addr %s290, 16
      %s292 = smul.addr %s291, 8
      %s293 = scalar_lea.vmem %s6, %s292
      %p294 = pneg %p211
      %p295 = pneg %p208
      %p296 = scmp.lt.s32.totalorder %s24, 1
      %s297 = scalar_select %p296, %s24, 1
      %s298 = scalar_lea.vmem %s7, %s297
      %s299 = smul.u32 %s24, 2
      %s300 = sadd.s32 %s299, %s25
      %s301 = smul.u32 16, %s300
      %p302 = scmp.lt.s32.totalorder %s301, 63
      %s303 = scalar_select %p302, %s301, 63
      %s304 = smul.addr %s303, 4
      %s305 = scalar_lea.vmem %s1, %s304
      %s306 = smul.u32 %s24, 2
      %s307 = sadd.s32 %s306, %s25
      %s308 = smul.u32 16, %s307
      %s309 = smul.u32 %s24, 2
      %s310 = sadd.s32 %s309, %s25
      %s311 = smul.u32 16, %s310
      %p312 = scmp.lt.s32.totalorder %s311, 63
      %s313 = scalar_select %p312, %s311, 63
      %s314 = smul.addr %s313, 4
      %s315 = scalar_lea.vmem %s4, %s314
      %s316 = smul.u32 %s24, 2
      %s317 = sadd.s32 %s316, %s25
      %s318 = smul.u32 16, %s317
      %s319 = smul.u32 %s24, 2
      %s320 = sadd.s32 %s319, %s25
      %s321 = smul.u32 16, %s320
      %p322 = scmp.lt.s32.totalorder %s321, 63
      %s323 = scalar_select %p322, %s321, 63
      %s324 = smul.addr %s323, 4
      %s325 = scalar_lea.vmem %s5, %s324
      %s326 = smul.u32 %s24, 2
      %s327 = sadd.s32 %s326, %s25
      %s328 = smul.u32 16, %s327
      %p329 = scmp.lt.s32.totalorder %s24, 1
      %s330 = scalar_select %p329, %s24, 1
      %s331 = smul.addr %s330, 16
      %s332 = smul.addr %s331, 8
      %s333 = scalar_lea.vmem %s6, %s332
      %p334 = scmp.lt.s32.totalorder %s24, 1
      %s335 = scalar_select %p334, %s24, 1
      %s336 = scalar_lea.vmem %s7, %s335
      %v338 = vld [vmem:[%s305] sm:$0xf]
      %v339 = vld [vmem:[%s305 + $0x4] sm:$0xf]
      %v340 = vld [vmem:[%s305 + $0x8] sm:$0xf]
      %v341 = vld [vmem:[%s305 + $0xc] sm:$0xf]
      %v342 = vld [vmem:[%s305 + $0x10] sm:$0xf]
      %v343 = vld [vmem:[%s305 + $0x14] sm:$0xf]
      %v344 = vld [vmem:[%s305 + $0x18] sm:$0xf]
      %v345 = vld [vmem:[%s305 + $0x1c] sm:$0xf]
      %v346 = vld [vmem:[%s305 + $0x20] sm:$0xf]
      %v347 = vld [vmem:[%s305 + $0x24] sm:$0xf]
      %v348 = vld [vmem:[%s305 + $0x28] sm:$0xf]
      %v349 = vld [vmem:[%s305 + $0x2c] sm:$0xf]
      %v350 = vld [vmem:[%s305 + $0x30] sm:$0xf]
      %v351 = vld [vmem:[%s305 + $0x34] sm:$0xf]
      %v352 = vld [vmem:[%s305 + $0x38] sm:$0xf]
      %v353 = vld [vmem:[%s305 + $0x3c] sm:$0xf]
      %p354 = scmp.eq.s32.totalorder %s25, 0
      // Predicated region
      $region33: #{global_attn_forward.3} parent=31 // pred_check
        %p355 = pneg %p354
      $region34: #{global_attn_forward.3} parent=31 // pred_check_branch
        %357 = sbr.rel (%p355) target = $region36
      $region35: #{global_attn_forward.3} parent=31 // pred_region
        %358 = vst [vmem:[#allocation2] sm:$0xff] 0.0
        %359 = vst [vmem:[#allocation2 + $0x8] sm:$0xff] 0.0
        %360 = vst [vmem:[#allocation2 + $0x10] sm:$0xff] 0.0
        %361 = vst [vmem:[#allocation2 + $0x18] sm:$0xff] 0.0
        %362 = vst [vmem:[#allocation2 + $0x20] sm:$0xff] 0.0
        %363 = vst [vmem:[#allocation2 + $0x28] sm:$0xff] 0.0
        %364 = vst [vmem:[#allocation2 + $0x30] sm:$0xff] 0.0
        %365 = vst [vmem:[#allocation2 + $0x38] sm:$0xff] 0.0
        %366 = vst [vmem:[#allocation2 + $0x40] sm:$0xff] 0.0
        %367 = vst [vmem:[#allocation2 + $0x48] sm:$0xff] 0.0
        %368 = vst [vmem:[#allocation2 + $0x50] sm:$0xff] 0.0
        %369 = vst [vmem:[#allocation2 + $0x58] sm:$0xff] 0.0
        %370 = vst [vmem:[#allocation2 + $0x60] sm:$0xff] 0.0
        %371 = vst [vmem:[#allocation2 + $0x68] sm:$0xff] 0.0
        %372 = vst [vmem:[#allocation2 + $0x70] sm:$0xff] 0.0
        %373 = vst [vmem:[#allocation2 + $0x78] sm:$0xff] 0.0
        %374 = vst [vmem:[#allocation3] sm:$0x1] 0.0
      $region36: #{global_attn_forward.3} parent=31 // pred_fallthru
        _
      %v375 = vld [vmem:[%s2] sm:$0xff]
      %v376 = vld [vmem:[%s2 + $0x8] sm:$0xf]
      %v377 = vld [vmem:[%s2 + $0xc] sm:$0xff]
      %v378 = vld [vmem:[%s2 + $0x14] sm:$0xf]
      %v379 = vld [vmem:[%s2 + $0x18] sm:$0xff]
      %v380 = vld [vmem:[%s2 + $0x20] sm:$0xf]
      %v381 = vld [vmem:[%s2 + $0x24] sm:$0xff]
      %v382 = vld [vmem:[%s2 + $0x2c] sm:$0xf]
      %v383 = vld [vmem:[%s2 + $0x30] sm:$0xff]
      %v384 = vld [vmem:[%s2 + $0x38] sm:$0xf]
      %v385 = vld [vmem:[%s2 + $0x3c] sm:$0xff]
      %v386 = vld [vmem:[%s2 + $0x44] sm:$0xf]
      %v387 = vld [vmem:[%s2 + $0x48] sm:$0xff]
      %v388 = vld [vmem:[%s2 + $0x50] sm:$0xf]
      %v389 = vld [vmem:[%s2 + $0x54] sm:$0xff]
      %v390 = vld [vmem:[%s2 + $0x5c] sm:$0xf]
      %v391 = vld [vmem:[%s2 + $0x60] sm:$0xff]
      %v392 = vld [vmem:[%s2 + $0x68] sm:$0xf]
      %v393 = vld [vmem:[%s2 + $0x6c] sm:$0xff]
      %v394 = vld [vmem:[%s2 + $0x74] sm:$0xf]
      %v395 = vld [vmem:[%s2 + $0x78] sm:$0xff]
      %v396 = vld [vmem:[%s2 + $0x80] sm:$0xf]
      %v397 = vld [vmem:[%s2 + $0x84] sm:$0xff]
      %v398 = vld [vmem:[%s2 + $0x8c] sm:$0xf]
      %v399 = vld [vmem:[%s2 + $0x90] sm:$0xff]
      %v400 = vld [vmem:[%s2 + $0x98] sm:$0xf]
      %v401 = vld [vmem:[%s2 + $0x9c] sm:$0xff]
      %v402 = vld [vmem:[%s2 + $0xa4] sm:$0xf]
      %v403 = vld [vmem:[%s2 + $0xa8] sm:$0xff]
      %v404 = vld [vmem:[%s2 + $0xb0] sm:$0xf]
      %v405 = vld [vmem:[%s2 + $0xb4] sm:$0xff]
      %v406 = vld [vmem:[%s2 + $0xbc] sm:$0xf]
      %v407 = vld [vmem:[%s3] sm:$0x7]
      %v409 = vlaneseq
      %v410 = vshrl.u32 %v409, 7
      %v411 = vsub.s32 0, %v410
      %v412 = vrot.slane %v407, %v411
      %v413 = vlaneseq
      %v414 = vshrl.u32 %v413, 7
      %v415 = vsub.s32 1, %v414
      %v416 = vrot.slane %v407, %v415
      %v417 = vlaneseq
      %v418 = vshrl.u32 %v417, 7
      %v419 = vsub.s32 2, %v418
      %v420 = vrot.slane %v407, %v419
      %v440 = vunpack.c.l.b16 %v338
      %v441 = vunpack.c.l.b16 %v339
      %v442 = vunpack.c.l.b16 %v340
      %v443 = vunpack.c.l.b16 %v341
      %v444 = vunpack.c.l.b16 %v342
      %v445 = vunpack.c.l.b16 %v343
      %v446 = vunpack.c.l.b16 %v344
      %v447 = vunpack.c.l.b16 %v345
      %v448 = vunpack.c.l.b16 %v346
      %v449 = vunpack.c.l.b16 %v347
      %v450 = vunpack.c.l.b16 %v348
      %v451 = vunpack.c.l.b16 %v349
      %v452 = vunpack.c.l.b16 %v350
      %v453 = vunpack.c.l.b16 %v351
      %v454 = vunpack.c.l.b16 %v352
      %v455 = vunpack.c.l.b16 %v353
      %v456 = vpack.c.b16 %v441, %v440
      %v457 = vpack.c.b16 %v443, %v442
      %v458 = vpack.c.b16 %v445, %v444
      %v459 = vpack.c.b16 %v447, %v446
      %v460 = vpack.c.b16 %v449, %v448
      %v461 = vpack.c.b16 %v451, %v450
      %v462 = vpack.c.b16 %v453, %v452
      %v463 = vpack.c.b16 %v455, %v454
      %v504 = vunpack.c.l.b16 %v375
      %v505 = vunpack.c.h.b16 %v375
      %v506 = vunpack.c.l.b16 %v376
      %v507 = vunpack.c.l.b16 %v377
      %v508 = vunpack.c.h.b16 %v377
      %v509 = vunpack.c.l.b16 %v378
      %v510 = vunpack.c.l.b16 %v379
      %v511 = vunpack.c.h.b16 %v379
      %v512 = vunpack.c.l.b16 %v380
      %v513 = vunpack.c.l.b16 %v381
      %v514 = vunpack.c.h.b16 %v381
      %v515 = vunpack.c.l.b16 %v382
      %v516 = vunpack.c.l.b16 %v383
      %v517 = vunpack.c.h.b16 %v383
      %v518 = vunpack.c.l.b16 %v384
      %v519 = vunpack.c.l.b16 %v385
      %v520 = vunpack.c.h.b16 %v385
      %v521 = vunpack.c.l.b16 %v386
      %v522 = vunpack.c.l.b16 %v387
      %v523 = vunpack.c.h.b16 %v387
      %v524 = vunpack.c.l.b16 %v388
      %v525 = vunpack.c.l.b16 %v389
      %v526 = vunpack.c.h.b16 %v389
      %v527 = vunpack.c.l.b16 %v390
      %v528 = vunpack.c.l.b16 %v391
      %v529 = vunpack.c.h.b16 %v391
      %v530 = vunpack.c.l.b16 %v392
      %v531 = vunpack.c.l.b16 %v393
      %v532 = vunpack.c.h.b16 %v393
      %v533 = vunpack.c.l.b16 %v394
      %v534 = vunpack.c.l.b16 %v395
      %v535 = vunpack.c.h.b16 %v395
      %v536 = vunpack.c.l.b16 %v396
      %v537 = vunpack.c.l.b16 %v397
      %v538 = vunpack.c.h.b16 %v397
      %v539 = vunpack.c.l.b16 %v398
      %v540 = vunpack.c.l.b16 %v399
      %v541 = vunpack.c.h.b16 %v399
      %v542 = vunpack.c.l.b16 %v400
      %v543 = vunpack.c.l.b16 %v401
      %v544 = vunpack.c.h.b16 %v401
      %v545 = vunpack.c.l.b16 %v402
      %v546 = vunpack.c.l.b16 %v403
      %v547 = vunpack.c.h.b16 %v403
      %v548 = vunpack.c.l.b16 %v404
      %v549 = vunpack.c.l.b16 %v405
      %v550 = vunpack.c.h.b16 %v405
      %v551 = vunpack.c.l.b16 %v406
      %v552 = vpack.c.b16 %v507, %v504
      %v553 = vpack.c.b16 %v508, %v505
      %v554 = vpack.c.b16 %v509, %v506
      %v555 = vpack.c.b16 %v513, %v510
      %v556 = vpack.c.b16 %v514, %v511
      %v557 = vpack.c.b16 %v515, %v512
      %v558 = vpack.c.b16 %v519, %v516
      %v559 = vpack.c.b16 %v520, %v517
      %v560 = vpack.c.b16 %v521, %v518
      %v561 = vpack.c.b16 %v525, %v522
      %v562 = vpack.c.b16 %v526, %v523
      %v563 = vpack.c.b16 %v527, %v524
      %v564 = vpack.c.b16 %v531, %v528
      %v565 = vpack.c.b16 %v532, %v529
      %v566 = vpack.c.b16 %v533, %v530
      %v567 = vpack.c.b16 %v537, %v534
      %v568 = vpack.c.b16 %v538, %v535
      %v569 = vpack.c.b16 %v539, %v536
      %v570 = vpack.c.b16 %v543, %v540
      %v571 = vpack.c.b16 %v544, %v541
      %v572 = vpack.c.b16 %v545, %v542
      %v573 = vpack.c.b16 %v549, %v546
      %v574 = vpack.c.b16 %v550, %v547
      %v575 = vpack.c.b16 %v551, %v548
      %600 = vmatprep.subr.bf16.mxu0 %v574
      %601 = vmatpush1.bf16.msra.mxu0 %v573
      %602 = vmatprep.subr.bf16.mxu0 %v571
      %603 = vmatpush1.bf16.msra.mxu0 %v570
      %604 = vmatprep.subr.bf16.mxu0 %v568
      %605 = vmatpush1.bf16.msra.mxu0 %v567
      %606 = vmatprep.subr.bf16.mxu0 %v565
      %607 = vmatpush1.bf16.msra.mxu0 %v564
      %608 = vmatprep.subr.bf16.mxu0 %v562
      %609 = vmatpush1.bf16.msra.mxu0 %v561
      %610 = vmatprep.subr.bf16.mxu0 %v559
      %611 = vmatpush1.bf16.msra.mxu0 %v558
      %612 = vmatprep.subr.bf16.mxu0 %v556
      %613 = vmatpush1.bf16.msra.mxu0 %v555
      %614 = vmatprep.subr.bf16.mxu0 %v553
      %615 = vmatpush1.bf16.msra.mxu0 %v552
      %616 = vmatprep.subr.bf16.mxu0 0
      %617 = vmatpush2.bf16.msra.mxu0 0
      %618 = vmatprep.subr.bf16.mxu0 0
      %619 = vmatpush2.bf16.msra.mxu0 0
      %620 = vmatprep.subr.bf16.mxu0 0
      %621 = vmatpush2.bf16.msra.mxu0 0
      %622 = vmatprep.subr.bf16.mxu0 0
      %623 = vmatpush2.bf16.msra.mxu0 0
      %624 = vmatprep.subr.bf16.mxu0 0
      %625 = vmatpush2.bf16.msra.mxu0 0
      %626 = vmatprep.subr.bf16.mxu0 0
      %627 = vmatpush2.bf16.msra.mxu0 0
      %628 = vmatprep.subr.bf16.mxu0 0
      %629 = vmatpush2.bf16.msra.mxu0 0
      %630 = vmatprep.subr.bf16.mxu0 0
      %631 = vmatpush2.bf16.msra.mxu0 0
      %632 = vmatprep.mubr.bf16.mxu0 0
      %633 = vmatmul.mubr.bf16.gmra.mxu0 %v456
      %v634 = vpop.f32.mrf.mxu0
      %v635 = vadd.f32 %v412, %v634
      %v636 = vpop.f32.mrf.mxu0
      %v637 = vadd.f32 %v416, %v636
      %v638 = vpop.f32.mrf.mxu0
      %v639 = vadd.f32 %v412, %v638
      %v640 = vpop.f32.mrf.mxu0
      %v641 = vadd.f32 %v416, %v640
      %642 = vmatprep.mubr.bf16.mxu0 0
      %643 = vmatmul.mubr.bf16.gmra.mxu0 %v457
      %v644 = vpop.f32.mrf.mxu0
      %v645 = vadd.f32 %v412, %v644
      %v646 = vpop.f32.mrf.mxu0
      %v647 = vadd.f32 %v416, %v646
      %v648 = vpop.f32.mrf.mxu0
      %v649 = vadd.f32 %v412, %v648
      %v650 = vpop.f32.mrf.mxu0
      %v651 = vadd.f32 %v416, %v650
      %652 = vmatprep.mubr.bf16.mxu0 0
      %653 = vmatmul.mubr.bf16.gmra.mxu0 %v458
      %v654 = vpop.f32.mrf.mxu0
      %v655 = vadd.f32 %v412, %v654
      %v656 = vpop.f32.mrf.mxu0
      %v657 = vadd.f32 %v416, %v656
      %v658 = vpop.f32.mrf.mxu0
      %v659 = vadd.f32 %v412, %v658
      %v660 = vpop.f32.mrf.mxu0
      %v661 = vadd.f32 %v416, %v660
      %662 = vmatprep.mubr.bf16.mxu0 0
      %663 = vmatmul.mubr.bf16.gmra.mxu0 %v459
      %v664 = vpop.f32.mrf.mxu0
      %v665 = vadd.f32 %v412, %v664
      %v666 = vpop.f32.mrf.mxu0
      %v667 = vadd.f32 %v416, %v666
      %v668 = vpop.f32.mrf.mxu0
      %v669 = vadd.f32 %v412, %v668
      %v670 = vpop.f32.mrf.mxu0
      %v671 = vadd.f32 %v416, %v670
      %672 = vmatprep.mubr.bf16.mxu0 0
      %673 = vmatmul.mubr.bf16.gmra.mxu0 %v460
      %v674 = vpop.f32.mrf.mxu0
      %v675 = vadd.f32 %v412, %v674
      %v676 = vpop.f32.mrf.mxu0
      %v677 = vadd.f32 %v416, %v676
      %v678 = vpop.f32.mrf.mxu0
      %v679 = vadd.f32 %v412, %v678
      %v680 = vpop.f32.mrf.mxu0
      %v681 = vadd.f32 %v416, %v680
      %682 = vmatprep.mubr.bf16.mxu0 0
      %683 = vmatmul.mubr.bf16.gmra.mxu0 %v461
      %v684 = vpop.f32.mrf.mxu0
      %v685 = vadd.f32 %v412, %v684
      %v686 = vpop.f32.mrf.mxu0
      %v687 = vadd.f32 %v416, %v686
      %v688 = vpop.f32.mrf.mxu0
      %v689 = vadd.f32 %v412, %v688
      %v690 = vpop.f32.mrf.mxu0
      %v691 = vadd.f32 %v416, %v690
      %692 = vmatprep.mubr.bf16.mxu0 0
      %693 = vmatmul.mubr.bf16.gmra.mxu0 %v462
      %v694 = vpop.f32.mrf.mxu0
      %v695 = vadd.f32 %v412, %v694
      %v696 = vpop.f32.mrf.mxu0
      %v697 = vadd.f32 %v416, %v696
      %v698 = vpop.f32.mrf.mxu0
      %v699 = vadd.f32 %v412, %v698
      %v700 = vpop.f32.mrf.mxu0
      %v701 = vadd.f32 %v416, %v700
      %702 = vmatprep.mubr.bf16.mxu0 0
      %703 = vmatmul.mubr.bf16.gmra.mxu0 %v463
      %v704 = vpop.f32.mrf.mxu0
      %v705 = vadd.f32 %v412, %v704
      %v706 = vpop.f32.mrf.mxu0
      %v707 = vadd.f32 %v416, %v706
      %v708 = vpop.f32.mrf.mxu0
      %v709 = vadd.f32 %v412, %v708
      %v710 = vpop.f32.mrf.mxu0
      %v711 = vadd.f32 %v416, %v710
      %712 = vdwg.mxu0
      %713 = vmatprep.subr.bf16.mxu0 0
      %714 = vmatpush1.bf16.msra.mxu0 %v575
      %715 = vmatprep.subr.bf16.mxu0 0
      %716 = vmatpush1.bf16.msra.mxu0 %v572
      %717 = vmatprep.subr.bf16.mxu0 0
      %718 = vmatpush1.bf16.msra.mxu0 %v569
      %719 = vmatprep.subr.bf16.mxu0 0
      %720 = vmatpush1.bf16.msra.mxu0 %v566
      %721 = vmatprep.subr.bf16.mxu0 0
      %722 = vmatpush1.bf16.msra.mxu0 %v563
      %723 = vmatprep.subr.bf16.mxu0 0
      %724 = vmatpush1.bf16.msra.mxu0 %v560
      %725 = vmatprep.subr.bf16.mxu0 0
      %726 = vmatpush1.bf16.msra.mxu0 %v557
      %727 = vmatprep.subr.bf16.mxu0 0
      %728 = vmatpush1.bf16.msra.mxu0 %v554
      %729 = vmatprep.subr.bf16.mxu0 0
      %730 = vmatpush2.bf16.msra.mxu0 0
      %731 = vmatprep.subr.bf16.mxu0 0
      %732 = vmatpush2.bf16.msra.mxu0 0
      %733 = vmatprep.subr.bf16.mxu0 0
      %734 = vmatpush2.bf16.msra.mxu0 0
      %735 = vmatprep.subr.bf16.mxu0 0
      %736 = vmatpush2.bf16.msra.mxu0 0
      %737 = vmatprep.subr.bf16.mxu0 0
      %738 = vmatpush2.bf16.msra.mxu0 0
      %739 = vmatprep.subr.bf16.mxu0 0
      %740 = vmatpush2.bf16.msra.mxu0 0
      %741 = vmatprep.subr.bf16.mxu0 0
      %742 = vmatpush2.bf16.msra.mxu0 0
      %743 = vmatprep.subr.bf16.mxu0 0
      %744 = vmatpush2.bf16.msra.mxu0 0
      %745 = vmatprep.mubr.bf16.mxu0 0
      %746 = vmatmul.mubr.bf16.gmra.mxu0 %v456
      %v747 = vpop.f32.mrf.mxu0
      %v748 = vadd.f32 %v420, %v747
      %v749 = vpop.f32.mrf.mxu0
      %v750 = vpop.f32.mrf.mxu0
      %v751 = vadd.f32 %v420, %v750
      %v752 = vpop.f32.mrf.mxu0
      %753 = vmatprep.mubr.bf16.mxu0 0
      %754 = vmatmul.mubr.bf16.gmra.mxu0 %v457
      %v755 = vpop.f32.mrf.mxu0
      %v756 = vadd.f32 %v420, %v755
      %v757 = vpop.f32.mrf.mxu0
      %v758 = vpop.f32.mrf.mxu0
      %v759 = vadd.f32 %v420, %v758
      %v760 = vpop.f32.mrf.mxu0
      %761 = vmatprep.mubr.bf16.mxu0 0
      %762 = vmatmul.mubr.bf16.gmra.mxu0 %v458
      %v763 = vpop.f32.mrf.mxu0
      %v764 = vadd.f32 %v420, %v763
      %v765 = vpop.f32.mrf.mxu0
      %v766 = vpop.f32.mrf.mxu0
      %v767 = vadd.f32 %v420, %v766
      %v768 = vpop.f32.mrf.mxu0
      %769 = vmatprep.mubr.bf16.mxu0 0
      %770 = vmatmul.mubr.bf16.gmra.mxu0 %v459
      %v771 = vpop.f32.mrf.mxu0
      %v772 = vadd.f32 %v420, %v771
      %v773 = vpop.f32.mrf.mxu0
      %v774 = vpop.f32.mrf.mxu0
      %v775 = vadd.f32 %v420, %v774
      %v776 = vpop.f32.mrf.mxu0
      %777 = vmatprep.mubr.bf16.mxu0 0
      %778 = vmatmul.mubr.bf16.gmra.mxu0 %v460
      %v779 = vpop.f32.mrf.mxu0
      %v780 = vadd.f32 %v420, %v779
      %v781 = vpop.f32.mrf.mxu0
      %v782 = vpop.f32.mrf.mxu0
      %v783 = vadd.f32 %v420, %v782
      %v784 = vpop.f32.mrf.mxu0
      %785 = vmatprep.mubr.bf16.mxu0 0
      %786 = vmatmul.mubr.bf16.gmra.mxu0 %v461
      %v787 = vpop.f32.mrf.mxu0
      %v788 = vadd.f32 %v420, %v787
      %v789 = vpop.f32.mrf.mxu0
      %v790 = vpop.f32.mrf.mxu0
      %v791 = vadd.f32 %v420, %v790
      %v792 = vpop.f32.mrf.mxu0
      %793 = vmatprep.mubr.bf16.mxu0 0
      %794 = vmatmul.mubr.bf16.gmra.mxu0 %v462
      %v795 = vpop.f32.mrf.mxu0
      %v796 = vadd.f32 %v420, %v795
      %v797 = vpop.f32.mrf.mxu0
      %v798 = vpop.f32.mrf.mxu0
      %v799 = vadd.f32 %v420, %v798
      %v800 = vpop.f32.mrf.mxu0
      %801 = vmatprep.mubr.bf16.mxu0 0
      %802 = vmatmul.mubr.bf16.gmra.mxu0 %v463
      %v803 = vpop.f32.mrf.mxu0
      %v804 = vadd.f32 %v420, %v803
      %v805 = vpop.f32.mrf.mxu0
      %v806 = vpop.f32.mrf.mxu0
      %v807 = vadd.f32 %v420, %v806
      %v808 = vpop.f32.mrf.mxu0
      %809 = vdwg.mxu0
      %v810 = vxor.u32 %v637, 2147483648
      %v811 = vxor.u32 %v641, 2147483648
      %v812 = vxor.u32 %v647, 2147483648
      %v813 = vxor.u32 %v651, 2147483648
      %v814 = vxor.u32 %v657, 2147483648
      %v815 = vxor.u32 %v661, 2147483648
      %v816 = vxor.u32 %v667, 2147483648
      %v817 = vxor.u32 %v671, 2147483648
      %v818 = vxor.u32 %v677, 2147483648
      %v819 = vxor.u32 %v681, 2147483648
      %v820 = vxor.u32 %v687, 2147483648
      %v821 = vxor.u32 %v691, 2147483648
      %v822 = vxor.u32 %v697, 2147483648
      %v823 = vxor.u32 %v701, 2147483648
      %v824 = vxor.u32 %v707, 2147483648
      %v825 = vxor.u32 %v711, 2147483648
      %v826 = vmul.f32 %v810, 1.442695
      %v827 = vpow.pop %v826
      %v828 = vmul.f32 %v811, 1.442695
      %v829 = vpow.pop %v828
      %v830 = vmul.f32 %v812, 1.442695
      %v831 = vpow.pop %v830
      %v832 = vmul.f32 %v813, 1.442695
      %v833 = vpow.pop %v832
      %v834 = vmul.f32 %v814, 1.442695
      %v835 = vpow.pop %v834
      %v836 = vmul.f32 %v815, 1.442695
      %v837 = vpow.pop %v836
      %v838 = vmul.f32 %v816, 1.442695
      %v839 = vpow.pop %v838
      %v840 = vmul.f32 %v817, 1.442695
      %v841 = vpow.pop %v840
      %v842 = vmul.f32 %v818, 1.442695
      %v843 = vpow.pop %v842
      %v844 = vmul.f32 %v819, 1.442695
      %v845 = vpow.pop %v844
      %v846 = vmul.f32 %v820, 1.442695
      %v847 = vpow.pop %v846
      %v848 = vmul.f32 %v821, 1.442695
      %v849 = vpow.pop %v848
      %v850 = vmul.f32 %v822, 1.442695
      %v851 = vpow.pop %v850
      %v852 = vmul.f32 %v823, 1.442695
      %v853 = vpow.pop %v852
      %v854 = vmul.f32 %v824, 1.442695
      %v855 = vpow.pop %v854
      %v856 = vmul.f32 %v825, 1.442695
      %v857 = vpow.pop %v856
      %v858 = vadd.f32 %v827, 1.0
      %v859 = vadd.f32 %v829, 1.0
      %v860 = vadd.f32 %v831, 1.0
      %v861 = vadd.f32 %v833, 1.0
      %v862 = vadd.f32 %v835, 1.0
      %v863 = vadd.f32 %v837, 1.0
      %v864 = vadd.f32 %v839, 1.0
      %v865 = vadd.f32 %v841, 1.0
      %v866 = vadd.f32 %v843, 1.0
      %v867 = vadd.f32 %v845, 1.0
      %v868 = vadd.f32 %v847, 1.0
      %v869 = vadd.f32 %v849, 1.0
      %v870 = vadd.f32 %v851, 1.0
      %v871 = vadd.f32 %v853, 1.0
      %v872 = vadd.f32 %v855, 1.0
      %v873 = vadd.f32 %v857, 1.0
      %v874 = vrcp.pop %v858
      %v875 = vmul.f32 1.0, %v874
      %v876 = vrcp.pop %v859
      %v877 = vmul.f32 1.0, %v876
      %v878 = vrcp.pop %v860
      %v879 = vmul.f32 1.0, %v878
      %v880 = vrcp.pop %v861
      %v881 = vmul.f32 1.0, %v880
      %v882 = vrcp.pop %v862
      %v883 = vmul.f32 1.0, %v882
      %v884 = vrcp.pop %v863
      %v885 = vmul.f32 1.0, %v884
      %v886 = vrcp.pop %v864
      %v887 = vmul.f32 1.0, %v886
      %v888 = vrcp.pop %v865
      %v889 = vmul.f32 1.0, %v888
      %v890 = vrcp.pop %v866
      %v891 = vmul.f32 1.0, %v890
      %v892 = vrcp.pop %v867
      %v893 = vmul.f32 1.0, %v892
      %v894 = vrcp.pop %v868
      %v895 = vmul.f32 1.0, %v894
      %v896 = vrcp.pop %v869
      %v897 = vmul.f32 1.0, %v896
      %v898 = vrcp.pop %v870
      %v899 = vmul.f32 1.0, %v898
      %v900 = vrcp.pop %v871
      %v901 = vmul.f32 1.0, %v900
      %v902 = vrcp.pop %v872
      %v903 = vmul.f32 1.0, %v902
      %v904 = vrcp.pop %v873
      %v905 = vmul.f32 1.0, %v904
      %v906 = vpack.c.bf16 %v877, %v875
      %v907 = vpack.c.bf16 %v881, %v879
      %v908 = vpack.c.bf16 %v885, %v883
      %v909 = vpack.c.bf16 %v889, %v887
      %v910 = vpack.c.bf16 %v893, %v891
      %v911 = vpack.c.bf16 %v897, %v895
      %v912 = vpack.c.bf16 %v901, %v899
      %v913 = vpack.c.bf16 %v905, %v903
      %v914 = vpack.c.bf16 %v751, %v748
      %v915 = vpack.c.bf16 %v759, %v756
      %v916 = vpack.c.bf16 %v767, %v764
      %v917 = vpack.c.bf16 %v775, %v772
      %v918 = vpack.c.bf16 %v783, %v780
      %v919 = vpack.c.bf16 %v791, %v788
      %v920 = vpack.c.bf16 %v799, %v796
      %v921 = vpack.c.bf16 %v807, %v804
      %v922 = vpack.c.bf16 %v639, %v635
      %v923 = vpack.c.bf16 %v649, %v645
      %v924 = vpack.c.bf16 %v659, %v655
      %v925 = vpack.c.bf16 %v669, %v665
      %v926 = vpack.c.bf16 %v679, %v675
      %v927 = vpack.c.bf16 %v689, %v685
      %v928 = vpack.c.bf16 %v699, %v695
      %v929 = vpack.c.bf16 %v709, %v705
      %v938 = vunpack.c.l.b16 %v922
      %v939 = vunpack.c.h.b16 %v922
      %v940 = vunpack.c.l.b16 %v923
      %v941 = vunpack.c.h.b16 %v923
      %v942 = vunpack.c.l.b16 %v924
      %v943 = vunpack.c.h.b16 %v924
      %v944 = vunpack.c.l.b16 %v925
      %v945 = vunpack.c.h.b16 %v925
      %v946 = vunpack.c.l.b16 %v926
      %v947 = vunpack.c.h.b16 %v926
      %v948 = vunpack.c.l.b16 %v927
      %v949 = vunpack.c.h.b16 %v927
      %v950 = vunpack.c.l.b16 %v928
      %v951 = vunpack.c.h.b16 %v928
      %v952 = vunpack.c.l.b16 %v929
      %v953 = vunpack.c.h.b16 %v929
      %v954 = vpack.c.b16 %v938, %v938
      %v955 = vpack.c.b16 %v939, %v939
      %v956 = vpack.c.b16 %v940, %v940
      %v957 = vpack.c.b16 %v941, %v941
      %v958 = vpack.c.b16 %v942, %v942
      %v959 = vpack.c.b16 %v943, %v943
      %v960 = vpack.c.b16 %v944, %v944
      %v961 = vpack.c.b16 %v945, %v945
      %v962 = vpack.c.b16 %v946, %v946
      %v963 = vpack.c.b16 %v947, %v947
      %v964 = vpack.c.b16 %v948, %v948
      %v965 = vpack.c.b16 %v949, %v949
      %v966 = vpack.c.b16 %v950, %v950
      %v967 = vpack.c.b16 %v951, %v951
      %v968 = vpack.c.b16 %v952, %v952
      %v969 = vpack.c.b16 %v953, %v953
      %986 = vst [vmem:[%s315] sm:$0xf] %v954
      %987 = vst [vmem:[%s315 + $0x4] sm:$0xf] %v955
      %988 = vst [vmem:[%s315 + $0x8] sm:$0xf] %v956
      %989 = vst [vmem:[%s315 + $0xc] sm:$0xf] %v957
      %990 = vst [vmem:[%s315 + $0x10] sm:$0xf] %v958
      %991 = vst [vmem:[%s315 + $0x14] sm:$0xf] %v959
      %992 = vst [vmem:[%s315 + $0x18] sm:$0xf] %v960
      %993 = vst [vmem:[%s315 + $0x1c] sm:$0xf] %v961
      %994 = vst [vmem:[%s315 + $0x20] sm:$0xf] %v962
      %995 = vst [vmem:[%s315 + $0x24] sm:$0xf] %v963
      %996 = vst [vmem:[%s315 + $0x28] sm:$0xf] %v964
      %997 = vst [vmem:[%s315 + $0x2c] sm:$0xf] %v965
      %998 = vst [vmem:[%s315 + $0x30] sm:$0xf] %v966
      %999 = vst [vmem:[%s315 + $0x34] sm:$0xf] %v967
      %1000 = vst [vmem:[%s315 + $0x38] sm:$0xf] %v968
      %1001 = vst [vmem:[%s315 + $0x3c] sm:$0xf] %v969
      %v1010 = vunpack.c.l.b16 %v906
      %v1011 = vunpack.c.h.b16 %v906
      %v1012 = vunpack.c.l.b16 %v907
      %v1013 = vunpack.c.h.b16 %v907
      %v1014 = vunpack.c.l.b16 %v908
      %v1015 = vunpack.c.h.b16 %v908
      %v1016 = vunpack.c.l.b16 %v909
      %v1017 = vunpack.c.h.b16 %v909
      %v1018 = vunpack.c.l.b16 %v910
      %v1019 = vunpack.c.h.b16 %v910
      %v1020 = vunpack.c.l.b16 %v911
      %v1021 = vunpack.c.h.b16 %v911
      %v1022 = vunpack.c.l.b16 %v912
      %v1023 = vunpack.c.h.b16 %v912
      %v1024 = vunpack.c.l.b16 %v913
      %v1025 = vunpack.c.h.b16 %v913
      %v1026 = vpack.c.b16 %v1010, %v1010
      %v1027 = vpack.c.b16 %v1011, %v1011
      %v1028 = vpack.c.b16 %v1012, %v1012
      %v1029 = vpack.c.b16 %v1013, %v1013
      %v1030 = vpack.c.b16 %v1014, %v1014
      %v1031 = vpack.c.b16 %v1015, %v1015
      %v1032 = vpack.c.b16 %v1016, %v1016
      %v1033 = vpack.c.b16 %v1017, %v1017
      %v1034 = vpack.c.b16 %v1018, %v1018
      %v1035 = vpack.c.b16 %v1019, %v1019
      %v1036 = vpack.c.b16 %v1020, %v1020
      %v1037 = vpack.c.b16 %v1021, %v1021
      %v1038 = vpack.c.b16 %v1022, %v1022
      %v1039 = vpack.c.b16 %v1023, %v1023
      %v1040 = vpack.c.b16 %v1024, %v1024
      %v1041 = vpack.c.b16 %v1025, %v1025
      %1058 = vst [vmem:[%s325] sm:$0xf] %v1026
      %1059 = vst [vmem:[%s325 + $0x4] sm:$0xf] %v1027
      %1060 = vst [vmem:[%s325 + $0x8] sm:$0xf] %v1028
      %1061 = vst [vmem:[%s325 + $0xc] sm:$0xf] %v1029
      %1062 = vst [vmem:[%s325 + $0x10] sm:$0xf] %v1030
      %1063 = vst [vmem:[%s325 + $0x14] sm:$0xf] %v1031
      %1064 = vst [vmem:[%s325 + $0x18] sm:$0xf] %v1032
      %1065 = vst [vmem:[%s325 + $0x1c] sm:$0xf] %v1033
      %1066 = vst [vmem:[%s325 + $0x20] sm:$0xf] %v1034
      %1067 = vst [vmem:[%s325 + $0x24] sm:$0xf] %v1035
      %1068 = vst [vmem:[%s325 + $0x28] sm:$0xf] %v1036
      %1069 = vst [vmem:[%s325 + $0x2c] sm:$0xf] %v1037
      %1070 = vst [vmem:[%s325 + $0x30] sm:$0xf] %v1038
      %1071 = vst [vmem:[%s325 + $0x34] sm:$0xf] %v1039
      %1072 = vst [vmem:[%s325 + $0x38] sm:$0xf] %v1040
      %1073 = vst [vmem:[%s325 + $0x3c] sm:$0xf] %v1041
      %s1074 = smul.u32 %s24, 2
      %s1075 = sadd.s32 %s1074, %s25
      %s1076 = smul.u32 %s1075, 128
      %v1077 = vlaneseq
      %v1078 = vshrl.u32 %v1077, 7
      %v1079 = vadd.s32 %v1078, 8
      %v1080 = vadd.s32 %v1078, 16
      %v1081 = vadd.s32 %v1078, 24
      %v1082 = vadd.s32 %v1078, 32
      %v1083 = vadd.s32 %v1078, 40
      %v1084 = vadd.s32 %v1078, 48
      %v1085 = vadd.s32 %v1078, 56
      %v1086 = vadd.s32 %v1078, 64
      %v1087 = vadd.s32 %v1078, 72
      %v1088 = vadd.s32 %v1078, 80
      %v1089 = vadd.s32 %v1078, 88
      %v1090 = vadd.s32 %v1078, 96
      %v1091 = vadd.s32 %v1078, 104
      %v1092 = vadd.s32 %v1078, 112
      %v1093 = vadd.s32 %v1078, 120
      %v1094 = vstv %s1076
      %v1095 = vadd.s32 %v1094, %v1078
      %v1096 = vadd.s32 %v1094, %v1079
      %v1097 = vadd.s32 %v1094, %v1080
      %v1098 = vadd.s32 %v1094, %v1081
      %v1099 = vadd.s32 %v1094, %v1082
      %v1100 = vadd.s32 %v1094, %v1083
      %v1101 = vadd.s32 %v1094, %v1084
      %v1102 = vadd.s32 %v1094, %v1085
      %v1103 = vadd.s32 %v1094, %v1086
      %v1104 = vadd.s32 %v1094, %v1087
      %v1105 = vadd.s32 %v1094, %v1088
      %v1106 = vadd.s32 %v1094, %v1089
      %v1107 = vadd.s32 %v1094, %v1090
      %v1108 = vadd.s32 %v1094, %v1091
      %v1109 = vadd.s32 %v1094, %v1092
      %v1110 = vadd.s32 %v1094, %v1093
      %s1111 = sld [smem:[#allocation5]]
      %v1112 = vstv %s1111
      %vm1113 = vcmp.lt.s32.totalorder %v1095, %v1112
      %vm1114 = vcmp.lt.s32.totalorder %v1096, %v1112
      %vm1115 = vcmp.lt.s32.totalorder %v1097, %v1112
      %vm1116 = vcmp.lt.s32.totalorder %v1098, %v1112
      %vm1117 = vcmp.lt.s32.totalorder %v1099, %v1112
      %vm1118 = vcmp.lt.s32.totalorder %v1100, %v1112
      %vm1119 = vcmp.lt.s32.totalorder %v1101, %v1112
      %vm1120 = vcmp.lt.s32.totalorder %v1102, %v1112
      %vm1121 = vcmp.lt.s32.totalorder %v1103, %v1112
      %vm1122 = vcmp.lt.s32.totalorder %v1104, %v1112
      %vm1123 = vcmp.lt.s32.totalorder %v1105, %v1112
      %vm1124 = vcmp.lt.s32.totalorder %v1106, %v1112
      %vm1125 = vcmp.lt.s32.totalorder %v1107, %v1112
      %vm1126 = vcmp.lt.s32.totalorder %v1108, %v1112
      %vm1127 = vcmp.lt.s32.totalorder %v1109, %v1112
      %vm1128 = vcmp.lt.s32.totalorder %v1110, %v1112
      %v1129 = vsel %vm1113, 1, 0
      %v1130 = vsel %vm1114, 1, 0
      %v1131 = vsel %vm1115, 1, 0
      %v1132 = vsel %vm1116, 1, 0
      %v1133 = vsel %vm1117, 1, 0
      %v1134 = vsel %vm1118, 1, 0
      %v1135 = vsel %vm1119, 1, 0
      %v1136 = vsel %vm1120, 1, 0
      %v1137 = vsel %vm1121, 1, 0
      %v1138 = vsel %vm1122, 1, 0
      %v1139 = vsel %vm1123, 1, 0
      %v1140 = vsel %vm1124, 1, 0
      %v1141 = vsel %vm1125, 1, 0
      %v1142 = vsel %vm1126, 1, 0
      %v1143 = vsel %vm1127, 1, 0
      %v1144 = vsel %vm1128, 1, 0
      %v1145 = vcvt.s32.f32 %v1129
      %v1146 = vcvt.s32.f32 %v1130
      %v1147 = vcvt.s32.f32 %v1131
      %v1148 = vcvt.s32.f32 %v1132
      %v1149 = vcvt.s32.f32 %v1133
      %v1150 = vcvt.s32.f32 %v1134
      %v1151 = vcvt.s32.f32 %v1135
      %v1152 = vcvt.s32.f32 %v1136
      %v1153 = vcvt.s32.f32 %v1137
      %v1154 = vcvt.s32.f32 %v1138
      %v1155 = vcvt.s32.f32 %v1139
      %v1156 = vcvt.s32.f32 %v1140
      %v1157 = vcvt.s32.f32 %v1141
      %v1158 = vcvt.s32.f32 %v1142
      %v1159 = vcvt.s32.f32 %v1143
      %v1160 = vcvt.s32.f32 %v1144
      %v1161 = vpack.c.bf16 %v1146, %v1145
      %v1162 = vpack.c.bf16 %v1148, %v1147
      %v1163 = vpack.c.bf16 %v1150, %v1149
      %v1164 = vpack.c.bf16 %v1152, %v1151
      %v1165 = vpack.c.bf16 %v1154, %v1153
      %v1166 = vpack.c.bf16 %v1156, %v1155
      %v1167 = vpack.c.bf16 %v1158, %v1157
      %v1168 = vpack.c.bf16 %v1160, %v1159
      %v1169 = vmul.bf16 %v906, %v1161
      %v1170 = vmul.bf16 %v907, %v1162
      %v1171 = vmul.bf16 %v908, %v1163
      %v1172 = vmul.bf16 %v909, %v1164
      %v1173 = vmul.bf16 %v910, %v1165
      %v1174 = vmul.bf16 %v911, %v1166
      %v1175 = vmul.bf16 %v912, %v1167
      %v1176 = vmul.bf16 %v913, %v1168
      %v1177 = vld [vmem:[#allocation2] sm:$0xff]
      %v1178 = vld [vmem:[#allocation2 + $0x8] sm:$0xff]
      %v1179 = vld [vmem:[#allocation2 + $0x10] sm:$0xff]
      %v1180 = vld [vmem:[#allocation2 + $0x18] sm:$0xff]
      %v1181 = vld [vmem:[#allocation2 + $0x20] sm:$0xff]
      %v1182 = vld [vmem:[#allocation2 + $0x28] sm:$0xff]
      %v1183 = vld [vmem:[#allocation2 + $0x30] sm:$0xff]
      %v1184 = vld [vmem:[#allocation2 + $0x38] sm:$0xff]
      %v1185 = vld [vmem:[#allocation2 + $0x40] sm:$0xff]
      %v1186 = vld [vmem:[#allocation2 + $0x48] sm:$0xff]
      %v1187 = vld [vmem:[#allocation2 + $0x50] sm:$0xff]
      %v1188 = vld [vmem:[#allocation2 + $0x58] sm:$0xff]
      %v1189 = vld [vmem:[#allocation2 + $0x60] sm:$0xff]
      %v1190 = vld [vmem:[#allocation2 + $0x68] sm:$0xff]
      %v1191 = vld [vmem:[#allocation2 + $0x70] sm:$0xff]
      %v1192 = vld [vmem:[#allocation2 + $0x78] sm:$0xff]
      %1193 = vxpose.xlu0.c.b16.start [1/8] %v1169, 128
      %1194 = vxpose.xlu0.c.b16.cont [2/8] %v1170, 128
      %1195 = vxpose.xlu0.c.b16.cont [3/8] %v1171, 128
      %1196 = vxpose.xlu0.c.b16.cont [4/8] %v1172, 128
      %1197 = vxpose.xlu0.c.b16.cont [5/8] %v1173, 128
      %1198 = vxpose.xlu0.c.b16.cont [6/8] %v1174, 128
      %1199 = vxpose.xlu0.c.b16.cont [7/8] %v1175, 128
      %1200 = vxpose.xlu0.c.b16.end [8/8] %v1176, 128
      %v1201 = vpop.trf.xlu0
      %v1202 = vpop.trf.xlu0
      %v1203 = vpop.trf.xlu0
      %v1204 = vpop.trf.xlu0
      %v1205 = vpop.trf.xlu0
      %v1206 = vpop.trf.xlu0
      %v1207 = vpop.trf.xlu0
      %v1208 = vpop.trf.xlu0
      %1209 = vmatprep.subr.bf16.mxu0 0
      %1210 = vmatpush1.bf16.msra.mxu0 %v921
      %1211 = vmatprep.subr.bf16.mxu0 0
      %1212 = vmatpush1.bf16.msra.mxu0 %v920
      %1213 = vmatprep.subr.bf16.mxu0 0
      %1214 = vmatpush1.bf16.msra.mxu0 %v919
      %1215 = vmatprep.subr.bf16.mxu0 0
      %1216 = vmatpush1.bf16.msra.mxu0 %v918
      %1217 = vmatprep.subr.bf16.mxu0 0
      %1218 = vmatpush1.bf16.msra.mxu0 %v917
      %1219 = vmatprep.subr.bf16.mxu0 0
      %1220 = vmatpush1.bf16.msra.mxu0 %v916
      %1221 = vmatprep.subr.bf16.mxu0 0
      %1222 = vmatpush1.bf16.msra.mxu0 %v915
      %1223 = vmatprep.subr.bf16.mxu0 0
      %1224 = vmatpush1.bf16.msra.mxu0 %v914
      %1225 = vmatprep.subr.bf16.mxu0 0
      %1226 = vmatpush2.bf16.msra.mxu0 0
      %1227 = vmatprep.subr.bf16.mxu0 0
      %1228 = vmatpush2.bf16.msra.mxu0 0
      %1229 = vmatprep.subr.bf16.mxu0 0
      %1230 = vmatpush2.bf16.msra.mxu0 0
      %1231 = vmatprep.subr.bf16.mxu0 0
      %1232 = vmatpush2.bf16.msra.mxu0 0
      %1233 = vmatprep.subr.bf16.mxu0 0
      %1234 = vmatpush2.bf16.msra.mxu0 0
      %1235 = vmatprep.subr.bf16.mxu0 0
      %1236 = vmatpush2.bf16.msra.mxu0 0
      %1237 = vmatprep.subr.bf16.mxu0 0
      %1238 = vmatpush2.bf16.msra.mxu0 0
      %1239 = vmatprep.subr.bf16.mxu0 0
      %1240 = vmatpush2.bf16.msra.mxu0 0
      %1241 = vmatprep.mubr.bf16.mxu0 0
      %1242 = vmatmul.mubr.bf16.gmra.mxu0 %v1201
      %v1243 = vpop.f32.mrf.mxu0
      %v1244 = vadd.f32 0.0, %v1243
      %v1245 = vpop.f32.mrf.mxu0
      %v1246 = vpop.f32.mrf.mxu0
      %v1247 = vadd.f32 0.0, %v1246
      %v1248 = vpop.f32.mrf.mxu0
      %1249 = vmatprep.mubr.bf16.mxu0 0
      %1250 = vmatmul.mubr.bf16.gmra.mxu0 %v1202
      %v1251 = vpop.f32.mrf.mxu0
      %v1252 = vadd.f32 0.0, %v1251
      %v1253 = vpop.f32.mrf.mxu0
      %v1254 = vpop.f32.mrf.mxu0
      %v1255 = vadd.f32 0.0, %v1254
      %v1256 = vpop.f32.mrf.mxu0
      %1257 = vmatprep.mubr.bf16.mxu0 0
      %1258 = vmatmul.mubr.bf16.gmra.mxu0 %v1203
      %v1259 = vpop.f32.mrf.mxu0
      %v1260 = vadd.f32 0.0, %v1259
      %v1261 = vpop.f32.mrf.mxu0
      %v1262 = vpop.f32.mrf.mxu0
      %v1263 = vadd.f32 0.0, %v1262
      %v1264 = vpop.f32.mrf.mxu0
      %1265 = vmatprep.mubr.bf16.mxu0 0
      %1266 = vmatmul.mubr.bf16.gmra.mxu0 %v1204
      %v1267 = vpop.f32.mrf.mxu0
      %v1268 = vadd.f32 0.0, %v1267
      %v1269 = vpop.f32.mrf.mxu0
      %v1270 = vpop.f32.mrf.mxu0
      %v1271 = vadd.f32 0.0, %v1270
      %v1272 = vpop.f32.mrf.mxu0
      %1273 = vmatprep.mubr.bf16.mxu0 0
      %1274 = vmatmul.mubr.bf16.gmra.mxu0 %v1205
      %v1275 = vpop.f32.mrf.mxu0
      %v1276 = vadd.f32 0.0, %v1275
      %v1277 = vpop.f32.mrf.mxu0
      %v1278 = vpop.f32.mrf.mxu0
      %v1279 = vadd.f32 0.0, %v1278
      %v1280 = vpop.f32.mrf.mxu0
      %1281 = vmatprep.mubr.bf16.mxu0 0
      %1282 = vmatmul.mubr.bf16.gmra.mxu0 %v1206
      %v1283 = vpop.f32.mrf.mxu0
      %v1284 = vadd.f32 0.0, %v1283
      %v1285 = vpop.f32.mrf.mxu0
      %v1286 = vpop.f32.mrf.mxu0
      %v1287 = vadd.f32 0.0, %v1286
      %v1288 = vpop.f32.mrf.mxu0
      %1289 = vmatprep.mubr.bf16.mxu0 0
      %1290 = vmatmul.mubr.bf16.gmra.mxu0 %v1207
      %v1291 = vpop.f32.mrf.mxu0
      %v1292 = vadd.f32 0.0, %v1291
      %v1293 = vpop.f32.mrf.mxu0
      %v1294 = vpop.f32.mrf.mxu0
      %v1295 = vadd.f32 0.0, %v1294
      %v1296 = vpop.f32.mrf.mxu0
      %1297 = vmatprep.mubr.bf16.mxu0 0
      %1298 = vmatmul.mubr.bf16.gmra.mxu0 %v1208
      %v1299 = vpop.f32.mrf.mxu0
      %v1300 = vadd.f32 0.0, %v1299
      %v1301 = vpop.f32.mrf.mxu0
      %v1302 = vpop.f32.mrf.mxu0
      %v1303 = vadd.f32 0.0, %v1302
      %v1304 = vpop.f32.mrf.mxu0
      %1305 = vdwg.mxu0
      %v1306 = vadd.f32 %v1177, %v1244
      %v1307 = vadd.f32 %v1178, %v1247
      %v1308 = vadd.f32 %v1179, %v1252
      %v1309 = vadd.f32 %v1180, %v1255
      %v1310 = vadd.f32 %v1181, %v1260
      %v1311 = vadd.f32 %v1182, %v1263
      %v1312 = vadd.f32 %v1183, %v1268
      %v1313 = vadd.f32 %v1184, %v1271
      %v1314 = vadd.f32 %v1185, %v1276
      %v1315 = vadd.f32 %v1186, %v1279
      %v1316 = vadd.f32 %v1187, %v1284
      %v1317 = vadd.f32 %v1188, %v1287
      %v1318 = vadd.f32 %v1189, %v1292
      %v1319 = vadd.f32 %v1190, %v1295
      %v1320 = vadd.f32 %v1191, %v1300
      %v1321 = vadd.f32 %v1192, %v1303
      %1322 = vst [vmem:[#allocation2] sm:$0xff] %v1306
      %1323 = vst [vmem:[#allocation2 + $0x8] sm:$0xff] %v1307
      %1324 = vst [vmem:[#allocation2 + $0x10] sm:$0xff] %v1308
      %1325 = vst [vmem:[#allocation2 + $0x18] sm:$0xff] %v1309
      %1326 = vst [vmem:[#allocation2 + $0x20] sm:$0xff] %v1310
      %1327 = vst [vmem:[#allocation2 + $0x28] sm:$0xff] %v1311
      %1328 = vst [vmem:[#allocation2 + $0x30] sm:$0xff] %v1312
      %1329 = vst [vmem:[#allocation2 + $0x38] sm:$0xff] %v1313
      %1330 = vst [vmem:[#allocation2 + $0x40] sm:$0xff] %v1314
      %1331 = vst [vmem:[#allocation2 + $0x48] sm:$0xff] %v1315
      %1332 = vst [vmem:[#allocation2 + $0x50] sm:$0xff] %v1316
      %1333 = vst [vmem:[#allocation2 + $0x58] sm:$0xff] %v1317
      %1334 = vst [vmem:[#allocation2 + $0x60] sm:$0xff] %v1318
      %1335 = vst [vmem:[#allocation2 + $0x68] sm:$0xff] %v1319
      %1336 = vst [vmem:[#allocation2 + $0x70] sm:$0xff] %v1320
      %1337 = vst [vmem:[#allocation2 + $0x78] sm:$0xff] %v1321
      %v1338 = vld [vmem:[#allocation3] sm:$0x1]
      %v1339 = vunpack.c.l.bf16 %v1169
      %v1340 = vunpack.c.h.bf16 %v1169
      %v1341 = vunpack.c.l.bf16 %v1170
      %v1342 = vunpack.c.h.bf16 %v1170
      %v1343 = vunpack.c.l.bf16 %v1171
      %v1344 = vunpack.c.h.bf16 %v1171
      %v1345 = vunpack.c.l.bf16 %v1172
      %v1346 = vunpack.c.h.bf16 %v1172
      %v1347 = vunpack.c.l.bf16 %v1173
      %v1348 = vunpack.c.h.bf16 %v1173
      %v1349 = vunpack.c.l.bf16 %v1174
      %v1350 = vunpack.c.h.bf16 %v1174
      %v1351 = vunpack.c.l.bf16 %v1175
      %v1352 = vunpack.c.h.bf16 %v1175
      %v1353 = vunpack.c.l.bf16 %v1176
      %v1354 = vunpack.c.h.bf16 %v1176
      %v1355 = vadd.f32 %v1339, %v1340
      %v1356 = vadd.f32 %v1355, %v1341
      %v1357 = vadd.f32 %v1356, %v1342
      %v1358 = vadd.f32 %v1357, %v1343
      %v1359 = vadd.f32 %v1358, %v1344
      %v1360 = vadd.f32 %v1359, %v1345
      %v1361 = vadd.f32 %v1360, %v1346
      %v1362 = vadd.f32 %v1361, %v1347
      %v1363 = vadd.f32 %v1362, %v1348
      %v1364 = vadd.f32 %v1363, %v1349
      %v1365 = vadd.f32 %v1364, %v1350
      %v1366 = vadd.f32 %v1365, %v1351
      %v1367 = vadd.f32 %v1366, %v1352
      %v1368 = vadd.f32 %v1367, %v1353
      %v1369 = vadd.f32 %v1368, %v1354
      %v1370 = vrot.slane %v1369, 4
      %v1371 = vadd.f32 %v1369, %v1370
      %v1372 = vrot.slane %v1371, 2
      %v1373 = vadd.f32 %v1371, %v1372
      %v1374 = vrot.slane %v1373, 1
      %v1375 = vadd.f32 %v1373, %v1374
      %v1376 = vadd.f32 %v1338, %v1375
      %1377 = vst [vmem:[#allocation3] sm:$0x1] %v1376
      %p1378 = scmp.eq.s32.totalorder %s25, 1
      // Predicated region
      $region37: #{global_attn_forward.3} parent=31 // pred_check
        %p1379 = pneg %p1378
      $region38: #{global_attn_forward.3} parent=31 // pred_check_branch
        %1381 = sbr.rel (%p1379) target = $region40
      $region39: #{global_attn_forward.3} parent=31 // pred_region
        %v1382 = vld [vmem:[#allocation2] sm:$0xff]
        %v1383 = vld [vmem:[#allocation2 + $0x8] sm:$0xff]
        %v1384 = vld [vmem:[#allocation2 + $0x10] sm:$0xff]
        %v1385 = vld [vmem:[#allocation2 + $0x18] sm:$0xff]
        %v1386 = vld [vmem:[#allocation2 + $0x20] sm:$0xff]
        %v1387 = vld [vmem:[#allocation2 + $0x28] sm:$0xff]
        %v1388 = vld [vmem:[#allocation2 + $0x30] sm:$0xff]
        %v1389 = vld [vmem:[#allocation2 + $0x38] sm:$0xff]
        %v1390 = vld [vmem:[#allocation2 + $0x40] sm:$0xff]
        %v1391 = vld [vmem:[#allocation2 + $0x48] sm:$0xff]
        %v1392 = vld [vmem:[#allocation2 + $0x50] sm:$0xff]
        %v1393 = vld [vmem:[#allocation2 + $0x58] sm:$0xff]
        %v1394 = vld [vmem:[#allocation2 + $0x60] sm:$0xff]
        %v1395 = vld [vmem:[#allocation2 + $0x68] sm:$0xff]
        %v1396 = vld [vmem:[#allocation2 + $0x70] sm:$0xff]
        %v1397 = vld [vmem:[#allocation2 + $0x78] sm:$0xff]
        %1398 = vst [vmem:[%s333] sm:$0xff] %v1382
        %1399 = vst [vmem:[%s333 + $0x8] sm:$0xff] %v1383
        %1400 = vst [vmem:[%s333 + $0x10] sm:$0xff] %v1384
        %1401 = vst [vmem:[%s333 + $0x18] sm:$0xff] %v1385
        %1402 = vst [vmem:[%s333 + $0x20] sm:$0xff] %v1386
        %1403 = vst [vmem:[%s333 + $0x28] sm:$0xff] %v1387
        %1404 = vst [vmem:[%s333 + $0x30] sm:$0xff] %v1388
        %1405 = vst [vmem:[%s333 + $0x38] sm:$0xff] %v1389
        %1406 = vst [vmem:[%s333 + $0x40] sm:$0xff] %v1390
        %1407 = vst [vmem:[%s333 + $0x48] sm:$0xff] %v1391
        %1408 = vst [vmem:[%s333 + $0x50] sm:$0xff] %v1392
        %1409 = vst [vmem:[%s333 + $0x58] sm:$0xff] %v1393
        %1410 = vst [vmem:[%s333 + $0x60] sm:$0xff] %v1394
        %1411 = vst [vmem:[%s333 + $0x68] sm:$0xff] %v1395
        %1412 = vst [vmem:[%s333 + $0x70] sm:$0xff] %v1396
        %1413 = vst [vmem:[%s333 + $0x78] sm:$0xff] %v1397
        %v1414 = vld [vmem:[#allocation3] sm:$0x1]
        %1415 = vst [vmem:[%s336] sm:$0x1] %v1414
      $region40: #{global_attn_forward.3} parent=31 // pred_fallthru
        _
      %s1416 = smul.u32 %s24, 2
      %s1417 = sadd.s32 %s1416, %s25
      %s1418 = smul.u32 16, %s1417
      %p1419 = scmp.lt.s32.totalorder %s1418, 63
      %s1420 = scalar_select %p1419, %s1418, 63
      %s1421 = smul.addr %s1420, 4
      %s1422 = scalar_lea.vmem %s4, %s1421
      %s1423 = smul.u32 %s24, 2
      %s1424 = sadd.s32 %s1423, %s25
      %s1425 = smul.u32 16, %s1424
      %p1426 = scmp.lt.s32.totalorder %s1425, 63
      %s1427 = scalar_select %p1426, %s1425, 63
      %s1428 = smul.addr %s1427, 4
      %s1429 = scalar_lea.vmem %s5, %s1428
      %p1430 = scmp.lt.s32.totalorder %s24, 1
      %s1431 = scalar_select %p1430, %s24, 1
      %s1432 = smul.addr %s1431, 16
      %s1433 = smul.addr %s1432, 8
      %s1434 = scalar_lea.vmem %s6, %s1433
      %p1435 = scmp.lt.s32.totalorder %s24, 1
      %s1436 = scalar_select %p1435, %s24, 1
      %s1437 = scalar_lea.vmem %s7, %s1436
      // Predicated region
      $region41: #{global_attn_forward.3} parent=31 // pred_check
        %p1438 = pneg %p126
      $region42: #{global_attn_forward.3} parent=31 // pred_check_branch
        %1440 = sbr.rel (%p1438) target = $region44
      $region43: #{global_attn_forward.3} parent=31 // pred_region
        %s1441 = smul.u32 %s24, 2
        %s1442 = sadd.s32 %s1441, %s25
        %s1443 = smul.u32 16, %s1442
      $region44: #{global_attn_forward.3} parent=31 // pred_fallthru
        _
      // Predicated region
      $region45: #{global_attn_forward.3} parent=31 // pred_check
        %p1444 = pneg %p156
      $region46: #{global_attn_forward.3} parent=31 // pred_check_branch
        %1446 = sbr.rel (%p1444) target = $region48
      $region47: #{global_attn_forward.3} parent=31 // pred_region
        %s1447 = smul.u32 %s24, 2
        %s1448 = sadd.s32 %s1447, %s25
        %s1449 = smul.u32 16, %s1448
      $region48: #{global_attn_forward.3} parent=31 // pred_fallthru
        _
      // Predicated region
      $region49: #{global_attn_forward.3} parent=31 // pred_check
        %p1450 = pneg %p182
      $region50: #{global_attn_forward.3} parent=31 // pred_check_branch
        %1452 = sbr.rel (%p1450) target = $region52
      $region51: #{global_attn_forward.3} parent=31 // pred_region
        _
      $region52: #{global_attn_forward.3} parent=31 // pred_fallthru
        _
      // Predicated region
      $region53: #{global_attn_forward.3} parent=31 // pred_check
        %p1453 = pneg %p208
      $region54: #{global_attn_forward.3} parent=31 // pred_check_branch
        %1455 = sbr.rel (%p1453) target = $region56
      $region55: #{global_attn_forward.3} parent=31 // pred_region
        _
      $region56: #{global_attn_forward.3} parent=31 // pred_fallthru
        _
    $region32: #{global_attn_forward.3} parent=5 // pred_fallthru
      _
    %p1456 = scmp.le.s32.totalorder 2, %s15
    // Predicated region
    $region57: #{global_attn_forward.3} parent=5 // pred_check
      %p1457 = pneg %p1456
    $region58: #{global_attn_forward.3} parent=5 // pred_check_branch
      %1459 = sbr.rel (%p1457) target = $region60
    $region59: #{global_attn_forward.3} parent=5 // pred_region
      %s1460 = ssub.s32 %s15, 2
      // Predicated region
      $region61: #{global_attn_forward.3} parent=59 // pred_check
        %p1461 = pneg %p132
      $region62: #{global_attn_forward.3} parent=59 // pred_check_branch
        %1463 = sbr.rel (%p1461) target = $region64
      $region63: #{global_attn_forward.3} parent=59 // pred_region
        %s1464 = smul.u32 %s26, 2
        %s1465 = sadd.s32 %s1464, %s27
        %s1466 = smul.u32 16, %s1465
        %p1467 = scmp.lt.s32.totalorder %s1466, 63
        %s1468 = scalar_select %p1467, %s1466, 63
        %s1469 = smul.addr %s1468, 4
        %s1470 = scalar_lea.vmem %s4, %s1469
      $region64: #{global_attn_forward.3} parent=59 // pred_fallthru
        _
      // Predicated region
      $region65: #{global_attn_forward.3} parent=59 // pred_check
        %p1471 = pneg %p162
      $region66: #{global_attn_forward.3} parent=59 // pred_check_branch
        %1473 = sbr.rel (%p1471) target = $region68
      $region67: #{global_attn_forward.3} parent=59 // pred_region
        %s1474 = smul.u32 %s26, 2
        %s1475 = sadd.s32 %s1474, %s27
        %s1476 = smul.u32 16, %s1475
        %p1477 = scmp.lt.s32.totalorder %s1476, 63
        %s1478 = scalar_select %p1477, %s1476, 63
        %s1479 = smul.addr %s1478, 4
        %s1480 = scalar_lea.vmem %s5, %s1479
      $region68: #{global_attn_forward.3} parent=59 // pred_fallthru
        _
      // Predicated region
      $region69: #{global_attn_forward.3} parent=59 // pred_check
        %p1481 = pneg %p188
      $region70: #{global_attn_forward.3} parent=59 // pred_check_branch
        %1483 = sbr.rel (%p1481) target = $region72
      $region71: #{global_attn_forward.3} parent=59 // pred_region
        %p1484 = scmp.lt.s32.totalorder %s26, 1
        %s1485 = scalar_select %p1484, %s26, 1
        %s1486 = smul.addr %s1485, 16
        %s1487 = smul.addr %s1486, 8
        %s1488 = scalar_lea.vmem %s6, %s1487
      $region72: #{global_attn_forward.3} parent=59 // pred_fallthru
        _
      // Predicated region
      $region73: #{global_attn_forward.3} parent=59 // pred_check
        %p1489 = pneg %p214
      $region74: #{global_attn_forward.3} parent=59 // pred_check_branch
        %1491 = sbr.rel (%p1489) target = $region76
      $region75: #{global_attn_forward.3} parent=59 // pred_region
        %p1492 = scmp.lt.s32.totalorder %s26, 1
        %s1493 = scalar_select %p1492, %s26, 1
        %s1494 = scalar_lea.vmem %s7, %s1493
      $region76: #{global_attn_forward.3} parent=59 // pred_fallthru
        _
    $region60: #{global_attn_forward.3} parent=5 // pred_fallthru
      _
  $region6: #{global_attn_forward.3} parent=0 // loop_footer
    %s19 = sadd.s32 1, %s15
  $region7: #{global_attn_forward.3} parent=0 // loop_footer_branch
    %14 = sbr.rel target = $region3
  $region8: #{global_attn_forward.3} parent=0 // loop_exit
    _

// kernel: global_attn_forward.4
$region0: #{global_attn_forward.4}
  #allocation0 [shape = 'u32[]', space=smem, size = 0x4, offset = 0x4, fixed_abs, tag = 'smem constant byte address 0x4 - core index']
  #allocation1 [shape = 'u32[144,128]{1,0:T(1,128)}', space=vmem, size = 0x12000, scoped, tag = 'internal scratch']
  #allocation2 [shape = 'f32[128,128]{1,0:T(8,128)}', space=vmem, size = 0x10000, scoped, tag = 'scratch operand']
  #allocation3 [shape = 'f32[1,128]{1,0:T(1,128)}', space=vmem, size = 0x200, scoped, tag = 'scratch operand']
  #allocation4 [shape = 's32[1]{0}', space=sflag, size = 0x4, scoped, tag = 'scoped memory for global_attn_forward.4']
  #allocation5 [shape = 's32[1]{0:T(128)S(6)}', space=smem, size = 0x200, scoped, tag = 'prefetched SMEM operand 0']
  %s0 = inlined_call_operand.<no memory space> [shape: s32[1], index: 0, kind: input, shape index: {}]
  %s1 = inlined_call_operand.vmem [shape: bf16[512,128], index: 1, kind: input, shape index: {}]
  %s2 = inlined_call_operand.vmem [shape: bf16[512,128], index: 2, kind: input, shape index: {}]
  %s3 = inlined_call_operand.vmem [shape: bf16[128,256], index: 3, kind: input, shape index: {}]
  %s4 = inlined_call_operand.vmem [shape: f32[1,128], index: 4, kind: input, shape index: {}]
  %s5 = inlined_call_operand.vmem [shape: f32[1,128], index: 5, kind: input, shape index: {}]
  %s6 = inlined_call_operand.vmem [shape: f32[1,128], index: 6, kind: input, shape index: {}]
  %s7 = inlined_call_operand.vmem [shape: bf16[128,128], index: 7, kind: input, shape index: {}]
  %s8 = inlined_call_operand.vmem [shape: f32[1,128], index: 8, kind: input, shape index: {}]
  %s9 = inlined_call_operand.vmem [shape: bf16[128,384], index: 9, kind: input, shape index: {}]
  %s10 = inlined_call_operand.vmem [shape: f32[1,384], index: 10, kind: input, shape index: {}]
  %s11 = inlined_call_operand.vmem [shape: bf16[512,128], index: 11, kind: output, shape index: {0}]
  %s12 = inlined_call_operand.vmem [shape: bf16[512,128], index: 12, kind: output, shape index: {1}]
  %s13 = inlined_call_operand.vmem [shape: f32[2,128,128], index: 13, kind: output, shape index: {2}]
  %s14 = inlined_call_operand.vmem [shape: f32[2,1,128], index: 14, kind: output, shape index: {3}]
  %15 = xla_tuple %s11, %s12, %s13, %s14
  %s16 = sld [smem:[#allocation0]]
  $region105: #{global_attn_forward.4} parent=0
    _
  %s18 = ssub.s32 1, %s16
  %s19 = scalar_select 0, %s18, %s16
  %20 = sst [smem:[#allocation5]] %s0
  loop: start=0, step=1, limit=6
  $region2: #{global_attn_forward.4} parent=0 // loop_pre_header
    _
  $region3: #{global_attn_forward.4} parent=0 // loop_header
    %s22 = sphi 0, %s26
    %p23 = scmp.ge.s32.totalorder %s22, 6
    %s29 = sphi 0, %s41
    %s30 = sphi 0, %s37
    %s31 = sphi 0, %s29
    %s32 = sphi 0, %s30
    %s33 = sphi 0, %s31
    %s34 = sphi 0, %s32
    %s48 = sphi 0, %s50
    %s51 = sphi 0, %s48
    %s52 = sphi 0, %s51
    %s68 = sphi 0, %s52
    %s78 = sphi 0, %s80
    %s81 = sphi 0, %s78
    %s82 = sphi 0, %s81
    %s98 = sphi 0, %s82
    %s102 = sphi 0, %s102
    %s104 = sphi 0, %s102
    %s105 = sphi 0, %s104
    %s119 = sphi 0, %s105
    %s123 = sphi 0, %s123
    %s125 = sphi 0, %s123
    %s126 = sphi 0, %s125
    %s140 = sphi 0, %s126
    %s144 = sphi 0, %s144
    %s146 = sphi 0, %s144
    %s147 = sphi 0, %s146
    %s161 = sphi 0, %s147
    %s165 = sphi 0, %s165
    %s167 = sphi 0, %s165
    %s168 = sphi 0, %s167
    %s182 = sphi 0, %s168
    %s186 = sphi 0, %s186
    %s188 = sphi 0, %s186
    %s189 = sphi 0, %s188
    %s203 = sphi 0, %s189
    %s207 = sphi 0, %s207
    %s209 = sphi 0, %s207
    %s210 = sphi 0, %s209
    %s224 = sphi 0, %s210
    %s228 = sphi 0, %s228
    %s230 = sphi 0, %s228
    %s231 = sphi 0, %s230
    %s245 = sphi 0, %s231
    %s249 = sphi 0, %s249
    %s251 = sphi 0, %s249
    %s252 = sphi 0, %s251
    %s266 = sphi 0, %s252
    %s276 = sphi 0, %s278
    %s279 = sphi 0, %s276
    %s280 = sphi 0, %s279
    %s296 = sphi 0, %s280
    %s306 = sphi 0, %s308
    %s309 = sphi 0, %s306
    %s310 = sphi 0, %s309
    %s326 = sphi 0, %s310
    %s332 = sphi 0, %s334
    %s335 = sphi 0, %s332
    %s336 = sphi 0, %s335
    %s352 = sphi 0, %s336
    %s358 = sphi 0, %s360
    %s361 = sphi 0, %s358
    %s362 = sphi 0, %s361
    %s378 = sphi 0, %s362
  $region4: #{global_attn_forward.4} parent=0 // loop_header_branch
    %25 = sbr.rel (%p23) target = $region8
  $region5: #{global_attn_forward.4} parent=0 // loop_body
    %s27 = ssub.s32 %s22, 1
    %s28 = ssub.s32 %s22, 2
    %s35 = sadd.s32 1, %s30
    %p36 = scmp.ge.s32.totalorder %s35, 2
    %s37 = scalar_select %p36, 0, %s35
    %s38 = sadd.s32 1, %s29
    %s39 = scalar_select %p36, %s38, %s29
    %p40 = scmp.ge.s32.totalorder %s39, 2
    %s41 = scalar_select %p40, 0, %s39
    %s42 = smul.u32 %s29, 2
    %s43 = sadd.s32 %s42, %s30
    %s44 = smul.u32 %s41, 2
    %s45 = sadd.s32 %s44, %s37
    %s46 = ssub.s32 %s43, %s45
    %p47 = scmp.eq.s32.totalorder %s46, 0
    %s49 = sadd.s32 %s48, 1
    %s50 = scalar_select %p47, %s48, %s49
    %p53 = pneg %p47
    %p54 = scmp.eq.s32.totalorder %s22, 3
    %p55 = por %p53, %p54
    %p56 = scmp.ne.s32.totalorder %s48, %s51
    %p57 = scmp.eq.s32.totalorder %s22, 0
    %p58 = por %p56, %p57
    %p59 = scmp.ne.s32.totalorder %s48, %s51
    %p60 = scmp.eq.s32.totalorder %s27, 3
    %p61 = por %p59, %p60
    %p62 = scmp.ne.s32.totalorder %s51, %s52
    %p63 = scmp.eq.s32.totalorder %s27, 0
    %p64 = por %p62, %p63
    %p65 = scmp.ne.s32.totalorder %s51, %s52
    %p66 = scmp.eq.s32.totalorder %s28, 3
    %p67 = por %p65, %p66
    %p69 = scmp.ne.s32.totalorder %s52, %s68
    %p70 = scmp.eq.s32.totalorder %s28, 0
    %p71 = por %p69, %p70
    %s72 = smul.u32 %s29, 2
    %s73 = sadd.s32 %s72, %s30
    %s74 = smul.u32 %s41, 2
    %s75 = sadd.s32 %s74, %s37
    %s76 = ssub.s32 %s73, %s75
    %p77 = scmp.eq.s32.totalorder %s76, 0
    %s79 = sadd.s32 %s78, 1
    %s80 = scalar_select %p77, %s78, %s79
    %p83 = pneg %p77
    %p84 = scmp.eq.s32.totalorder %s22, 3
    %p85 = por %p83, %p84
    %p86 = scmp.ne.s32.totalorder %s78, %s81
    %p87 = scmp.eq.s32.totalorder %s22, 0
    %p88 = por %p86, %p87
    %p89 = scmp.ne.s32.totalorder %s78, %s81
    %p90 = scmp.eq.s32.totalorder %s27, 3
    %p91 = por %p89, %p90
    %p92 = scmp.ne.s32.totalorder %s81, %s82
    %p93 = scmp.eq.s32.totalorder %s27, 0
    %p94 = por %p92, %p93
    %p95 = scmp.ne.s32.totalorder %s81, %s82
    %p96 = scmp.eq.s32.totalorder %s28, 3
    %p97 = por %p95, %p96
    %p99 = scmp.ne.s32.totalorder %s82, %s98
    %p100 = scmp.eq.s32.totalorder %s28, 0
    %p101 = por %p99, %p100
    %s103 = sadd.s32 %s102, 1
    %p106 = scmp.eq.s32.totalorder %s22, 3
    %p107 = scmp.ne.s32.totalorder %s102, %s104
    %p108 = scmp.eq.s32.totalorder %s22, 0
    %p109 = por %p107, %p108
    %p110 = scmp.ne.s32.totalorder %s102, %s104
    %p111 = scmp.eq.s32.totalorder %s27, 3
    %p112 = por %p110, %p111
    %p113 = scmp.ne.s32.totalorder %s104, %s105
    %p114 = scmp.eq.s32.totalorder %s27, 0
    %p115 = por %p113, %p114
    %p116 = scmp.ne.s32.totalorder %s104, %s105
    %p117 = scmp.eq.s32.totalorder %s28, 3
    %p118 = por %p116, %p117
    %p120 = scmp.ne.s32.totalorder %s105, %s119
    %p121 = scmp.eq.s32.totalorder %s28, 0
    %p122 = por %p120, %p121
    %s124 = sadd.s32 %s123, 1
    %p127 = scmp.eq.s32.totalorder %s22, 3
    %p128 = scmp.ne.s32.totalorder %s123, %s125
    %p129 = scmp.eq.s32.totalorder %s22, 0
    %p130 = por %p128, %p129
    %p131 = scmp.ne.s32.totalorder %s123, %s125
    %p132 = scmp.eq.s32.totalorder %s27, 3
    %p133 = por %p131, %p132
    %p134 = scmp.ne.s32.totalorder %s125, %s126
    %p135 = scmp.eq.s32.totalorder %s27, 0
    %p136 = por %p134, %p135
    %p137 = scmp.ne.s32.totalorder %s125, %s126
    %p138 = scmp.eq.s32.totalorder %s28, 3
    %p139 = por %p137, %p138
    %p141 = scmp.ne.s32.totalorder %s126, %s140
    %p142 = scmp.eq.s32.totalorder %s28, 0
    %p143 = por %p141, %p142
    %s145 = sadd.s32 %s144, 1
    %p148 = scmp.eq.s32.totalorder %s22, 3
    %p149 = scmp.ne.s32.totalorder %s144, %s146
    %p150 = scmp.eq.s32.totalorder %s22, 0
    %p151 = por %p149, %p150
    %p152 = scmp.ne.s32.totalorder %s144, %s146
    %p153 = scmp.eq.s32.totalorder %s27, 3
    %p154 = por %p152, %p153
    %p155 = scmp.ne.s32.totalorder %s146, %s147
    %p156 = scmp.eq.s32.totalorder %s27, 0
    %p157 = por %p155, %p156
    %p158 = scmp.ne.s32.totalorder %s146, %s147
    %p159 = scmp.eq.s32.totalorder %s28, 3
    %p160 = por %p158, %p159
    %p162 = scmp.ne.s32.totalorder %s147, %s161
    %p163 = scmp.eq.s32.totalorder %s28, 0
    %p164 = por %p162, %p163
    %s166 = sadd.s32 %s165, 1
    %p169 = scmp.eq.s32.totalorder %s22, 3
    %p170 = scmp.ne.s32.totalorder %s165, %s167
    %p171 = scmp.eq.s32.totalorder %s22, 0
    %p172 = por %p170, %p171
    %p173 = scmp.ne.s32.totalorder %s165, %s167
    %p174 = scmp.eq.s32.totalorder %s27, 3
    %p175 = por %p173, %p174
    %p176 = scmp.ne.s32.totalorder %s167, %s168
    %p177 = scmp.eq.s32.totalorder %s27, 0
    %p178 = por %p176, %p177
    %p179 = scmp.ne.s32.totalorder %s167, %s168
    %p180 = scmp.eq.s32.totalorder %s28, 3
    %p181 = por %p179, %p180
    %p183 = scmp.ne.s32.totalorder %s168, %s182
    %p184 = scmp.eq.s32.totalorder %s28, 0
    %p185 = por %p183, %p184
    %s187 = sadd.s32 %s186, 1
    %p190 = scmp.eq.s32.totalorder %s22, 3
    %p191 = scmp.ne.s32.totalorder %s186, %s188
    %p192 = scmp.eq.s32.totalorder %s22, 0
    %p193 = por %p191, %p192
    %p194 = scmp.ne.s32.totalorder %s186, %s188
    %p195 = scmp.eq.s32.totalorder %s27, 3
    %p196 = por %p194, %p195
    %p197 = scmp.ne.s32.totalorder %s188, %s189
    %p198 = scmp.eq.s32.totalorder %s27, 0
    %p199 = por %p197, %p198
    %p200 = scmp.ne.s32.totalorder %s188, %s189
    %p201 = scmp.eq.s32.totalorder %s28, 3
    %p202 = por %p200, %p201
    %p204 = scmp.ne.s32.totalorder %s189, %s203
    %p205 = scmp.eq.s32.totalorder %s28, 0
    %p206 = por %p204, %p205
    %s208 = sadd.s32 %s207, 1
    %p211 = scmp.eq.s32.totalorder %s22, 3
    %p212 = scmp.ne.s32.totalorder %s207, %s209
    %p213 = scmp.eq.s32.totalorder %s22, 0
    %p214 = por %p212, %p213
    %p215 = scmp.ne.s32.totalorder %s207, %s209
    %p216 = scmp.eq.s32.totalorder %s27, 3
    %p217 = por %p215, %p216
    %p218 = scmp.ne.s32.totalorder %s209, %s210
    %p219 = scmp.eq.s32.totalorder %s27, 0
    %p220 = por %p218, %p219
    %p221 = scmp.ne.s32.totalorder %s209, %s210
    %p222 = scmp.eq.s32.totalorder %s28, 3
    %p223 = por %p221, %p222
    %p225 = scmp.ne.s32.totalorder %s210, %s224
    %p226 = scmp.eq.s32.totalorder %s28, 0
    %p227 = por %p225, %p226
    %s229 = sadd.s32 %s228, 1
    %p232 = scmp.eq.s32.totalorder %s22, 3
    %p233 = scmp.ne.s32.totalorder %s228, %s230
    %p234 = scmp.eq.s32.totalorder %s22, 0
    %p235 = por %p233, %p234
    %p236 = scmp.ne.s32.totalorder %s228, %s230
    %p237 = scmp.eq.s32.totalorder %s27, 3
    %p238 = por %p236, %p237
    %p239 = scmp.ne.s32.totalorder %s230, %s231
    %p240 = scmp.eq.s32.totalorder %s27, 0
    %p241 = por %p239, %p240
    %p242 = scmp.ne.s32.totalorder %s230, %s231
    %p243 = scmp.eq.s32.totalorder %s28, 3
    %p244 = por %p242, %p243
    %p246 = scmp.ne.s32.totalorder %s231, %s245
    %p247 = scmp.eq.s32.totalorder %s28, 0
    %p248 = por %p246, %p247
    %s250 = sadd.s32 %s249, 1
    %p253 = scmp.eq.s32.totalorder %s22, 3
    %p254 = scmp.ne.s32.totalorder %s249, %s251
    %p255 = scmp.eq.s32.totalorder %s22, 0
    %p256 = por %p254, %p255
    %p257 = scmp.ne.s32.totalorder %s249, %s251
    %p258 = scmp.eq.s32.totalorder %s27, 3
    %p259 = por %p257, %p258
    %p260 = scmp.ne.s32.totalorder %s251, %s252
    %p261 = scmp.eq.s32.totalorder %s27, 0
    %p262 = por %p260, %p261
    %p263 = scmp.ne.s32.totalorder %s251, %s252
    %p264 = scmp.eq.s32.totalorder %s28, 3
    %p265 = por %p263, %p264
    %p267 = scmp.ne.s32.totalorder %s252, %s266
    %p268 = scmp.eq.s32.totalorder %s28, 0
    %p269 = por %p267, %p268
    %s270 = smul.u32 %s29, 2
    %s271 = sadd.s32 %s270, %s30
    %s272 = smul.u32 %s41, 2
    %s273 = sadd.s32 %s272, %s37
    %s274 = ssub.s32 %s271, %s273
    %p275 = scmp.eq.s32.totalorder %s274, 0
    %s277 = sadd.s32 %s276, 1
    %s278 = scalar_select %p275, %s276, %s277
    %p281 = pneg %p275
    %p282 = scmp.eq.s32.totalorder %s22, 3
    %p283 = por %p281, %p282
    %p284 = scmp.ne.s32.totalorder %s276, %s279
    %p285 = scmp.eq.s32.totalorder %s22, 0
    %p286 = por %p284, %p285
    %p287 = scmp.ne.s32.totalorder %s276, %s279
    %p288 = scmp.eq.s32.totalorder %s27, 3
    %p289 = por %p287, %p288
    %p290 = scmp.ne.s32.totalorder %s279, %s280
    %p291 = scmp.eq.s32.totalorder %s27, 0
    %p292 = por %p290, %p291
    %p293 = scmp.ne.s32.totalorder %s279, %s280
    %p294 = scmp.eq.s32.totalorder %s28, 3
    %p295 = por %p293, %p294
    %p297 = scmp.ne.s32.totalorder %s280, %s296
    %p298 = scmp.eq.s32.totalorder %s28, 0
    %p299 = por %p297, %p298
    %s300 = smul.u32 %s29, 2
    %s301 = sadd.s32 %s300, %s30
    %s302 = smul.u32 %s41, 2
    %s303 = sadd.s32 %s302, %s37
    %s304 = ssub.s32 %s301, %s303
    %p305 = scmp.eq.s32.totalorder %s304, 0
    %s307 = sadd.s32 %s306, 1
    %s308 = scalar_select %p305, %s306, %s307
    %p311 = pneg %p305
    %p312 = scmp.eq.s32.totalorder %s22, 3
    %p313 = por %p311, %p312
    %p314 = scmp.ne.s32.totalorder %s306, %s309
    %p315 = scmp.eq.s32.totalorder %s22, 0
    %p316 = por %p314, %p315
    %p317 = scmp.ne.s32.totalorder %s306, %s309
    %p318 = scmp.eq.s32.totalorder %s27, 3
    %p319 = por %p317, %p318
    %p320 = scmp.ne.s32.totalorder %s309, %s310
    %p321 = scmp.eq.s32.totalorder %s27, 0
    %p322 = por %p320, %p321
    %p323 = scmp.ne.s32.totalorder %s309, %s310
    %p324 = scmp.eq.s32.totalorder %s28, 3
    %p325 = por %p323, %p324
    %p327 = scmp.ne.s32.totalorder %s310, %s326
    %p328 = scmp.eq.s32.totalorder %s28, 0
    %p329 = por %p327, %p328
    %s330 = ssub.s32 %s29, %s41
    %p331 = scmp.eq.s32.totalorder %s330, 0
    %s333 = sadd.s32 %s332, 1
    %s334 = scalar_select %p331, %s332, %s333
    %p337 = pneg %p331
    %p338 = scmp.eq.s32.totalorder %s22, 3
    %p339 = por %p337, %p338
    %p340 = scmp.ne.s32.totalorder %s332, %s335
    %p341 = scmp.eq.s32.totalorder %s22, 0
    %p342 = por %p340, %p341
    %p343 = scmp.ne.s32.totalorder %s332, %s335
    %p344 = scmp.eq.s32.totalorder %s27, 3
    %p345 = por %p343, %p344
    %p346 = scmp.ne.s32.totalorder %s335, %s336
    %p347 = scmp.eq.s32.totalorder %s27, 0
    %p348 = por %p346, %p347
    %p349 = scmp.ne.s32.totalorder %s335, %s336
    %p350 = scmp.eq.s32.totalorder %s28, 3
    %p351 = por %p349, %p350
    %p353 = scmp.ne.s32.totalorder %s336, %s352
    %p354 = scmp.eq.s32.totalorder %s28, 0
    %p355 = por %p353, %p354
    %s356 = ssub.s32 %s29, %s41
    %p357 = scmp.eq.s32.totalorder %s356, 0
    %s359 = sadd.s32 %s358, 1
    %s360 = scalar_select %p357, %s358, %s359
    %p363 = pneg %p357
    %p364 = scmp.eq.s32.totalorder %s22, 3
    %p365 = por %p363, %p364
    %p366 = scmp.ne.s32.totalorder %s358, %s361
    %p367 = scmp.eq.s32.totalorder %s22, 0
    %p368 = por %p366, %p367
    %p369 = scmp.ne.s32.totalorder %s358, %s361
    %p370 = scmp.eq.s32.totalorder %s27, 3
    %p371 = por %p369, %p370
    %p372 = scmp.ne.s32.totalorder %s361, %s362
    %p373 = scmp.eq.s32.totalorder %s27, 0
    %p374 = por %p372, %p373
    %p375 = scmp.ne.s32.totalorder %s361, %s362
    %p376 = scmp.eq.s32.totalorder %s28, 3
    %p377 = por %p375, %p376
    %p379 = scmp.ne.s32.totalorder %s362, %s378
    %p380 = scmp.eq.s32.totalorder %s28, 0
    %p381 = por %p379, %p380
    %p382 = scmp.le.s32.totalorder 1, %s22
    %p383 = scmp.lt.s32.totalorder %s22, 5
    %p384 = pnand %p382, %p383
    %p385 = pneg %p384
    // Predicated region
    $region9: #{global_attn_forward.4} parent=5 // pred_check
      _
    $region10: #{global_attn_forward.4} parent=5 // pred_check_branch
      %387 = sbr.rel (%p384) target = $region12
    $region11: #{global_attn_forward.4} parent=5 // pred_region
      %s388 = ssub.s32 %s22, 1
      // Predicated region
      $region13: #{global_attn_forward.4} parent=11 // pred_check
        %p389 = pneg %p115
      $region14: #{global_attn_forward.4} parent=11 // pred_check_branch
        %391 = sbr.rel (%p389) target = $region16
      $region15: #{global_attn_forward.4} parent=11 // pred_region
        _
      $region16: #{global_attn_forward.4} parent=11 // pred_fallthru
        _
      // Predicated region
      $region17: #{global_attn_forward.4} parent=11 // pred_check
        %p392 = pneg %p136
      $region18: #{global_attn_forward.4} parent=11 // pred_check_branch
        %394 = sbr.rel (%p392) target = $region20
      $region19: #{global_attn_forward.4} parent=11 // pred_region
        _
      $region20: #{global_attn_forward.4} parent=11 // pred_fallthru
        _
      // Predicated region
      $region21: #{global_attn_forward.4} parent=11 // pred_check
        %p395 = pneg %p157
      $region22: #{global_attn_forward.4} parent=11 // pred_check_branch
        %397 = sbr.rel (%p395) target = $region24
      $region23: #{global_attn_forward.4} parent=11 // pred_region
        _
      $region24: #{global_attn_forward.4} parent=11 // pred_fallthru
        _
      // Predicated region
      $region25: #{global_attn_forward.4} parent=11 // pred_check
        %p398 = pneg %p178
      $region26: #{global_attn_forward.4} parent=11 // pred_check_branch
        %400 = sbr.rel (%p398) target = $region28
      $region27: #{global_attn_forward.4} parent=11 // pred_region
        _
      $region28: #{global_attn_forward.4} parent=11 // pred_fallthru
        _
      // Predicated region
      $region29: #{global_attn_forward.4} parent=11 // pred_check
        %p401 = pneg %p199
      $region30: #{global_attn_forward.4} parent=11 // pred_check_branch
        %403 = sbr.rel (%p401) target = $region32
      $region31: #{global_attn_forward.4} parent=11 // pred_region
        _
      $region32: #{global_attn_forward.4} parent=11 // pred_fallthru
        _
      // Predicated region
      $region33: #{global_attn_forward.4} parent=11 // pred_check
        %p404 = pneg %p220
      $region34: #{global_attn_forward.4} parent=11 // pred_check_branch
        %406 = sbr.rel (%p404) target = $region36
      $region35: #{global_attn_forward.4} parent=11 // pred_region
        _
      $region36: #{global_attn_forward.4} parent=11 // pred_fallthru
        _
      // Predicated region
      $region37: #{global_attn_forward.4} parent=11 // pred_check
        %p407 = pneg %p241
      $region38: #{global_attn_forward.4} parent=11 // pred_check_branch
        %409 = sbr.rel (%p407) target = $region40
      $region39: #{global_attn_forward.4} parent=11 // pred_region
        _
      $region40: #{global_attn_forward.4} parent=11 // pred_fallthru
        _
      // Predicated region
      $region41: #{global_attn_forward.4} parent=11 // pred_check
        %p410 = pneg %p262
      $region42: #{global_attn_forward.4} parent=11 // pred_check_branch
        %412 = sbr.rel (%p410) target = $region44
      $region43: #{global_attn_forward.4} parent=11 // pred_region
        _
      $region44: #{global_attn_forward.4} parent=11 // pred_fallthru
        _
    $region12: #{global_attn_forward.4} parent=5 // pred_fallthru
      _
    %p413 = scmp.lt.s32.totalorder %s22, 4
    // Predicated region
    $region45: #{global_attn_forward.4} parent=5 // pred_check
      %p414 = pneg %p413
    $region46: #{global_attn_forward.4} parent=5 // pred_check_branch
      %416 = sbr.rel (%p414) target = $region48
    $region47: #{global_attn_forward.4} parent=5 // pred_region
      // Predicated region
      $region49: #{global_attn_forward.4} parent=47 // pred_check
        %p417 = pneg %p58
      $region50: #{global_attn_forward.4} parent=47 // pred_check_branch
        %419 = sbr.rel (%p417) target = $region52
      $region51: #{global_attn_forward.4} parent=47 // pred_region
        %s420 = smul.u32 %s29, 2
        %s421 = sadd.s32 %s420, %s30
        %s422 = smul.u32 16, %s421
        %p423 = scmp.lt.s32.totalorder %s422, 63
        %s424 = scalar_select %p423, %s422, 63
        %s425 = smul.addr %s424, 4
        %s426 = scalar_lea.vmem %s1, %s425
        %s427 = smul.u32 %s29, 2
        %s428 = sadd.s32 %s427, %s30
        %s429 = smul.u32 16, %s428
      $region52: #{global_attn_forward.4} parent=47 // pred_fallthru
        _
      // Predicated region
      $region53: #{global_attn_forward.4} parent=47 // pred_check
        %p430 = pneg %p88
      $region54: #{global_attn_forward.4} parent=47 // pred_check_branch
        %432 = sbr.rel (%p430) target = $region56
      $region55: #{global_attn_forward.4} parent=47 // pred_region
        %s433 = smul.u32 %s29, 2
        %s434 = sadd.s32 %s433, %s30
        %s435 = smul.u32 16, %s434
        %p436 = scmp.lt.s32.totalorder %s435, 63
        %s437 = scalar_select %p436, %s435, 63
        %s438 = smul.addr %s437, 4
        %s439 = scalar_lea.vmem %s2, %s438
        %s440 = smul.u32 %s29, 2
        %s441 = sadd.s32 %s440, %s30
        %s442 = smul.u32 16, %s441
      $region56: #{global_attn_forward.4} parent=47 // pred_fallthru
        _
    $region48: #{global_attn_forward.4} parent=5 // pred_fallthru
      _
    %p443 = scmp.le.s32.totalorder 1, %s22
    %p444 = scmp.lt.s32.totalorder %s22, 5
    %p445 = pnand %p443, %p444
    %p446 = pneg %p445
    // Predicated region
    $region57: #{global_attn_forward.4} parent=5 // pred_check
      _
    $region58: #{global_attn_forward.4} parent=5 // pred_check_branch
      %448 = sbr.rel (%p445) target = $region60
    $region59: #{global_attn_forward.4} parent=5 // pred_region
      %s449 = ssub.s32 %s22, 1
      %s450 = smul.u32 %s31, 2
      %s451 = sadd.s32 %s450, %s32
      %s452 = smul.u32 16, %s451
      %p453 = scmp.lt.s32.totalorder %s452, 63
      %s454 = scalar_select %p453, %s452, 63
      %s455 = smul.addr %s454, 4
      %s456 = scalar_lea.vmem %s1, %s455
      %p457 = pneg %p64
      %p458 = pneg %p61
      %s459 = smul.u32 %s31, 2
      %s460 = sadd.s32 %s459, %s32
      %s461 = smul.u32 16, %s460
      %p462 = scmp.lt.s32.totalorder %s461, 63
      %s463 = scalar_select %p462, %s461, 63
      %s464 = smul.addr %s463, 4
      %s465 = scalar_lea.vmem %s2, %s464
      %p466 = pneg %p94
      %p467 = pneg %p91
      %p468 = pneg %p115
      %p469 = pneg %p112
      %p470 = pneg %p136
      %p471 = pneg %p133
      %p472 = pneg %p157
      %p473 = pneg %p154
      %p474 = pneg %p178
      %p475 = pneg %p175
      %p476 = pneg %p199
      %p477 = pneg %p196
      %p478 = pneg %p220
      %p479 = pneg %p217
      %p480 = pneg %p241
      %p481 = pneg %p238
      %p482 = pneg %p262
      %p483 = pneg %p259
      %p484 = pneg %p292
      %p485 = pneg %p289
      %s486 = smul.u32 %s31, 2
      %s487 = sadd.s32 %s486, %s32
      %s488 = smul.u32 16, %s487
      %p489 = scmp.lt.s32.totalorder %s488, 63
      %s490 = scalar_select %p489, %s488, 63
      %s491 = smul.addr %s490, 4
      %s492 = scalar_lea.vmem %s11, %s491
      %p493 = pneg %p322
      %p494 = pneg %p319
      %s495 = smul.u32 %s31, 2
      %s496 = sadd.s32 %s495, %s32
      %s497 = smul.u32 16, %s496
      %p498 = scmp.lt.s32.totalorder %s497, 63
      %s499 = scalar_select %p498, %s497, 63
      %s500 = smul.addr %s499, 4
      %s501 = scalar_lea.vmem %s12, %s500
      %p502 = pneg %p348
      %p503 = pneg %p345
      %p504 = scmp.lt.s32.totalorder %s31, 1
      %s505 = scalar_select %p504, %s31, 1
      %s506 = smul.addr %s505, 16
      %s507 = smul.addr %s506, 8
      %s508 = scalar_lea.vmem %s13, %s507
      %p509 = pneg %p374
      %p510 = pneg %p371
      %p511 = scmp.lt.s32.totalorder %s31, 1
      %s512 = scalar_select %p511, %s31, 1
      %s513 = scalar_lea.vmem %s14, %s512
      %s514 = smul.u32 %s31, 2
      %s515 = sadd.s32 %s514, %s32
      %s516 = smul.u32 16, %s515
      %p517 = scmp.lt.s32.totalorder %s516, 63
      %s518 = scalar_select %p517, %s516, 63
      %s519 = smul.addr %s518, 4
      %s520 = scalar_lea.vmem %s1, %s519
      %s521 = smul.u32 %s31, 2
      %s522 = sadd.s32 %s521, %s32
      %s523 = smul.u32 16, %s522
      %s524 = smul.u32 %s31, 2
      %s525 = sadd.s32 %s524, %s32
      %s526 = smul.u32 16, %s525
      %p527 = scmp.lt.s32.totalorder %s526, 63
      %s528 = scalar_select %p527, %s526, 63
      %s529 = smul.addr %s528, 4
      %s530 = scalar_lea.vmem %s2, %s529
      %s531 = smul.u32 %s31, 2
      %s532 = sadd.s32 %s531, %s32
      %s533 = smul.u32 16, %s532
      %s534 = smul.u32 %s31, 2
      %s535 = sadd.s32 %s534, %s32
      %s536 = smul.u32 16, %s535
      %p537 = scmp.lt.s32.totalorder %s536, 63
      %s538 = scalar_select %p537, %s536, 63
      %s539 = smul.addr %s538, 4
      %s540 = scalar_lea.vmem %s11, %s539
      %s541 = smul.u32 %s31, 2
      %s542 = sadd.s32 %s541, %s32
      %s543 = smul.u32 16, %s542
      %s544 = smul.u32 %s31, 2
      %s545 = sadd.s32 %s544, %s32
      %s546 = smul.u32 16, %s545
      %p547 = scmp.lt.s32.totalorder %s546, 63
      %s548 = scalar_select %p547, %s546, 63
      %s549 = smul.addr %s548, 4
      %s550 = scalar_lea.vmem %s12, %s549
      %s551 = smul.u32 %s31, 2
      %s552 = sadd.s32 %s551, %s32
      %s553 = smul.u32 16, %s552
      %p554 = scmp.lt.s32.totalorder %s31, 1
      %s555 = scalar_select %p554, %s31, 1
      %s556 = smul.addr %s555, 16
      %s557 = smul.addr %s556, 8
      %s558 = scalar_lea.vmem %s13, %s557
      %p559 = scmp.lt.s32.totalorder %s31, 1
      %s560 = scalar_select %p559, %s31, 1
      %s561 = scalar_lea.vmem %s14, %s560
      %v563 = vld [vmem:[%s520] sm:$0xf]
      %v564 = vld [vmem:[%s520 + $0x4] sm:$0xf]
      %v565 = vld [vmem:[%s520 + $0x8] sm:$0xf]
      %v566 = vld [vmem:[%s520 + $0xc] sm:$0xf]
      %v567 = vld [vmem:[%s520 + $0x10] sm:$0xf]
      %v568 = vld [vmem:[%s520 + $0x14] sm:$0xf]
      %v569 = vld [vmem:[%s520 + $0x18] sm:$0xf]
      %v570 = vld [vmem:[%s520 + $0x1c] sm:$0xf]
      %v571 = vld [vmem:[%s520 + $0x20] sm:$0xf]
      %v572 = vld [vmem:[%s520 + $0x24] sm:$0xf]
      %v573 = vld [vmem:[%s520 + $0x28] sm:$0xf]
      %v574 = vld [vmem:[%s520 + $0x2c] sm:$0xf]
      %v575 = vld [vmem:[%s520 + $0x30] sm:$0xf]
      %v576 = vld [vmem:[%s520 + $0x34] sm:$0xf]
      %v577 = vld [vmem:[%s520 + $0x38] sm:$0xf]
      %v578 = vld [vmem:[%s520 + $0x3c] sm:$0xf]
      %v579 = vld [vmem:[%s530] sm:$0xf]
      %v580 = vld [vmem:[%s530 + $0x4] sm:$0xf]
      %v581 = vld [vmem:[%s530 + $0x8] sm:$0xf]
      %v582 = vld [vmem:[%s530 + $0xc] sm:$0xf]
      %v583 = vld [vmem:[%s530 + $0x10] sm:$0xf]
      %v584 = vld [vmem:[%s530 + $0x14] sm:$0xf]
      %v585 = vld [vmem:[%s530 + $0x18] sm:$0xf]
      %v586 = vld [vmem:[%s530 + $0x1c] sm:$0xf]
      %v587 = vld [vmem:[%s530 + $0x20] sm:$0xf]
      %v588 = vld [vmem:[%s530 + $0x24] sm:$0xf]
      %v589 = vld [vmem:[%s530 + $0x28] sm:$0xf]
      %v590 = vld [vmem:[%s530 + $0x2c] sm:$0xf]
      %v591 = vld [vmem:[%s530 + $0x30] sm:$0xf]
      %v592 = vld [vmem:[%s530 + $0x34] sm:$0xf]
      %v593 = vld [vmem:[%s530 + $0x38] sm:$0xf]
      %v594 = vld [vmem:[%s530 + $0x3c] sm:$0xf]
      %v595 = vld [vmem:[%s3] sm:$0xff]
      %v596 = vld [vmem:[%s3 + $0x8] sm:$0xff]
      %v597 = vld [vmem:[%s3 + $0x10] sm:$0xff]
      %v598 = vld [vmem:[%s3 + $0x18] sm:$0xff]
      %v599 = vld [vmem:[%s3 + $0x20] sm:$0xff]
      %v600 = vld [vmem:[%s3 + $0x28] sm:$0xff]
      %v601 = vld [vmem:[%s3 + $0x30] sm:$0xff]
      %v602 = vld [vmem:[%s3 + $0x38] sm:$0xff]
      %v603 = vld [vmem:[%s3 + $0x40] sm:$0xff]
      %v604 = vld [vmem:[%s3 + $0x48] sm:$0xff]
      %v605 = vld [vmem:[%s3 + $0x50] sm:$0xff]
      %v606 = vld [vmem:[%s3 + $0x58] sm:$0xff]
      %v607 = vld [vmem:[%s3 + $0x60] sm:$0xff]
      %v608 = vld [vmem:[%s3 + $0x68] sm:$0xff]
      %v609 = vld [vmem:[%s3 + $0x70] sm:$0xff]
      %v610 = vld [vmem:[%s3 + $0x78] sm:$0xff]
      %v627 = vunpack.c.l.b16 %v563
      %v628 = vunpack.c.l.b16 %v564
      %v629 = vunpack.c.l.b16 %v565
      %v630 = vunpack.c.l.b16 %v566
      %v631 = vunpack.c.l.b16 %v567
      %v632 = vunpack.c.l.b16 %v568
      %v633 = vunpack.c.l.b16 %v569
      %v634 = vunpack.c.l.b16 %v570
      %v635 = vunpack.c.l.b16 %v571
      %v636 = vunpack.c.l.b16 %v572
      %v637 = vunpack.c.l.b16 %v573
      %v638 = vunpack.c.l.b16 %v574
      %v639 = vunpack.c.l.b16 %v575
      %v640 = vunpack.c.l.b16 %v576
      %v641 = vunpack.c.l.b16 %v577
      %v642 = vunpack.c.l.b16 %v578
      %v643 = vpack.c.b16 %v628, %v627
      %v644 = vpack.c.b16 %v630, %v629
      %v645 = vpack.c.b16 %v632, %v631
      %v646 = vpack.c.b16 %v634, %v633
      %v647 = vpack.c.b16 %v636, %v635
      %v648 = vpack.c.b16 %v638, %v637
      %v649 = vpack.c.b16 %v640, %v639
      %v650 = vpack.c.b16 %v642, %v641
      %v675 = vunpack.c.l.b16 %v595
      %v676 = vunpack.c.h.b16 %v595
      %v677 = vunpack.c.l.b16 %v596
      %v678 = vunpack.c.h.b16 %v596
      %v679 = vunpack.c.l.b16 %v597
      %v680 = vunpack.c.h.b16 %v597
      %v681 = vunpack.c.l.b16 %v598
      %v682 = vunpack.c.h.b16 %v598
      %v683 = vunpack.c.l.b16 %v599
      %v684 = vunpack.c.h.b16 %v599
      %v685 = vunpack.c.l.b16 %v600
      %v686 = vunpack.c.h.b16 %v600
      %v687 = vunpack.c.l.b16 %v601
      %v688 = vunpack.c.h.b16 %v601
      %v689 = vunpack.c.l.b16 %v602
      %v690 = vunpack.c.h.b16 %v602
      %v691 = vunpack.c.l.b16 %v603
      %v692 = vunpack.c.h.b16 %v603
      %v693 = vunpack.c.l.b16 %v604
      %v694 = vunpack.c.h.b16 %v604
      %v695 = vunpack.c.l.b16 %v605
      %v696 = vunpack.c.h.b16 %v605
      %v697 = vunpack.c.l.b16 %v606
      %v698 = vunpack.c.h.b16 %v606
      %v699 = vunpack.c.l.b16 %v607
      %v700 = vunpack.c.h.b16 %v607
      %v701 = vunpack.c.l.b16 %v608
      %v702 = vunpack.c.h.b16 %v608
      %v703 = vunpack.c.l.b16 %v609
      %v704 = vunpack.c.h.b16 %v609
      %v705 = vunpack.c.l.b16 %v610
      %v706 = vunpack.c.h.b16 %v610
      %v707 = vpack.c.b16 %v677, %v675
      %v708 = vpack.c.b16 %v678, %v676
      %v709 = vpack.c.b16 %v681, %v679
      %v710 = vpack.c.b16 %v682, %v680
      %v711 = vpack.c.b16 %v685, %v683
      %v712 = vpack.c.b16 %v686, %v684
      %v713 = vpack.c.b16 %v689, %v687
      %v714 = vpack.c.b16 %v690, %v688
      %v715 = vpack.c.b16 %v693, %v691
      %v716 = vpack.c.b16 %v694, %v692
      %v717 = vpack.c.b16 %v697, %v695
      %v718 = vpack.c.b16 %v698, %v696
      %v719 = vpack.c.b16 %v701, %v699
      %v720 = vpack.c.b16 %v702, %v700
      %v721 = vpack.c.b16 %v705, %v703
      %v722 = vpack.c.b16 %v706, %v704
      %739 = vmatprep.subr.bf16.mxu0 %v722
      %740 = vmatpush1.bf16.msra.mxu0 %v721
      %741 = vmatprep.subr.bf16.mxu0 %v720
      %742 = vmatpush1.bf16.msra.mxu0 %v719
      %743 = vmatprep.subr.bf16.mxu0 %v718
      %744 = vmatpush1.bf16.msra.mxu0 %v717
      %745 = vmatprep.subr.bf16.mxu0 %v716
      %746 = vmatpush1.bf16.msra.mxu0 %v715
      %747 = vmatprep.subr.bf16.mxu0 %v714
      %748 = vmatpush1.bf16.msra.mxu0 %v713
      %749 = vmatprep.subr.bf16.mxu0 %v712
      %750 = vmatpush1.bf16.msra.mxu0 %v711
      %751 = vmatprep.subr.bf16.mxu0 %v710
      %752 = vmatpush1.bf16.msra.mxu0 %v709
      %753 = vmatprep.subr.bf16.mxu0 %v708
      %754 = vmatpush1.bf16.msra.mxu0 %v707
      %755 = vmatprep.subr.bf16.mxu0 0
      %756 = vmatpush2.bf16.msra.mxu0 0
      %757 = vmatprep.subr.bf16.mxu0 0
      %758 = vmatpush2.bf16.msra.mxu0 0
      %759 = vmatprep.subr.bf16.mxu0 0
      %760 = vmatpush2.bf16.msra.mxu0 0
      %761 = vmatprep.subr.bf16.mxu0 0
      %762 = vmatpush2.bf16.msra.mxu0 0
      %763 = vmatprep.subr.bf16.mxu0 0
      %764 = vmatpush2.bf16.msra.mxu0 0
      %765 = vmatprep.subr.bf16.mxu0 0
      %766 = vmatpush2.bf16.msra.mxu0 0
      %767 = vmatprep.subr.bf16.mxu0 0
      %768 = vmatpush2.bf16.msra.mxu0 0
      %769 = vmatprep.subr.bf16.mxu0 0
      %770 = vmatpush2.bf16.msra.mxu0 0
      %771 = vmatprep.mubr.bf16.mxu0 0
      %772 = vmatmul.mubr.bf16.gmra.mxu0 %v643
      %v773 = vpop.f32.mrf.mxu0
      %v774 = vadd.f32 0.0, %v773
      %v775 = vpop.f32.mrf.mxu0
      %v776 = vadd.f32 0.0, %v775
      %v777 = vpop.f32.mrf.mxu0
      %v778 = vadd.f32 0.0, %v777
      %v779 = vpop.f32.mrf.mxu0
      %v780 = vadd.f32 0.0, %v779
      %781 = vmatprep.mubr.bf16.mxu0 0
      %782 = vmatmul.mubr.bf16.gmra.mxu0 %v644
      %v783 = vpop.f32.mrf.mxu0
      %v784 = vadd.f32 0.0, %v783
      %v785 = vpop.f32.mrf.mxu0
      %v786 = vadd.f32 0.0, %v785
      %v787 = vpop.f32.mrf.mxu0
      %v788 = vadd.f32 0.0, %v787
      %v789 = vpop.f32.mrf.mxu0
      %v790 = vadd.f32 0.0, %v789
      %791 = vmatprep.mubr.bf16.mxu0 0
      %792 = vmatmul.mubr.bf16.gmra.mxu0 %v645
      %v793 = vpop.f32.mrf.mxu0
      %v794 = vadd.f32 0.0, %v793
      %v795 = vpop.f32.mrf.mxu0
      %v796 = vadd.f32 0.0, %v795
      %v797 = vpop.f32.mrf.mxu0
      %v798 = vadd.f32 0.0, %v797
      %v799 = vpop.f32.mrf.mxu0
      %v800 = vadd.f32 0.0, %v799
      %801 = vmatprep.mubr.bf16.mxu0 0
      %802 = vmatmul.mubr.bf16.gmra.mxu0 %v646
      %v803 = vpop.f32.mrf.mxu0
      %v804 = vadd.f32 0.0, %v803
      %v805 = vpop.f32.mrf.mxu0
      %v806 = vadd.f32 0.0, %v805
      %v807 = vpop.f32.mrf.mxu0
      %v808 = vadd.f32 0.0, %v807
      %v809 = vpop.f32.mrf.mxu0
      %v810 = vadd.f32 0.0, %v809
      %811 = vmatprep.mubr.bf16.mxu0 0
      %812 = vmatmul.mubr.bf16.gmra.mxu0 %v647
      %v813 = vpop.f32.mrf.mxu0
      %v814 = vadd.f32 0.0, %v813
      %v815 = vpop.f32.mrf.mxu0
      %v816 = vadd.f32 0.0, %v815
      %v817 = vpop.f32.mrf.mxu0
      %v818 = vadd.f32 0.0, %v817
      %v819 = vpop.f32.mrf.mxu0
      %v820 = vadd.f32 0.0, %v819
      %821 = vmatprep.mubr.bf16.mxu0 0
      %822 = vmatmul.mubr.bf16.gmra.mxu0 %v648
      %v823 = vpop.f32.mrf.mxu0
      %v824 = vadd.f32 0.0, %v823
      %v825 = vpop.f32.mrf.mxu0
      %v826 = vadd.f32 0.0, %v825
      %v827 = vpop.f32.mrf.mxu0
      %v828 = vadd.f32 0.0, %v827
      %v829 = vpop.f32.mrf.mxu0
      %v830 = vadd.f32 0.0, %v829
      %831 = vmatprep.mubr.bf16.mxu0 0
      %832 = vmatmul.mubr.bf16.gmra.mxu0 %v649
      %v833 = vpop.f32.mrf.mxu0
      %v834 = vadd.f32 0.0, %v833
      %v835 = vpop.f32.mrf.mxu0
      %v836 = vadd.f32 0.0, %v835
      %v837 = vpop.f32.mrf.mxu0
      %v838 = vadd.f32 0.0, %v837
      %v839 = vpop.f32.mrf.mxu0
      %v840 = vadd.f32 0.0, %v839
      %841 = vmatprep.mubr.bf16.mxu0 0
      %842 = vmatmul.mubr.bf16.gmra.mxu0 %v650
      %v843 = vpop.f32.mrf.mxu0
      %v844 = vadd.f32 0.0, %v843
      %v845 = vpop.f32.mrf.mxu0
      %v846 = vadd.f32 0.0, %v845
      %v847 = vpop.f32.mrf.mxu0
      %v848 = vadd.f32 0.0, %v847
      %v849 = vpop.f32.mrf.mxu0
      %v850 = vadd.f32 0.0, %v849
      %851 = vdwg.mxu0
      %v852 = vrcp.pop %v776
      %v853 = vrcp.pop %v780
      %v854 = vrcp.pop %v786
      %v855 = vrcp.pop %v790
      %v856 = vrcp.pop %v796
      %v857 = vrcp.pop %v800
      %v858 = vrcp.pop %v806
      %v859 = vrcp.pop %v810
      %v860 = vrcp.pop %v816
      %v861 = vrcp.pop %v820
      %v862 = vrcp.pop %v826
      %v863 = vrcp.pop %v830
      %v864 = vrcp.pop %v836
      %v865 = vrcp.pop %v840
      %v866 = vrcp.pop %v846
      %v867 = vrcp.pop %v850
      %v868 = vmul.f32 %v774, %v852
      %v869 = vmul.f32 %v778, %v853
      %v870 = vmul.f32 %v784, %v854
      %v871 = vmul.f32 %v788, %v855
      %v872 = vmul.f32 %v794, %v856
      %v873 = vmul.f32 %v798, %v857
      %v874 = vmul.f32 %v804, %v858
      %v875 = vmul.f32 %v808, %v859
      %v876 = vmul.f32 %v814, %v860
      %v877 = vmul.f32 %v818, %v861
      %v878 = vmul.f32 %v824, %v862
      %v879 = vmul.f32 %v828, %v863
      %v880 = vmul.f32 %v834, %v864
      %v881 = vmul.f32 %v838, %v865
      %v882 = vmul.f32 %v844, %v866
      %v883 = vmul.f32 %v848, %v867
      %884 = vadd.xlane.f32.xlu0 %v868
      %v885 = vpop.xlane.xlu0 %884
      %886 = vadd.xlane.f32.xlu0 %v869
      %v887 = vpop.xlane.xlu0 %886
      %888 = vadd.xlane.f32.xlu0 %v870
      %v889 = vpop.xlane.xlu0 %888
      %890 = vadd.xlane.f32.xlu0 %v871
      %v891 = vpop.xlane.xlu0 %890
      %892 = vadd.xlane.f32.xlu0 %v872
      %v893 = vpop.xlane.xlu0 %892
      %894 = vadd.xlane.f32.xlu0 %v873
      %v895 = vpop.xlane.xlu0 %894
      %896 = vadd.xlane.f32.xlu0 %v874
      %v897 = vpop.xlane.xlu0 %896
      %898 = vadd.xlane.f32.xlu0 %v875
      %v899 = vpop.xlane.xlu0 %898
      %900 = vadd.xlane.f32.xlu0 %v876
      %v901 = vpop.xlane.xlu0 %900
      %902 = vadd.xlane.f32.xlu0 %v877
      %v903 = vpop.xlane.xlu0 %902
      %904 = vadd.xlane.f32.xlu0 %v878
      %v905 = vpop.xlane.xlu0 %904
      %906 = vadd.xlane.f32.xlu0 %v879
      %v907 = vpop.xlane.xlu0 %906
      %908 = vadd.xlane.f32.xlu0 %v880
      %v909 = vpop.xlane.xlu0 %908
      %910 = vadd.xlane.f32.xlu0 %v881
      %v911 = vpop.xlane.xlu0 %910
      %912 = vadd.xlane.f32.xlu0 %v882
      %v913 = vpop.xlane.xlu0 %912
      %914 = vadd.xlane.f32.xlu0 %v883
      %v915 = vpop.xlane.xlu0 %914
      %v916 = vrcp.pop 128.0
      %v917 = vmul.f32 %v885, %v916
      %v918 = vmul.f32 %v887, %v916
      %v919 = vmul.f32 %v889, %v916
      %v920 = vmul.f32 %v891, %v916
      %v921 = vmul.f32 %v893, %v916
      %v922 = vmul.f32 %v895, %v916
      %v923 = vmul.f32 %v897, %v916
      %v924 = vmul.f32 %v899, %v916
      %v925 = vmul.f32 %v901, %v916
      %v926 = vmul.f32 %v903, %v916
      %v927 = vmul.f32 %v905, %v916
      %v928 = vmul.f32 %v907, %v916
      %v929 = vmul.f32 %v909, %v916
      %v930 = vmul.f32 %v911, %v916
      %v931 = vmul.f32 %v913, %v916
      %v932 = vmul.f32 %v915, %v916
      %v933 = vsub.f32 %v868, %v917
      %v934 = vsub.f32 %v869, %v918
      %v935 = vsub.f32 %v870, %v919
      %v936 = vsub.f32 %v871, %v920
      %v937 = vsub.f32 %v872, %v921
      %v938 = vsub.f32 %v873, %v922
      %v939 = vsub.f32 %v874, %v923
      %v940 = vsub.f32 %v875, %v924
      %v941 = vsub.f32 %v876, %v925
      %v942 = vsub.f32 %v877, %v926
      %v943 = vsub.f32 %v878, %v927
      %v944 = vsub.f32 %v879, %v928
      %v945 = vsub.f32 %v880, %v929
      %v946 = vsub.f32 %v881, %v930
      %v947 = vsub.f32 %v882, %v931
      %v948 = vsub.f32 %v883, %v932
      %v949 = vmul.f32 %v933, %v933
      %v950 = vmul.f32 %v934, %v934
      %v951 = vmul.f32 %v935, %v935
      %v952 = vmul.f32 %v936, %v936
      %v953 = vmul.f32 %v937, %v937
      %v954 = vmul.f32 %v938, %v938
      %v955 = vmul.f32 %v939, %v939
      %v956 = vmul.f32 %v940, %v940
      %v957 = vmul.f32 %v941, %v941
      %v958 = vmul.f32 %v942, %v942
      %v959 = vmul.f32 %v943, %v943
      %v960 = vmul.f32 %v944, %v944
      %v961 = vmul.f32 %v945, %v945
      %v962 = vmul.f32 %v946, %v946
      %v963 = vmul.f32 %v947, %v947
      %v964 = vmul.f32 %v948, %v948
      %965 = vadd.xlane.f32.xlu0 %v949
      %v966 = vpop.xlane.xlu0 %965
      %967 = vadd.xlane.f32.xlu0 %v950
      %v968 = vpop.xlane.xlu0 %967
      %969 = vadd.xlane.f32.xlu0 %v951
      %v970 = vpop.xlane.xlu0 %969
      %971 = vadd.xlane.f32.xlu0 %v952
      %v972 = vpop.xlane.xlu0 %971
      %973 = vadd.xlane.f32.xlu0 %v953
      %v974 = vpop.xlane.xlu0 %973
      %975 = vadd.xlane.f32.xlu0 %v954
      %v976 = vpop.xlane.xlu0 %975
      %977 = vadd.xlane.f32.xlu0 %v955
      %v978 = vpop.xlane.xlu0 %977
      %979 = vadd.xlane.f32.xlu0 %v956
      %v980 = vpop.xlane.xlu0 %979
      %981 = vadd.xlane.f32.xlu0 %v957
      %v982 = vpop.xlane.xlu0 %981
      %983 = vadd.xlane.f32.xlu0 %v958
      %v984 = vpop.xlane.xlu0 %983
      %985 = vadd.xlane.f32.xlu0 %v959
      %v986 = vpop.xlane.xlu0 %985
      %987 = vadd.xlane.f32.xlu0 %v960
      %v988 = vpop.xlane.xlu0 %987
      %989 = vadd.xlane.f32.xlu0 %v961
      %v990 = vpop.xlane.xlu0 %989
      %991 = vadd.xlane.f32.xlu0 %v962
      %v992 = vpop.xlane.xlu0 %991
      %993 = vadd.xlane.f32.xlu0 %v963
      %v994 = vpop.xlane.xlu0 %993
      %995 = vadd.xlane.f32.xlu0 %v964
      %v996 = vpop.xlane.xlu0 %995
      %v997 = vmul.f32 %v966, %v916
      %v998 = vmul.f32 %v968, %v916
      %v999 = vmul.f32 %v970, %v916
      %v1000 = vmul.f32 %v972, %v916
      %v1001 = vmul.f32 %v974, %v916
      %v1002 = vmul.f32 %v976, %v916
      %v1003 = vmul.f32 %v978, %v916
      %v1004 = vmul.f32 %v980, %v916
      %v1005 = vmul.f32 %v982, %v916
      %v1006 = vmul.f32 %v984, %v916
      %v1007 = vmul.f32 %v986, %v916
      %v1008 = vmul.f32 %v988, %v916
      %v1009 = vmul.f32 %v990, %v916
      %v1010 = vmul.f32 %v992, %v916
      %v1011 = vmul.f32 %v994, %v916
      %v1012 = vmul.f32 %v996, %v916
      %v1013 = vadd.f32 %v997, 1e-05
      %v1014 = vadd.f32 %v998, 1e-05
      %v1015 = vadd.f32 %v999, 1e-05
      %v1016 = vadd.f32 %v1000, 1e-05
      %v1017 = vadd.f32 %v1001, 1e-05
      %v1018 = vadd.f32 %v1002, 1e-05
      %v1019 = vadd.f32 %v1003, 1e-05
      %v1020 = vadd.f32 %v1004, 1e-05
      %v1021 = vadd.f32 %v1005, 1e-05
      %v1022 = vadd.f32 %v1006, 1e-05
      %v1023 = vadd.f32 %v1007, 1e-05
      %v1024 = vadd.f32 %v1008, 1e-05
      %v1025 = vadd.f32 %v1009, 1e-05
      %v1026 = vadd.f32 %v1010, 1e-05
      %v1027 = vadd.f32 %v1011, 1e-05
      %v1028 = vadd.f32 %v1012, 1e-05
      %v1029 = vrsqrt.pop %v1013
      %v1030 = vrsqrt.pop %v1014
      %v1031 = vrsqrt.pop %v1015
      %v1032 = vrsqrt.pop %v1016
      %v1033 = vrsqrt.pop %v1017
      %v1034 = vrsqrt.pop %v1018
      %v1035 = vrsqrt.pop %v1019
      %v1036 = vrsqrt.pop %v1020
      %v1037 = vrsqrt.pop %v1021
      %v1038 = vrsqrt.pop %v1022
      %v1039 = vrsqrt.pop %v1023
      %v1040 = vrsqrt.pop %v1024
      %v1041 = vrsqrt.pop %v1025
      %v1042 = vrsqrt.pop %v1026
      %v1043 = vrsqrt.pop %v1027
      %v1044 = vrsqrt.pop %v1028
      %v1045 = vmul.f32 %v933, %v1029
      %v1046 = vmul.f32 %v934, %v1030
      %v1047 = vmul.f32 %v935, %v1031
      %v1048 = vmul.f32 %v936, %v1032
      %v1049 = vmul.f32 %v937, %v1033
      %v1050 = vmul.f32 %v938, %v1034
      %v1051 = vmul.f32 %v939, %v1035
      %v1052 = vmul.f32 %v940, %v1036
      %v1053 = vmul.f32 %v941, %v1037
      %v1054 = vmul.f32 %v942, %v1038
      %v1055 = vmul.f32 %v943, %v1039
      %v1056 = vmul.f32 %v944, %v1040
      %v1057 = vmul.f32 %v945, %v1041
      %v1058 = vmul.f32 %v946, %v1042
      %v1059 = vmul.f32 %v947, %v1043
      %v1060 = vmul.f32 %v948, %v1044
      %v1061 = vld [vmem:[%s4] sm:$0x1]
      %v1063 = vlaneseq
      %v1064 = vshrl.u32 %v1063, 7
      %v1065 = vsub.s32 0, %v1064
      %v1066 = vrot.slane %v1061, %v1065
      %v1068 = vmul.f32 %v1045, %v1066
      %v1069 = vmul.f32 %v1046, %v1066
      %v1070 = vmul.f32 %v1047, %v1066
      %v1071 = vmul.f32 %v1048, %v1066
      %v1072 = vmul.f32 %v1049, %v1066
      %v1073 = vmul.f32 %v1050, %v1066
      %v1074 = vmul.f32 %v1051, %v1066
      %v1075 = vmul.f32 %v1052, %v1066
      %v1076 = vmul.f32 %v1053, %v1066
      %v1077 = vmul.f32 %v1054, %v1066
      %v1078 = vmul.f32 %v1055, %v1066
      %v1079 = vmul.f32 %v1056, %v1066
      %v1080 = vmul.f32 %v1057, %v1066
      %v1081 = vmul.f32 %v1058, %v1066
      %v1082 = vmul.f32 %v1059, %v1066
      %v1083 = vmul.f32 %v1060, %v1066
      %v1084 = vld [vmem:[%s5] sm:$0x1]
      %v1086 = vlaneseq
      %v1087 = vshrl.u32 %v1086, 7
      %v1088 = vsub.s32 0, %v1087
      %v1089 = vrot.slane %v1084, %v1088
      %v1091 = vadd.f32 %v1068, %v1089
      %v1092 = vadd.f32 %v1069, %v1089
      %v1093 = vadd.f32 %v1070, %v1089
      %v1094 = vadd.f32 %v1071, %v1089
      %v1095 = vadd.f32 %v1072, %v1089
      %v1096 = vadd.f32 %v1073, %v1089
      %v1097 = vadd.f32 %v1074, %v1089
      %v1098 = vadd.f32 %v1075, %v1089
      %v1099 = vadd.f32 %v1076, %v1089
      %v1100 = vadd.f32 %v1077, %v1089
      %v1101 = vadd.f32 %v1078, %v1089
      %v1102 = vadd.f32 %v1079, %v1089
      %v1103 = vadd.f32 %v1080, %v1089
      %v1104 = vadd.f32 %v1081, %v1089
      %v1105 = vadd.f32 %v1082, %v1089
      %v1106 = vadd.f32 %v1083, %v1089
      %v1107 = vunpack.c.l.bf16 %v579
      %v1108 = vunpack.c.l.bf16 %v580
      %v1109 = vunpack.c.l.bf16 %v581
      %v1110 = vunpack.c.l.bf16 %v582
      %v1111 = vunpack.c.l.bf16 %v583
      %v1112 = vunpack.c.l.bf16 %v584
      %v1113 = vunpack.c.l.bf16 %v585
      %v1114 = vunpack.c.l.bf16 %v586
      %v1115 = vunpack.c.l.bf16 %v587
      %v1116 = vunpack.c.l.bf16 %v588
      %v1117 = vunpack.c.l.bf16 %v589
      %v1118 = vunpack.c.l.bf16 %v590
      %v1119 = vunpack.c.l.bf16 %v591
      %v1120 = vunpack.c.l.bf16 %v592
      %v1121 = vunpack.c.l.bf16 %v593
      %v1122 = vunpack.c.l.bf16 %v594
      %v1123 = vld [vmem:[%s6] sm:$0x1]
      %v1125 = vlaneseq
      %v1126 = vshrl.u32 %v1125, 7
      %v1127 = vsub.s32 0, %v1126
      %v1128 = vrot.slane %v1123, %v1127
      %v1130 = vadd.f32 %v1107, %v1128
      %v1131 = vadd.f32 %v1108, %v1128
      %v1132 = vadd.f32 %v1109, %v1128
      %v1133 = vadd.f32 %v1110, %v1128
      %v1134 = vadd.f32 %v1111, %v1128
      %v1135 = vadd.f32 %v1112, %v1128
      %v1136 = vadd.f32 %v1113, %v1128
      %v1137 = vadd.f32 %v1114, %v1128
      %v1138 = vadd.f32 %v1115, %v1128
      %v1139 = vadd.f32 %v1116, %v1128
      %v1140 = vadd.f32 %v1117, %v1128
      %v1141 = vadd.f32 %v1118, %v1128
      %v1142 = vadd.f32 %v1119, %v1128
      %v1143 = vadd.f32 %v1120, %v1128
      %v1144 = vadd.f32 %v1121, %v1128
      %v1145 = vadd.f32 %v1122, %v1128
      %v1146 = vmul.f32 %v1091, %v1130
      %v1147 = vmul.f32 %v1092, %v1131
      %v1148 = vmul.f32 %v1093, %v1132
      %v1149 = vmul.f32 %v1094, %v1133
      %v1150 = vmul.f32 %v1095, %v1134
      %v1151 = vmul.f32 %v1096, %v1135
      %v1152 = vmul.f32 %v1097, %v1136
      %v1153 = vmul.f32 %v1098, %v1137
      %v1154 = vmul.f32 %v1099, %v1138
      %v1155 = vmul.f32 %v1100, %v1139
      %v1156 = vmul.f32 %v1101, %v1140
      %v1157 = vmul.f32 %v1102, %v1141
      %v1158 = vmul.f32 %v1103, %v1142
      %v1159 = vmul.f32 %v1104, %v1143
      %v1160 = vmul.f32 %v1105, %v1144
      %v1161 = vmul.f32 %v1106, %v1145
      %v1162 = vpack.c.bf16 %v1147, %v1146
      %v1163 = vpack.c.bf16 %v1149, %v1148
      %v1164 = vpack.c.bf16 %v1151, %v1150
      %v1165 = vpack.c.bf16 %v1153, %v1152
      %v1166 = vpack.c.bf16 %v1155, %v1154
      %v1167 = vpack.c.bf16 %v1157, %v1156
      %v1168 = vpack.c.bf16 %v1159, %v1158
      %v1169 = vpack.c.bf16 %v1161, %v1160
      %v1170 = vld [vmem:[%s7] sm:$0xf]
      %v1171 = vld [vmem:[%s7 + $0x4] sm:$0xf]
      %v1172 = vld [vmem:[%s7 + $0x8] sm:$0xf]
      %v1173 = vld [vmem:[%s7 + $0xc] sm:$0xf]
      %v1174 = vld [vmem:[%s7 + $0x10] sm:$0xf]
      %v1175 = vld [vmem:[%s7 + $0x14] sm:$0xf]
      %v1176 = vld [vmem:[%s7 + $0x18] sm:$0xf]
      %v1177 = vld [vmem:[%s7 + $0x1c] sm:$0xf]
      %v1178 = vld [vmem:[%s7 + $0x20] sm:$0xf]
      %v1179 = vld [vmem:[%s7 + $0x24] sm:$0xf]
      %v1180 = vld [vmem:[%s7 + $0x28] sm:$0xf]
      %v1181 = vld [vmem:[%s7 + $0x2c] sm:$0xf]
      %v1182 = vld [vmem:[%s7 + $0x30] sm:$0xf]
      %v1183 = vld [vmem:[%s7 + $0x34] sm:$0xf]
      %v1184 = vld [vmem:[%s7 + $0x38] sm:$0xf]
      %v1185 = vld [vmem:[%s7 + $0x3c] sm:$0xf]
      %v1186 = vld [vmem:[%s8] sm:$0x1]
      %v1188 = vlaneseq
      %v1189 = vshrl.u32 %v1188, 7
      %v1190 = vsub.s32 0, %v1189
      %v1191 = vrot.slane %v1186, %v1190
      %v1209 = vunpack.c.l.b16 %v1170
      %v1210 = vunpack.c.l.b16 %v1171
      %v1211 = vunpack.c.l.b16 %v1172
      %v1212 = vunpack.c.l.b16 %v1173
      %v1213 = vunpack.c.l.b16 %v1174
      %v1214 = vunpack.c.l.b16 %v1175
      %v1215 = vunpack.c.l.b16 %v1176
      %v1216 = vunpack.c.l.b16 %v1177
      %v1217 = vunpack.c.l.b16 %v1178
      %v1218 = vunpack.c.l.b16 %v1179
      %v1219 = vunpack.c.l.b16 %v1180
      %v1220 = vunpack.c.l.b16 %v1181
      %v1221 = vunpack.c.l.b16 %v1182
      %v1222 = vunpack.c.l.b16 %v1183
      %v1223 = vunpack.c.l.b16 %v1184
      %v1224 = vunpack.c.l.b16 %v1185
      %v1225 = vpack.c.b16 %v1210, %v1209
      %v1226 = vpack.c.b16 %v1212, %v1211
      %v1227 = vpack.c.b16 %v1214, %v1213
      %v1228 = vpack.c.b16 %v1216, %v1215
      %v1229 = vpack.c.b16 %v1218, %v1217
      %v1230 = vpack.c.b16 %v1220, %v1219
      %v1231 = vpack.c.b16 %v1222, %v1221
      %v1232 = vpack.c.b16 %v1224, %v1223
      %1241 = vmatprep.subr.bf16.mxu0 0
      %1242 = vmatpush1.bf16.msra.mxu0 %v1232
      %1243 = vmatprep.subr.bf16.mxu0 0
      %1244 = vmatpush1.bf16.msra.mxu0 %v1231
      %1245 = vmatprep.subr.bf16.mxu0 0
      %1246 = vmatpush1.bf16.msra.mxu0 %v1230
      %1247 = vmatprep.subr.bf16.mxu0 0
      %1248 = vmatpush1.bf16.msra.mxu0 %v1229
      %1249 = vmatprep.subr.bf16.mxu0 0
      %1250 = vmatpush1.bf16.msra.mxu0 %v1228
      %1251 = vmatprep.subr.bf16.mxu0 0
      %1252 = vmatpush1.bf16.msra.mxu0 %v1227
      %1253 = vmatprep.subr.bf16.mxu0 0
      %1254 = vmatpush1.bf16.msra.mxu0 %v1226
      %1255 = vmatprep.subr.bf16.mxu0 0
      %1256 = vmatpush1.bf16.msra.mxu0 %v1225
      %1257 = vmatprep.subr.bf16.mxu0 0
      %1258 = vmatpush2.bf16.msra.mxu0 0
      %1259 = vmatprep.subr.bf16.mxu0 0
      %1260 = vmatpush2.bf16.msra.mxu0 0
      %1261 = vmatprep.subr.bf16.mxu0 0
      %1262 = vmatpush2.bf16.msra.mxu0 0
      %1263 = vmatprep.subr.bf16.mxu0 0
      %1264 = vmatpush2.bf16.msra.mxu0 0
      %1265 = vmatprep.subr.bf16.mxu0 0
      %1266 = vmatpush2.bf16.msra.mxu0 0
      %1267 = vmatprep.subr.bf16.mxu0 0
      %1268 = vmatpush2.bf16.msra.mxu0 0
      %1269 = vmatprep.subr.bf16.mxu0 0
      %1270 = vmatpush2.bf16.msra.mxu0 0
      %1271 = vmatprep.subr.bf16.mxu0 0
      %1272 = vmatpush2.bf16.msra.mxu0 0
      %1273 = vmatprep.mubr.bf16.mxu0 0
      %1274 = vmatmul.mubr.bf16.gmra.mxu0 %v1162
      %v1275 = vpop.f32.mrf.mxu0
      %v1276 = vadd.f32 %v1191, %v1275
      %v1277 = vpop.f32.mrf.mxu0
      %v1278 = vpop.f32.mrf.mxu0
      %v1279 = vadd.f32 %v1191, %v1278
      %v1280 = vpop.f32.mrf.mxu0
      %1281 = vmatprep.mubr.bf16.mxu0 0
      %1282 = vmatmul.mubr.bf16.gmra.mxu0 %v1163
      %v1283 = vpop.f32.mrf.mxu0
      %v1284 = vadd.f32 %v1191, %v1283
      %v1285 = vpop.f32.mrf.mxu0
      %v1286 = vpop.f32.mrf.mxu0
      %v1287 = vadd.f32 %v1191, %v1286
      %v1288 = vpop.f32.mrf.mxu0
      %1289 = vmatprep.mubr.bf16.mxu0 0
      %1290 = vmatmul.mubr.bf16.gmra.mxu0 %v1164
      %v1291 = vpop.f32.mrf.mxu0
      %v1292 = vadd.f32 %v1191, %v1291
      %v1293 = vpop.f32.mrf.mxu0
      %v1294 = vpop.f32.mrf.mxu0
      %v1295 = vadd.f32 %v1191, %v1294
      %v1296 = vpop.f32.mrf.mxu0
      %1297 = vmatprep.mubr.bf16.mxu0 0
      %1298 = vmatmul.mubr.bf16.gmra.mxu0 %v1165
      %v1299 = vpop.f32.mrf.mxu0
      %v1300 = vadd.f32 %v1191, %v1299
      %v1301 = vpop.f32.mrf.mxu0
      %v1302 = vpop.f32.mrf.mxu0
      %v1303 = vadd.f32 %v1191, %v1302
      %v1304 = vpop.f32.mrf.mxu0
      %1305 = vmatprep.mubr.bf16.mxu0 0
      %1306 = vmatmul.mubr.bf16.gmra.mxu0 %v1166
      %v1307 = vpop.f32.mrf.mxu0
      %v1308 = vadd.f32 %v1191, %v1307
      %v1309 = vpop.f32.mrf.mxu0
      %v1310 = vpop.f32.mrf.mxu0
      %v1311 = vadd.f32 %v1191, %v1310
      %v1312 = vpop.f32.mrf.mxu0
      %1313 = vmatprep.mubr.bf16.mxu0 0
      %1314 = vmatmul.mubr.bf16.gmra.mxu0 %v1167
      %v1315 = vpop.f32.mrf.mxu0
      %v1316 = vadd.f32 %v1191, %v1315
      %v1317 = vpop.f32.mrf.mxu0
      %v1318 = vpop.f32.mrf.mxu0
      %v1319 = vadd.f32 %v1191, %v1318
      %v1320 = vpop.f32.mrf.mxu0
      %1321 = vmatprep.mubr.bf16.mxu0 0
      %1322 = vmatmul.mubr.bf16.gmra.mxu0 %v1168
      %v1323 = vpop.f32.mrf.mxu0
      %v1324 = vadd.f32 %v1191, %v1323
      %v1325 = vpop.f32.mrf.mxu0
      %v1326 = vpop.f32.mrf.mxu0
      %v1327 = vadd.f32 %v1191, %v1326
      %v1328 = vpop.f32.mrf.mxu0
      %1329 = vmatprep.mubr.bf16.mxu0 0
      %1330 = vmatmul.mubr.bf16.gmra.mxu0 %v1169
      %v1331 = vpop.f32.mrf.mxu0
      %v1332 = vadd.f32 %v1191, %v1331
      %v1333 = vpop.f32.mrf.mxu0
      %v1334 = vpop.f32.mrf.mxu0
      %v1335 = vadd.f32 %v1191, %v1334
      %v1336 = vpop.f32.mrf.mxu0
      %1337 = vdwg.mxu0
      %v1338 = vmax.f32 %v1276, 0.0
      %v1339 = vmax.f32 %v1279, 0.0
      %v1340 = vmax.f32 %v1284, 0.0
      %v1341 = vmax.f32 %v1287, 0.0
      %v1342 = vmax.f32 %v1292, 0.0
      %v1343 = vmax.f32 %v1295, 0.0
      %v1344 = vmax.f32 %v1300, 0.0
      %v1345 = vmax.f32 %v1303, 0.0
      %v1346 = vmax.f32 %v1308, 0.0
      %v1347 = vmax.f32 %v1311, 0.0
      %v1348 = vmax.f32 %v1316, 0.0
      %v1349 = vmax.f32 %v1319, 0.0
      %v1350 = vmax.f32 %v1324, 0.0
      %v1351 = vmax.f32 %v1327, 0.0
      %v1352 = vmax.f32 %v1332, 0.0
      %v1353 = vmax.f32 %v1335, 0.0
      %v1354 = vpack.c.bf16 %v1339, %v1338
      %v1355 = vpack.c.bf16 %v1341, %v1340
      %v1356 = vpack.c.bf16 %v1343, %v1342
      %v1357 = vpack.c.bf16 %v1345, %v1344
      %v1358 = vpack.c.bf16 %v1347, %v1346
      %v1359 = vpack.c.bf16 %v1349, %v1348
      %v1360 = vpack.c.bf16 %v1351, %v1350
      %v1361 = vpack.c.bf16 %v1353, %v1352
      %p1362 = scmp.eq.s32.totalorder %s32, 0
      // Predicated region
      $region61: #{global_attn_forward.4} parent=59 // pred_check
        %p1363 = pneg %p1362
      $region62: #{global_attn_forward.4} parent=59 // pred_check_branch
        %1365 = sbr.rel (%p1363) target = $region64
      $region63: #{global_attn_forward.4} parent=59 // pred_region
        %1366 = vst [vmem:[#allocation2] sm:$0xff] 0.0
        %1367 = vst [vmem:[#allocation2 + $0x8] sm:$0xff] 0.0
        %1368 = vst [vmem:[#allocation2 + $0x10] sm:$0xff] 0.0
        %1369 = vst [vmem:[#allocation2 + $0x18] sm:$0xff] 0.0
        %1370 = vst [vmem:[#allocation2 + $0x20] sm:$0xff] 0.0
        %1371 = vst [vmem:[#allocation2 + $0x28] sm:$0xff] 0.0
        %1372 = vst [vmem:[#allocation2 + $0x30] sm:$0xff] 0.0
        %1373 = vst [vmem:[#allocation2 + $0x38] sm:$0xff] 0.0
        %1374 = vst [vmem:[#allocation2 + $0x40] sm:$0xff] 0.0
        %1375 = vst [vmem:[#allocation2 + $0x48] sm:$0xff] 0.0
        %1376 = vst [vmem:[#allocation2 + $0x50] sm:$0xff] 0.0
        %1377 = vst [vmem:[#allocation2 + $0x58] sm:$0xff] 0.0
        %1378 = vst [vmem:[#allocation2 + $0x60] sm:$0xff] 0.0
        %1379 = vst [vmem:[#allocation2 + $0x68] sm:$0xff] 0.0
        %1380 = vst [vmem:[#allocation2 + $0x70] sm:$0xff] 0.0
        %1381 = vst [vmem:[#allocation2 + $0x78] sm:$0xff] 0.0
        %1382 = vst [vmem:[#allocation3] sm:$0x1] 0.0
      $region64: #{global_attn_forward.4} parent=59 // pred_fallthru
        _
      %v1383 = vld [vmem:[%s9] sm:$0xff]
      %v1384 = vld [vmem:[%s9 + $0x8] sm:$0xf]
      %v1385 = vld [vmem:[%s9 + $0xc] sm:$0xff]
      %v1386 = vld [vmem:[%s9 + $0x14] sm:$0xf]
      %v1387 = vld [vmem:[%s9 + $0x18] sm:$0xff]
      %v1388 = vld [vmem:[%s9 + $0x20] sm:$0xf]
      %v1389 = vld [vmem:[%s9 + $0x24] sm:$0xff]
      %v1390 = vld [vmem:[%s9 + $0x2c] sm:$0xf]
      %v1391 = vld [vmem:[%s9 + $0x30] sm:$0xff]
      %v1392 = vld [vmem:[%s9 + $0x38] sm:$0xf]
      %v1393 = vld [vmem:[%s9 + $0x3c] sm:$0xff]
      %v1394 = vld [vmem:[%s9 + $0x44] sm:$0xf]
      %v1395 = vld [vmem:[%s9 + $0x48] sm:$0xff]
      %v1396 = vld [vmem:[%s9 + $0x50] sm:$0xf]
      %v1397 = vld [vmem:[%s9 + $0x54] sm:$0xff]
      %v1398 = vld [vmem:[%s9 + $0x5c] sm:$0xf]
      %v1399 = vld [vmem:[%s9 + $0x60] sm:$0xff]
      %v1400 = vld [vmem:[%s9 + $0x68] sm:$0xf]
      %v1401 = vld [vmem:[%s9 + $0x6c] sm:$0xff]
      %v1402 = vld [vmem:[%s9 + $0x74] sm:$0xf]
      %v1403 = vld [vmem:[%s9 + $0x78] sm:$0xff]
      %v1404 = vld [vmem:[%s9 + $0x80] sm:$0xf]
      %v1405 = vld [vmem:[%s9 + $0x84] sm:$0xff]
      %v1406 = vld [vmem:[%s9 + $0x8c] sm:$0xf]
      %v1407 = vld [vmem:[%s9 + $0x90] sm:$0xff]
      %v1408 = vld [vmem:[%s9 + $0x98] sm:$0xf]
      %v1409 = vld [vmem:[%s9 + $0x9c] sm:$0xff]
      %v1410 = vld [vmem:[%s9 + $0xa4] sm:$0xf]
      %v1411 = vld [vmem:[%s9 + $0xa8] sm:$0xff]
      %v1412 = vld [vmem:[%s9 + $0xb0] sm:$0xf]
      %v1413 = vld [vmem:[%s9 + $0xb4] sm:$0xff]
      %v1414 = vld [vmem:[%s9 + $0xbc] sm:$0xf]
      %v1415 = vld [vmem:[%s10] sm:$0x7]
      %v1417 = vlaneseq
      %v1418 = vshrl.u32 %v1417, 7
      %v1419 = vsub.s32 0, %v1418
      %v1420 = vrot.slane %v1415, %v1419
      %v1421 = vlaneseq
      %v1422 = vshrl.u32 %v1421, 7
      %v1423 = vsub.s32 1, %v1422
      %v1424 = vrot.slane %v1415, %v1423
      %v1425 = vlaneseq
      %v1426 = vshrl.u32 %v1425, 7
      %v1427 = vsub.s32 2, %v1426
      %v1428 = vrot.slane %v1415, %v1427
      %v1464 = vunpack.c.l.b16 %v1383
      %v1465 = vunpack.c.h.b16 %v1383
      %v1466 = vunpack.c.l.b16 %v1384
      %v1467 = vunpack.c.l.b16 %v1385
      %v1468 = vunpack.c.h.b16 %v1385
      %v1469 = vunpack.c.l.b16 %v1386
      %v1470 = vunpack.c.l.b16 %v1387
      %v1471 = vunpack.c.h.b16 %v1387
      %v1472 = vunpack.c.l.b16 %v1388
      %v1473 = vunpack.c.l.b16 %v1389
      %v1474 = vunpack.c.h.b16 %v1389
      %v1475 = vunpack.c.l.b16 %v1390
      %v1476 = vunpack.c.l.b16 %v1391
      %v1477 = vunpack.c.h.b16 %v1391
      %v1478 = vunpack.c.l.b16 %v1392
      %v1479 = vunpack.c.l.b16 %v1393
      %v1480 = vunpack.c.h.b16 %v1393
      %v1481 = vunpack.c.l.b16 %v1394
      %v1482 = vunpack.c.l.b16 %v1395
      %v1483 = vunpack.c.h.b16 %v1395
      %v1484 = vunpack.c.l.b16 %v1396
      %v1485 = vunpack.c.l.b16 %v1397
      %v1486 = vunpack.c.h.b16 %v1397
      %v1487 = vunpack.c.l.b16 %v1398
      %v1488 = vunpack.c.l.b16 %v1399
      %v1489 = vunpack.c.h.b16 %v1399
      %v1490 = vunpack.c.l.b16 %v1400
      %v1491 = vunpack.c.l.b16 %v1401
      %v1492 = vunpack.c.h.b16 %v1401
      %v1493 = vunpack.c.l.b16 %v1402
      %v1494 = vunpack.c.l.b16 %v1403
      %v1495 = vunpack.c.h.b16 %v1403
      %v1496 = vunpack.c.l.b16 %v1404
      %v1497 = vunpack.c.l.b16 %v1405
      %v1498 = vunpack.c.h.b16 %v1405
      %v1499 = vunpack.c.l.b16 %v1406
      %v1500 = vunpack.c.l.b16 %v1407
      %v1501 = vunpack.c.h.b16 %v1407
      %v1502 = vunpack.c.l.b16 %v1408
      %v1503 = vunpack.c.l.b16 %v1409
      %v1504 = vunpack.c.h.b16 %v1409
      %v1505 = vunpack.c.l.b16 %v1410
      %v1506 = vunpack.c.l.b16 %v1411
      %v1507 = vunpack.c.h.b16 %v1411
      %v1508 = vunpack.c.l.b16 %v1412
      %v1509 = vunpack.c.l.b16 %v1413
      %v1510 = vunpack.c.h.b16 %v1413
      %v1511 = vunpack.c.l.b16 %v1414
      %v1512 = vpack.c.b16 %v1467, %v1464
      %v1513 = vpack.c.b16 %v1468, %v1465
      %v1514 = vpack.c.b16 %v1469, %v1466
      %v1515 = vpack.c.b16 %v1473, %v1470
      %v1516 = vpack.c.b16 %v1474, %v1471
      %v1517 = vpack.c.b16 %v1475, %v1472
      %v1518 = vpack.c.b16 %v1479, %v1476
      %v1519 = vpack.c.b16 %v1480, %v1477
      %v1520 = vpack.c.b16 %v1481, %v1478
      %v1521 = vpack.c.b16 %v1485, %v1482
      %v1522 = vpack.c.b16 %v1486, %v1483
      %v1523 = vpack.c.b16 %v1487, %v1484
      %v1524 = vpack.c.b16 %v1491, %v1488
      %v1525 = vpack.c.b16 %v1492, %v1489
      %v1526 = vpack.c.b16 %v1493, %v1490
      %v1527 = vpack.c.b16 %v1497, %v1494
      %v1528 = vpack.c.b16 %v1498, %v1495
      %v1529 = vpack.c.b16 %v1499, %v1496
      %v1530 = vpack.c.b16 %v1503, %v1500
      %v1531 = vpack.c.b16 %v1504, %v1501
      %v1532 = vpack.c.b16 %v1505, %v1502
      %v1533 = vpack.c.b16 %v1509, %v1506
      %v1534 = vpack.c.b16 %v1510, %v1507
      %v1535 = vpack.c.b16 %v1511, %v1508
      %1560 = vmatprep.subr.bf16.mxu0 %v1534
      %1561 = vmatpush1.bf16.msra.mxu0 %v1533
      %1562 = vmatprep.subr.bf16.mxu0 %v1531
      %1563 = vmatpush1.bf16.msra.mxu0 %v1530
      %1564 = vmatprep.subr.bf16.mxu0 %v1528
      %1565 = vmatpush1.bf16.msra.mxu0 %v1527
      %1566 = vmatprep.subr.bf16.mxu0 %v1525
      %1567 = vmatpush1.bf16.msra.mxu0 %v1524
      %1568 = vmatprep.subr.bf16.mxu0 %v1522
      %1569 = vmatpush1.bf16.msra.mxu0 %v1521
      %1570 = vmatprep.subr.bf16.mxu0 %v1519
      %1571 = vmatpush1.bf16.msra.mxu0 %v1518
      %1572 = vmatprep.subr.bf16.mxu0 %v1516
      %1573 = vmatpush1.bf16.msra.mxu0 %v1515
      %1574 = vmatprep.subr.bf16.mxu0 %v1513
      %1575 = vmatpush1.bf16.msra.mxu0 %v1512
      %1576 = vmatprep.subr.bf16.mxu0 0
      %1577 = vmatpush2.bf16.msra.mxu0 0
      %1578 = vmatprep.subr.bf16.mxu0 0
      %1579 = vmatpush2.bf16.msra.mxu0 0
      %1580 = vmatprep.subr.bf16.mxu0 0
      %1581 = vmatpush2.bf16.msra.mxu0 0
      %1582 = vmatprep.subr.bf16.mxu0 0
      %1583 = vmatpush2.bf16.msra.mxu0 0
      %1584 = vmatprep.subr.bf16.mxu0 0
      %1585 = vmatpush2.bf16.msra.mxu0 0
      %1586 = vmatprep.subr.bf16.mxu0 0
      %1587 = vmatpush2.bf16.msra.mxu0 0
      %1588 = vmatprep.subr.bf16.mxu0 0
      %1589 = vmatpush2.bf16.msra.mxu0 0
      %1590 = vmatprep.subr.bf16.mxu0 0
      %1591 = vmatpush2.bf16.msra.mxu0 0
      %1592 = vmatprep.mubr.bf16.mxu0 0
      %1593 = vmatmul.mubr.bf16.gmra.mxu0 %v1354
      %v1594 = vpop.f32.mrf.mxu0
      %v1595 = vadd.f32 %v1420, %v1594
      %v1596 = vpop.f32.mrf.mxu0
      %v1597 = vadd.f32 %v1424, %v1596
      %v1598 = vpop.f32.mrf.mxu0
      %v1599 = vadd.f32 %v1420, %v1598
      %v1600 = vpop.f32.mrf.mxu0
      %v1601 = vadd.f32 %v1424, %v1600
      %1602 = vmatprep.mubr.bf16.mxu0 0
      %1603 = vmatmul.mubr.bf16.gmra.mxu0 %v1355
      %v1604 = vpop.f32.mrf.mxu0
      %v1605 = vadd.f32 %v1420, %v1604
      %v1606 = vpop.f32.mrf.mxu0
      %v1607 = vadd.f32 %v1424, %v1606
      %v1608 = vpop.f32.mrf.mxu0
      %v1609 = vadd.f32 %v1420, %v1608
      %v1610 = vpop.f32.mrf.mxu0
      %v1611 = vadd.f32 %v1424, %v1610
      %1612 = vmatprep.mubr.bf16.mxu0 0
      %1613 = vmatmul.mubr.bf16.gmra.mxu0 %v1356
      %v1614 = vpop.f32.mrf.mxu0
      %v1615 = vadd.f32 %v1420, %v1614
      %v1616 = vpop.f32.mrf.mxu0
      %v1617 = vadd.f32 %v1424, %v1616
      %v1618 = vpop.f32.mrf.mxu0
      %v1619 = vadd.f32 %v1420, %v1618
      %v1620 = vpop.f32.mrf.mxu0
      %v1621 = vadd.f32 %v1424, %v1620
      %1622 = vmatprep.mubr.bf16.mxu0 0
      %1623 = vmatmul.mubr.bf16.gmra.mxu0 %v1357
      %v1624 = vpop.f32.mrf.mxu0
      %v1625 = vadd.f32 %v1420, %v1624
      %v1626 = vpop.f32.mrf.mxu0
      %v1627 = vadd.f32 %v1424, %v1626
      %v1628 = vpop.f32.mrf.mxu0
      %v1629 = vadd.f32 %v1420, %v1628
      %v1630 = vpop.f32.mrf.mxu0
      %v1631 = vadd.f32 %v1424, %v1630
      %1632 = vmatprep.mubr.bf16.mxu0 0
      %1633 = vmatmul.mubr.bf16.gmra.mxu0 %v1358
      %v1634 = vpop.f32.mrf.mxu0
      %v1635 = vadd.f32 %v1420, %v1634
      %v1636 = vpop.f32.mrf.mxu0
      %v1637 = vadd.f32 %v1424, %v1636
      %v1638 = vpop.f32.mrf.mxu0
      %v1639 = vadd.f32 %v1420, %v1638
      %v1640 = vpop.f32.mrf.mxu0
      %v1641 = vadd.f32 %v1424, %v1640
      %1642 = vmatprep.mubr.bf16.mxu0 0
      %1643 = vmatmul.mubr.bf16.gmra.mxu0 %v1359
      %v1644 = vpop.f32.mrf.mxu0
      %v1645 = vadd.f32 %v1420, %v1644
      %v1646 = vpop.f32.mrf.mxu0
      %v1647 = vadd.f32 %v1424, %v1646
      %v1648 = vpop.f32.mrf.mxu0
      %v1649 = vadd.f32 %v1420, %v1648
      %v1650 = vpop.f32.mrf.mxu0
      %v1651 = vadd.f32 %v1424, %v1650
      %1652 = vmatprep.mubr.bf16.mxu0 0
      %1653 = vmatmul.mubr.bf16.gmra.mxu0 %v1360
      %v1654 = vpop.f32.mrf.mxu0
      %v1655 = vadd.f32 %v1420, %v1654
      %v1656 = vpop.f32.mrf.mxu0
      %v1657 = vadd.f32 %v1424, %v1656
      %v1658 = vpop.f32.mrf.mxu0
      %v1659 = vadd.f32 %v1420, %v1658
      %v1660 = vpop.f32.mrf.mxu0
      %v1661 = vadd.f32 %v1424, %v1660
      %1662 = vmatprep.mubr.bf16.mxu0 0
      %1663 = vmatmul.mubr.bf16.gmra.mxu0 %v1361
      %v1664 = vpop.f32.mrf.mxu0
      %v1665 = vadd.f32 %v1420, %v1664
      %v1666 = vpop.f32.mrf.mxu0
      %v1667 = vadd.f32 %v1424, %v1666
      %v1668 = vpop.f32.mrf.mxu0
      %v1669 = vadd.f32 %v1420, %v1668
      %v1670 = vpop.f32.mrf.mxu0
      %v1671 = vadd.f32 %v1424, %v1670
      %1672 = vdwg.mxu0
      %1673 = vmatprep.subr.bf16.mxu0 0
      %1674 = vmatpush1.bf16.msra.mxu0 %v1535
      %1675 = vmatprep.subr.bf16.mxu0 0
      %1676 = vmatpush1.bf16.msra.mxu0 %v1532
      %1677 = vmatprep.subr.bf16.mxu0 0
      %1678 = vmatpush1.bf16.msra.mxu0 %v1529
      %1679 = vmatprep.subr.bf16.mxu0 0
      %1680 = vmatpush1.bf16.msra.mxu0 %v1526
      %1681 = vmatprep.subr.bf16.mxu0 0
      %1682 = vmatpush1.bf16.msra.mxu0 %v1523
      %1683 = vmatprep.subr.bf16.mxu0 0
      %1684 = vmatpush1.bf16.msra.mxu0 %v1520
      %1685 = vmatprep.subr.bf16.mxu0 0
      %1686 = vmatpush1.bf16.msra.mxu0 %v1517
      %1687 = vmatprep.subr.bf16.mxu0 0
      %1688 = vmatpush1.bf16.msra.mxu0 %v1514
      %1689 = vmatprep.subr.bf16.mxu0 0
      %1690 = vmatpush2.bf16.msra.mxu0 0
      %1691 = vmatprep.subr.bf16.mxu0 0
      %1692 = vmatpush2.bf16.msra.mxu0 0
      %1693 = vmatprep.subr.bf16.mxu0 0
      %1694 = vmatpush2.bf16.msra.mxu0 0
      %1695 = vmatprep.subr.bf16.mxu0 0
      %1696 = vmatpush2.bf16.msra.mxu0 0
      %1697 = vmatprep.subr.bf16.mxu0 0
      %1698 = vmatpush2.bf16.msra.mxu0 0
      %1699 = vmatprep.subr.bf16.mxu0 0
      %1700 = vmatpush2.bf16.msra.mxu0 0
      %1701 = vmatprep.subr.bf16.mxu0 0
      %1702 = vmatpush2.bf16.msra.mxu0 0
      %1703 = vmatprep.subr.bf16.mxu0 0
      %1704 = vmatpush2.bf16.msra.mxu0 0
      %1705 = vmatprep.mubr.bf16.mxu0 0
      %1706 = vmatmul.mubr.bf16.gmra.mxu0 %v1354
      %v1707 = vpop.f32.mrf.mxu0
      %v1708 = vadd.f32 %v1428, %v1707
      %v1709 = vpop.f32.mrf.mxu0
      %v1710 = vpop.f32.mrf.mxu0
      %v1711 = vadd.f32 %v1428, %v1710
      %v1712 = vpop.f32.mrf.mxu0
      %1713 = vmatprep.mubr.bf16.mxu0 0
      %1714 = vmatmul.mubr.bf16.gmra.mxu0 %v1355
      %v1715 = vpop.f32.mrf.mxu0
      %v1716 = vadd.f32 %v1428, %v1715
      %v1717 = vpop.f32.mrf.mxu0
      %v1718 = vpop.f32.mrf.mxu0
      %v1719 = vadd.f32 %v1428, %v1718
      %v1720 = vpop.f32.mrf.mxu0
      %1721 = vmatprep.mubr.bf16.mxu0 0
      %1722 = vmatmul.mubr.bf16.gmra.mxu0 %v1356
      %v1723 = vpop.f32.mrf.mxu0
      %v1724 = vadd.f32 %v1428, %v1723
      %v1725 = vpop.f32.mrf.mxu0
      %v1726 = vpop.f32.mrf.mxu0
      %v1727 = vadd.f32 %v1428, %v1726
      %v1728 = vpop.f32.mrf.mxu0
      %1729 = vmatprep.mubr.bf16.mxu0 0
      %1730 = vmatmul.mubr.bf16.gmra.mxu0 %v1357
      %v1731 = vpop.f32.mrf.mxu0
      %v1732 = vadd.f32 %v1428, %v1731
      %v1733 = vpop.f32.mrf.mxu0
      %v1734 = vpop.f32.mrf.mxu0
      %v1735 = vadd.f32 %v1428, %v1734
      %v1736 = vpop.f32.mrf.mxu0
      %1737 = vmatprep.mubr.bf16.mxu0 0
      %1738 = vmatmul.mubr.bf16.gmra.mxu0 %v1358
      %v1739 = vpop.f32.mrf.mxu0
      %v1740 = vadd.f32 %v1428, %v1739
      %v1741 = vpop.f32.mrf.mxu0
      %v1742 = vpop.f32.mrf.mxu0
      %v1743 = vadd.f32 %v1428, %v1742
      %v1744 = vpop.f32.mrf.mxu0
      %1745 = vmatprep.mubr.bf16.mxu0 0
      %1746 = vmatmul.mubr.bf16.gmra.mxu0 %v1359
      %v1747 = vpop.f32.mrf.mxu0
      %v1748 = vadd.f32 %v1428, %v1747
      %v1749 = vpop.f32.mrf.mxu0
      %v1750 = vpop.f32.mrf.mxu0
      %v1751 = vadd.f32 %v1428, %v1750
      %v1752 = vpop.f32.mrf.mxu0
      %1753 = vmatprep.mubr.bf16.mxu0 0
      %1754 = vmatmul.mubr.bf16.gmra.mxu0 %v1360
      %v1755 = vpop.f32.mrf.mxu0
      %v1756 = vadd.f32 %v1428, %v1755
      %v1757 = vpop.f32.mrf.mxu0
      %v1758 = vpop.f32.mrf.mxu0
      %v1759 = vadd.f32 %v1428, %v1758
      %v1760 = vpop.f32.mrf.mxu0
      %1761 = vmatprep.mubr.bf16.mxu0 0
      %1762 = vmatmul.mubr.bf16.gmra.mxu0 %v1361
      %v1763 = vpop.f32.mrf.mxu0
      %v1764 = vadd.f32 %v1428, %v1763
      %v1765 = vpop.f32.mrf.mxu0
      %v1766 = vpop.f32.mrf.mxu0
      %v1767 = vadd.f32 %v1428, %v1766
      %v1768 = vpop.f32.mrf.mxu0
      %1769 = vdwg.mxu0
      %v1770 = vxor.u32 %v1597, 2147483648
      %v1771 = vxor.u32 %v1601, 2147483648
      %v1772 = vxor.u32 %v1607, 2147483648
      %v1773 = vxor.u32 %v1611, 2147483648
      %v1774 = vxor.u32 %v1617, 2147483648
      %v1775 = vxor.u32 %v1621, 2147483648
      %v1776 = vxor.u32 %v1627, 2147483648
      %v1777 = vxor.u32 %v1631, 2147483648
      %v1778 = vxor.u32 %v1637, 2147483648
      %v1779 = vxor.u32 %v1641, 2147483648
      %v1780 = vxor.u32 %v1647, 2147483648
      %v1781 = vxor.u32 %v1651, 2147483648
      %v1782 = vxor.u32 %v1657, 2147483648
      %v1783 = vxor.u32 %v1661, 2147483648
      %v1784 = vxor.u32 %v1667, 2147483648
      %v1785 = vxor.u32 %v1671, 2147483648
      %v1786 = vmul.f32 %v1770, 1.442695
      %v1787 = vpow.pop %v1786
      %v1788 = vmul.f32 %v1771, 1.442695
      %v1789 = vpow.pop %v1788
      %v1790 = vmul.f32 %v1772, 1.442695
      %v1791 = vpow.pop %v1790
      %v1792 = vmul.f32 %v1773, 1.442695
      %v1793 = vpow.pop %v1792
      %v1794 = vmul.f32 %v1774, 1.442695
      %v1795 = vpow.pop %v1794
      %v1796 = vmul.f32 %v1775, 1.442695
      %v1797 = vpow.pop %v1796
      %v1798 = vmul.f32 %v1776, 1.442695
      %v1799 = vpow.pop %v1798
      %v1800 = vmul.f32 %v1777, 1.442695
      %v1801 = vpow.pop %v1800
      %v1802 = vmul.f32 %v1778, 1.442695
      %v1803 = vpow.pop %v1802
      %v1804 = vmul.f32 %v1779, 1.442695
      %v1805 = vpow.pop %v1804
      %v1806 = vmul.f32 %v1780, 1.442695
      %v1807 = vpow.pop %v1806
      %v1808 = vmul.f32 %v1781, 1.442695
      %v1809 = vpow.pop %v1808
      %v1810 = vmul.f32 %v1782, 1.442695
      %v1811 = vpow.pop %v1810
      %v1812 = vmul.f32 %v1783, 1.442695
      %v1813 = vpow.pop %v1812
      %v1814 = vmul.f32 %v1784, 1.442695
      %v1815 = vpow.pop %v1814
      %v1816 = vmul.f32 %v1785, 1.442695
      %v1817 = vpow.pop %v1816
      %v1818 = vadd.f32 %v1787, 1.0
      %v1819 = vadd.f32 %v1789, 1.0
      %v1820 = vadd.f32 %v1791, 1.0
      %v1821 = vadd.f32 %v1793, 1.0
      %v1822 = vadd.f32 %v1795, 1.0
      %v1823 = vadd.f32 %v1797, 1.0
      %v1824 = vadd.f32 %v1799, 1.0
      %v1825 = vadd.f32 %v1801, 1.0
      %v1826 = vadd.f32 %v1803, 1.0
      %v1827 = vadd.f32 %v1805, 1.0
      %v1828 = vadd.f32 %v1807, 1.0
      %v1829 = vadd.f32 %v1809, 1.0
      %v1830 = vadd.f32 %v1811, 1.0
      %v1831 = vadd.f32 %v1813, 1.0
      %v1832 = vadd.f32 %v1815, 1.0
      %v1833 = vadd.f32 %v1817, 1.0
      %v1834 = vrcp.pop %v1818
      %v1835 = vmul.f32 1.0, %v1834
      %v1836 = vrcp.pop %v1819
      %v1837 = vmul.f32 1.0, %v1836
      %v1838 = vrcp.pop %v1820
      %v1839 = vmul.f32 1.0, %v1838
      %v1840 = vrcp.pop %v1821
      %v1841 = vmul.f32 1.0, %v1840
      %v1842 = vrcp.pop %v1822
      %v1843 = vmul.f32 1.0, %v1842
      %v1844 = vrcp.pop %v1823
      %v1845 = vmul.f32 1.0, %v1844
      %v1846 = vrcp.pop %v1824
      %v1847 = vmul.f32 1.0, %v1846
      %v1848 = vrcp.pop %v1825
      %v1849 = vmul.f32 1.0, %v1848
      %v1850 = vrcp.pop %v1826
      %v1851 = vmul.f32 1.0, %v1850
      %v1852 = vrcp.pop %v1827
      %v1853 = vmul.f32 1.0, %v1852
      %v1854 = vrcp.pop %v1828
      %v1855 = vmul.f32 1.0, %v1854
      %v1856 = vrcp.pop %v1829
      %v1857 = vmul.f32 1.0, %v1856
      %v1858 = vrcp.pop %v1830
      %v1859 = vmul.f32 1.0, %v1858
      %v1860 = vrcp.pop %v1831
      %v1861 = vmul.f32 1.0, %v1860
      %v1862 = vrcp.pop %v1832
      %v1863 = vmul.f32 1.0, %v1862
      %v1864 = vrcp.pop %v1833
      %v1865 = vmul.f32 1.0, %v1864
      %v1866 = vpack.c.bf16 %v1837, %v1835
      %v1867 = vpack.c.bf16 %v1841, %v1839
      %v1868 = vpack.c.bf16 %v1845, %v1843
      %v1869 = vpack.c.bf16 %v1849, %v1847
      %v1870 = vpack.c.bf16 %v1853, %v1851
      %v1871 = vpack.c.bf16 %v1857, %v1855
      %v1872 = vpack.c.bf16 %v1861, %v1859
      %v1873 = vpack.c.bf16 %v1865, %v1863
      %v1874 = vpack.c.bf16 %v1711, %v1708
      %v1875 = vpack.c.bf16 %v1719, %v1716
      %v1876 = vpack.c.bf16 %v1727, %v1724
      %v1877 = vpack.c.bf16 %v1735, %v1732
      %v1878 = vpack.c.bf16 %v1743, %v1740
      %v1879 = vpack.c.bf16 %v1751, %v1748
      %v1880 = vpack.c.bf16 %v1759, %v1756
      %v1881 = vpack.c.bf16 %v1767, %v1764
      %v1882 = vpack.c.bf16 %v1599, %v1595
      %v1883 = vpack.c.bf16 %v1609, %v1605
      %v1884 = vpack.c.bf16 %v1619, %v1615
      %v1885 = vpack.c.bf16 %v1629, %v1625
      %v1886 = vpack.c.bf16 %v1639, %v1635
      %v1887 = vpack.c.bf16 %v1649, %v1645
      %v1888 = vpack.c.bf16 %v1659, %v1655
      %v1889 = vpack.c.bf16 %v1669, %v1665
      %v1898 = vunpack.c.l.b16 %v1882
      %v1899 = vunpack.c.h.b16 %v1882
      %v1900 = vunpack.c.l.b16 %v1883
      %v1901 = vunpack.c.h.b16 %v1883
      %v1902 = vunpack.c.l.b16 %v1884
      %v1903 = vunpack.c.h.b16 %v1884
      %v1904 = vunpack.c.l.b16 %v1885
      %v1905 = vunpack.c.h.b16 %v1885
      %v1906 = vunpack.c.l.b16 %v1886
      %v1907 = vunpack.c.h.b16 %v1886
      %v1908 = vunpack.c.l.b16 %v1887
      %v1909 = vunpack.c.h.b16 %v1887
      %v1910 = vunpack.c.l.b16 %v1888
      %v1911 = vunpack.c.h.b16 %v1888
      %v1912 = vunpack.c.l.b16 %v1889
      %v1913 = vunpack.c.h.b16 %v1889
      %v1914 = vpack.c.b16 %v1898, %v1898
      %v1915 = vpack.c.b16 %v1899, %v1899
      %v1916 = vpack.c.b16 %v1900, %v1900
      %v1917 = vpack.c.b16 %v1901, %v1901
      %v1918 = vpack.c.b16 %v1902, %v1902
      %v1919 = vpack.c.b16 %v1903, %v1903
      %v1920 = vpack.c.b16 %v1904, %v1904
      %v1921 = vpack.c.b16 %v1905, %v1905
      %v1922 = vpack.c.b16 %v1906, %v1906
      %v1923 = vpack.c.b16 %v1907, %v1907
      %v1924 = vpack.c.b16 %v1908, %v1908
      %v1925 = vpack.c.b16 %v1909, %v1909
      %v1926 = vpack.c.b16 %v1910, %v1910
      %v1927 = vpack.c.b16 %v1911, %v1911
      %v1928 = vpack.c.b16 %v1912, %v1912
      %v1929 = vpack.c.b16 %v1913, %v1913
      %1946 = vst [vmem:[%s540] sm:$0xf] %v1914
      %1947 = vst [vmem:[%s540 + $0x4] sm:$0xf] %v1915
      %1948 = vst [vmem:[%s540 + $0x8] sm:$0xf] %v1916
      %1949 = vst [vmem:[%s540 + $0xc] sm:$0xf] %v1917
      %1950 = vst [vmem:[%s540 + $0x10] sm:$0xf] %v1918
      %1951 = vst [vmem:[%s540 + $0x14] sm:$0xf] %v1919
      %1952 = vst [vmem:[%s540 + $0x18] sm:$0xf] %v1920
      %1953 = vst [vmem:[%s540 + $0x1c] sm:$0xf] %v1921
      %1954 = vst [vmem:[%s540 + $0x20] sm:$0xf] %v1922
      %1955 = vst [vmem:[%s540 + $0x24] sm:$0xf] %v1923
      %1956 = vst [vmem:[%s540 + $0x28] sm:$0xf] %v1924
      %1957 = vst [vmem:[%s540 + $0x2c] sm:$0xf] %v1925
      %1958 = vst [vmem:[%s540 + $0x30] sm:$0xf] %v1926
      %1959 = vst [vmem:[%s540 + $0x34] sm:$0xf] %v1927
      %1960 = vst [vmem:[%s540 + $0x38] sm:$0xf] %v1928
      %1961 = vst [vmem:[%s540 + $0x3c] sm:$0xf] %v1929
      %v1970 = vunpack.c.l.b16 %v1866
      %v1971 = vunpack.c.h.b16 %v1866
      %v1972 = vunpack.c.l.b16 %v1867
      %v1973 = vunpack.c.h.b16 %v1867
      %v1974 = vunpack.c.l.b16 %v1868
      %v1975 = vunpack.c.h.b16 %v1868
      %v1976 = vunpack.c.l.b16 %v1869
      %v1977 = vunpack.c.h.b16 %v1869
      %v1978 = vunpack.c.l.b16 %v1870
      %v1979 = vunpack.c.h.b16 %v1870
      %v1980 = vunpack.c.l.b16 %v1871
      %v1981 = vunpack.c.h.b16 %v1871
      %v1982 = vunpack.c.l.b16 %v1872
      %v1983 = vunpack.c.h.b16 %v1872
      %v1984 = vunpack.c.l.b16 %v1873
      %v1985 = vunpack.c.h.b16 %v1873
      %v1986 = vpack.c.b16 %v1970, %v1970
      %v1987 = vpack.c.b16 %v1971, %v1971
      %v1988 = vpack.c.b16 %v1972, %v1972
      %v1989 = vpack.c.b16 %v1973, %v1973
      %v1990 = vpack.c.b16 %v1974, %v1974
      %v1991 = vpack.c.b16 %v1975, %v1975
      %v1992 = vpack.c.b16 %v1976, %v1976
      %v1993 = vpack.c.b16 %v1977, %v1977
      %v1994 = vpack.c.b16 %v1978, %v1978
      %v1995 = vpack.c.b16 %v1979, %v1979
      %v1996 = vpack.c.b16 %v1980, %v1980
      %v1997 = vpack.c.b16 %v1981, %v1981
      %v1998 = vpack.c.b16 %v1982, %v1982
      %v1999 = vpack.c.b16 %v1983, %v1983
      %v2000 = vpack.c.b16 %v1984, %v1984
      %v2001 = vpack.c.b16 %v1985, %v1985
      %2018 = vst [vmem:[%s550] sm:$0xf] %v1986
      %2019 = vst [vmem:[%s550 + $0x4] sm:$0xf] %v1987
      %2020 = vst [vmem:[%s550 + $0x8] sm:$0xf] %v1988
      %2021 = vst [vmem:[%s550 + $0xc] sm:$0xf] %v1989
      %2022 = vst [vmem:[%s550 + $0x10] sm:$0xf] %v1990
      %2023 = vst [vmem:[%s550 + $0x14] sm:$0xf] %v1991
      %2024 = vst [vmem:[%s550 + $0x18] sm:$0xf] %v1992
      %2025 = vst [vmem:[%s550 + $0x1c] sm:$0xf] %v1993
      %2026 = vst [vmem:[%s550 + $0x20] sm:$0xf] %v1994
      %2027 = vst [vmem:[%s550 + $0x24] sm:$0xf] %v1995
      %2028 = vst [vmem:[%s550 + $0x28] sm:$0xf] %v1996
      %2029 = vst [vmem:[%s550 + $0x2c] sm:$0xf] %v1997
      %2030 = vst [vmem:[%s550 + $0x30] sm:$0xf] %v1998
      %2031 = vst [vmem:[%s550 + $0x34] sm:$0xf] %v1999
      %2032 = vst [vmem:[%s550 + $0x38] sm:$0xf] %v2000
      %2033 = vst [vmem:[%s550 + $0x3c] sm:$0xf] %v2001
      %s2034 = smul.u32 %s31, 2
      %s2035 = sadd.s32 %s2034, %s32
      %s2036 = smul.u32 %s2035, 128
      %v2037 = vlaneseq
      %v2038 = vshrl.u32 %v2037, 7
      %v2039 = vadd.s32 %v2038, 8
      %v2040 = vadd.s32 %v2038, 16
      %v2041 = vadd.s32 %v2038, 24
      %v2042 = vadd.s32 %v2038, 32
      %v2043 = vadd.s32 %v2038, 40
      %v2044 = vadd.s32 %v2038, 48
      %v2045 = vadd.s32 %v2038, 56
      %v2046 = vadd.s32 %v2038, 64
      %v2047 = vadd.s32 %v2038, 72
      %v2048 = vadd.s32 %v2038, 80
      %v2049 = vadd.s32 %v2038, 88
      %v2050 = vadd.s32 %v2038, 96
      %v2051 = vadd.s32 %v2038, 104
      %v2052 = vadd.s32 %v2038, 112
      %v2053 = vadd.s32 %v2038, 120
      %v2054 = vstv %s2036
      %v2055 = vadd.s32 %v2054, %v2038
      %v2056 = vadd.s32 %v2054, %v2039
      %v2057 = vadd.s32 %v2054, %v2040
      %v2058 = vadd.s32 %v2054, %v2041
      %v2059 = vadd.s32 %v2054, %v2042
      %v2060 = vadd.s32 %v2054, %v2043
      %v2061 = vadd.s32 %v2054, %v2044
      %v2062 = vadd.s32 %v2054, %v2045
      %v2063 = vadd.s32 %v2054, %v2046
      %v2064 = vadd.s32 %v2054, %v2047
      %v2065 = vadd.s32 %v2054, %v2048
      %v2066 = vadd.s32 %v2054, %v2049
      %v2067 = vadd.s32 %v2054, %v2050
      %v2068 = vadd.s32 %v2054, %v2051
      %v2069 = vadd.s32 %v2054, %v2052
      %v2070 = vadd.s32 %v2054, %v2053
      %s2071 = sld [smem:[#allocation5]]
      %v2072 = vstv %s2071
      %vm2073 = vcmp.lt.s32.totalorder %v2055, %v2072
      %vm2074 = vcmp.lt.s32.totalorder %v2056, %v2072
      %vm2075 = vcmp.lt.s32.totalorder %v2057, %v2072
      %vm2076 = vcmp.lt.s32.totalorder %v2058, %v2072
      %vm2077 = vcmp.lt.s32.totalorder %v2059, %v2072
      %vm2078 = vcmp.lt.s32.totalorder %v2060, %v2072
      %vm2079 = vcmp.lt.s32.totalorder %v2061, %v2072
      %vm2080 = vcmp.lt.s32.totalorder %v2062, %v2072
      %vm2081 = vcmp.lt.s32.totalorder %v2063, %v2072
      %vm2082 = vcmp.lt.s32.totalorder %v2064, %v2072
      %vm2083 = vcmp.lt.s32.totalorder %v2065, %v2072
      %vm2084 = vcmp.lt.s32.totalorder %v2066, %v2072
      %vm2085 = vcmp.lt.s32.totalorder %v2067, %v2072
      %vm2086 = vcmp.lt.s32.totalorder %v2068, %v2072
      %vm2087 = vcmp.lt.s32.totalorder %v2069, %v2072
      %vm2088 = vcmp.lt.s32.totalorder %v2070, %v2072
      %v2089 = vsel %vm2073, 1, 0
      %v2090 = vsel %vm2074, 1, 0
      %v2091 = vsel %vm2075, 1, 0
      %v2092 = vsel %vm2076, 1, 0
      %v2093 = vsel %vm2077, 1, 0
      %v2094 = vsel %vm2078, 1, 0
      %v2095 = vsel %vm2079, 1, 0
      %v2096 = vsel %vm2080, 1, 0
      %v2097 = vsel %vm2081, 1, 0
      %v2098 = vsel %vm2082, 1, 0
      %v2099 = vsel %vm2083, 1, 0
      %v2100 = vsel %vm2084, 1, 0
      %v2101 = vsel %vm2085, 1, 0
      %v2102 = vsel %vm2086, 1, 0
      %v2103 = vsel %vm2087, 1, 0
      %v2104 = vsel %vm2088, 1, 0
      %v2105 = vcvt.s32.f32 %v2089
      %v2106 = vcvt.s32.f32 %v2090
      %v2107 = vcvt.s32.f32 %v2091
      %v2108 = vcvt.s32.f32 %v2092
      %v2109 = vcvt.s32.f32 %v2093
      %v2110 = vcvt.s32.f32 %v2094
      %v2111 = vcvt.s32.f32 %v2095
      %v2112 = vcvt.s32.f32 %v2096
      %v2113 = vcvt.s32.f32 %v2097
      %v2114 = vcvt.s32.f32 %v2098
      %v2115 = vcvt.s32.f32 %v2099
      %v2116 = vcvt.s32.f32 %v2100
      %v2117 = vcvt.s32.f32 %v2101
      %v2118 = vcvt.s32.f32 %v2102
      %v2119 = vcvt.s32.f32 %v2103
      %v2120 = vcvt.s32.f32 %v2104
      %v2121 = vpack.c.bf16 %v2106, %v2105
      %v2122 = vpack.c.bf16 %v2108, %v2107
      %v2123 = vpack.c.bf16 %v2110, %v2109
      %v2124 = vpack.c.bf16 %v2112, %v2111
      %v2125 = vpack.c.bf16 %v2114, %v2113
      %v2126 = vpack.c.bf16 %v2116, %v2115
      %v2127 = vpack.c.bf16 %v2118, %v2117
      %v2128 = vpack.c.bf16 %v2120, %v2119
      %v2129 = vmul.bf16 %v1866, %v2121
      %v2130 = vmul.bf16 %v1867, %v2122
      %v2131 = vmul.bf16 %v1868, %v2123
      %v2132 = vmul.bf16 %v1869, %v2124
      %v2133 = vmul.bf16 %v1870, %v2125
      %v2134 = vmul.bf16 %v1871, %v2126
      %v2135 = vmul.bf16 %v1872, %v2127
      %v2136 = vmul.bf16 %v1873, %v2128
      %v2137 = vld [vmem:[#allocation2] sm:$0xff]
      %v2138 = vld [vmem:[#allocation2 + $0x8] sm:$0xff]
      %v2139 = vld [vmem:[#allocation2 + $0x10] sm:$0xff]
      %v2140 = vld [vmem:[#allocation2 + $0x18] sm:$0xff]
      %v2141 = vld [vmem:[#allocation2 + $0x20] sm:$0xff]
      %v2142 = vld [vmem:[#allocation2 + $0x28] sm:$0xff]
      %v2143 = vld [vmem:[#allocation2 + $0x30] sm:$0xff]
      %v2144 = vld [vmem:[#allocation2 + $0x38] sm:$0xff]
      %v2145 = vld [vmem:[#allocation2 + $0x40] sm:$0xff]
      %v2146 = vld [vmem:[#allocation2 + $0x48] sm:$0xff]
      %v2147 = vld [vmem:[#allocation2 + $0x50] sm:$0xff]
      %v2148 = vld [vmem:[#allocation2 + $0x58] sm:$0xff]
      %v2149 = vld [vmem:[#allocation2 + $0x60] sm:$0xff]
      %v2150 = vld [vmem:[#allocation2 + $0x68] sm:$0xff]
      %v2151 = vld [vmem:[#allocation2 + $0x70] sm:$0xff]
      %v2152 = vld [vmem:[#allocation2 + $0x78] sm:$0xff]
      %2153 = vxpose.xlu0.c.b16.start [1/8] %v2129, 128
      %2154 = vxpose.xlu0.c.b16.cont [2/8] %v2130, 128
      %2155 = vxpose.xlu0.c.b16.cont [3/8] %v2131, 128
      %2156 = vxpose.xlu0.c.b16.cont [4/8] %v2132, 128
      %2157 = vxpose.xlu0.c.b16.cont [5/8] %v2133, 128
      %2158 = vxpose.xlu0.c.b16.cont [6/8] %v2134, 128
      %2159 = vxpose.xlu0.c.b16.cont [7/8] %v2135, 128
      %2160 = vxpose.xlu0.c.b16.end [8/8] %v2136, 128
      %v2161 = vpop.trf.xlu0
      %v2162 = vpop.trf.xlu0
      %v2163 = vpop.trf.xlu0
      %v2164 = vpop.trf.xlu0
      %v2165 = vpop.trf.xlu0
      %v2166 = vpop.trf.xlu0
      %v2167 = vpop.trf.xlu0
      %v2168 = vpop.trf.xlu0
      %2169 = vmatprep.subr.bf16.mxu0 0
      %2170 = vmatpush1.bf16.msra.mxu0 %v1881
      %2171 = vmatprep.subr.bf16.mxu0 0
      %2172 = vmatpush1.bf16.msra.mxu0 %v1880
      %2173 = vmatprep.subr.bf16.mxu0 0
      %2174 = vmatpush1.bf16.msra.mxu0 %v1879
      %2175 = vmatprep.subr.bf16.mxu0 0
      %2176 = vmatpush1.bf16.msra.mxu0 %v1878
      %2177 = vmatprep.subr.bf16.mxu0 0
      %2178 = vmatpush1.bf16.msra.mxu0 %v1877
      %2179 = vmatprep.subr.bf16.mxu0 0
      %2180 = vmatpush1.bf16.msra.mxu0 %v1876
      %2181 = vmatprep.subr.bf16.mxu0 0
      %2182 = vmatpush1.bf16.msra.mxu0 %v1875
      %2183 = vmatprep.subr.bf16.mxu0 0
      %2184 = vmatpush1.bf16.msra.mxu0 %v1874
      %2185 = vmatprep.subr.bf16.mxu0 0
      %2186 = vmatpush2.bf16.msra.mxu0 0
      %2187 = vmatprep.subr.bf16.mxu0 0
      %2188 = vmatpush2.bf16.msra.mxu0 0
      %2189 = vmatprep.subr.bf16.mxu0 0
      %2190 = vmatpush2.bf16.msra.mxu0 0
      %2191 = vmatprep.subr.bf16.mxu0 0
      %2192 = vmatpush2.bf16.msra.mxu0 0
      %2193 = vmatprep.subr.bf16.mxu0 0
      %2194 = vmatpush2.bf16.msra.mxu0 0
      %2195 = vmatprep.subr.bf16.mxu0 0
      %2196 = vmatpush2.bf16.msra.mxu0 0
      %2197 = vmatprep.subr.bf16.mxu0 0
      %2198 = vmatpush2.bf16.msra.mxu0 0
      %2199 = vmatprep.subr.bf16.mxu0 0
      %2200 = vmatpush2.bf16.msra.mxu0 0
      %2201 = vmatprep.mubr.bf16.mxu0 0
      %2202 = vmatmul.mubr.bf16.gmra.mxu0 %v2161
      %v2203 = vpop.f32.mrf.mxu0
      %v2204 = vadd.f32 0.0, %v2203
      %v2205 = vpop.f32.mrf.mxu0
      %v2206 = vpop.f32.mrf.mxu0
      %v2207 = vadd.f32 0.0, %v2206
      %v2208 = vpop.f32.mrf.mxu0
      %2209 = vmatprep.mubr.bf16.mxu0 0
      %2210 = vmatmul.mubr.bf16.gmra.mxu0 %v2162
      %v2211 = vpop.f32.mrf.mxu0
      %v2212 = vadd.f32 0.0, %v2211
      %v2213 = vpop.f32.mrf.mxu0
      %v2214 = vpop.f32.mrf.mxu0
      %v2215 = vadd.f32 0.0, %v2214
      %v2216 = vpop.f32.mrf.mxu0
      %2217 = vmatprep.mubr.bf16.mxu0 0
      %2218 = vmatmul.mubr.bf16.gmra.mxu0 %v2163
      %v2219 = vpop.f32.mrf.mxu0
      %v2220 = vadd.f32 0.0, %v2219
      %v2221 = vpop.f32.mrf.mxu0
      %v2222 = vpop.f32.mrf.mxu0
      %v2223 = vadd.f32 0.0, %v2222
      %v2224 = vpop.f32.mrf.mxu0
      %2225 = vmatprep.mubr.bf16.mxu0 0
      %2226 = vmatmul.mubr.bf16.gmra.mxu0 %v2164
      %v2227 = vpop.f32.mrf.mxu0
      %v2228 = vadd.f32 0.0, %v2227
      %v2229 = vpop.f32.mrf.mxu0
      %v2230 = vpop.f32.mrf.mxu0
      %v2231 = vadd.f32 0.0, %v2230
      %v2232 = vpop.f32.mrf.mxu0
      %2233 = vmatprep.mubr.bf16.mxu0 0
      %2234 = vmatmul.mubr.bf16.gmra.mxu0 %v2165
      %v2235 = vpop.f32.mrf.mxu0
      %v2236 = vadd.f32 0.0, %v2235
      %v2237 = vpop.f32.mrf.mxu0
      %v2238 = vpop.f32.mrf.mxu0
      %v2239 = vadd.f32 0.0, %v2238
      %v2240 = vpop.f32.mrf.mxu0
      %2241 = vmatprep.mubr.bf16.mxu0 0
      %2242 = vmatmul.mubr.bf16.gmra.mxu0 %v2166
      %v2243 = vpop.f32.mrf.mxu0
      %v2244 = vadd.f32 0.0, %v2243
      %v2245 = vpop.f32.mrf.mxu0
      %v2246 = vpop.f32.mrf.mxu0
      %v2247 = vadd.f32 0.0, %v2246
      %v2248 = vpop.f32.mrf.mxu0
      %2249 = vmatprep.mubr.bf16.mxu0 0
      %2250 = vmatmul.mubr.bf16.gmra.mxu0 %v2167
      %v2251 = vpop.f32.mrf.mxu0
      %v2252 = vadd.f32 0.0, %v2251
      %v2253 = vpop.f32.mrf.mxu0
      %v2254 = vpop.f32.mrf.mxu0
      %v2255 = vadd.f32 0.0, %v2254
      %v2256 = vpop.f32.mrf.mxu0
      %2257 = vmatprep.mubr.bf16.mxu0 0
      %2258 = vmatmul.mubr.bf16.gmra.mxu0 %v2168
      %v2259 = vpop.f32.mrf.mxu0
      %v2260 = vadd.f32 0.0, %v2259
      %v2261 = vpop.f32.mrf.mxu0
      %v2262 = vpop.f32.mrf.mxu0
      %v2263 = vadd.f32 0.0, %v2262
      %v2264 = vpop.f32.mrf.mxu0
      %2265 = vdwg.mxu0
      %v2266 = vadd.f32 %v2137, %v2204
      %v2267 = vadd.f32 %v2138, %v2207
      %v2268 = vadd.f32 %v2139, %v2212
      %v2269 = vadd.f32 %v2140, %v2215
      %v2270 = vadd.f32 %v2141, %v2220
      %v2271 = vadd.f32 %v2142, %v2223
      %v2272 = vadd.f32 %v2143, %v2228
      %v2273 = vadd.f32 %v2144, %v2231
      %v2274 = vadd.f32 %v2145, %v2236
      %v2275 = vadd.f32 %v2146, %v2239
      %v2276 = vadd.f32 %v2147, %v2244
      %v2277 = vadd.f32 %v2148, %v2247
      %v2278 = vadd.f32 %v2149, %v2252
      %v2279 = vadd.f32 %v2150, %v2255
      %v2280 = vadd.f32 %v2151, %v2260
      %v2281 = vadd.f32 %v2152, %v2263
      %2282 = vst [vmem:[#allocation2] sm:$0xff] %v2266
      %2283 = vst [vmem:[#allocation2 + $0x8] sm:$0xff] %v2267
      %2284 = vst [vmem:[#allocation2 + $0x10] sm:$0xff] %v2268
      %2285 = vst [vmem:[#allocation2 + $0x18] sm:$0xff] %v2269
      %2286 = vst [vmem:[#allocation2 + $0x20] sm:$0xff] %v2270
      %2287 = vst [vmem:[#allocation2 + $0x28] sm:$0xff] %v2271
      %2288 = vst [vmem:[#allocation2 + $0x30] sm:$0xff] %v2272
      %2289 = vst [vmem:[#allocation2 + $0x38] sm:$0xff] %v2273
      %2290 = vst [vmem:[#allocation2 + $0x40] sm:$0xff] %v2274
      %2291 = vst [vmem:[#allocation2 + $0x48] sm:$0xff] %v2275
      %2292 = vst [vmem:[#allocation2 + $0x50] sm:$0xff] %v2276
      %2293 = vst [vmem:[#allocation2 + $0x58] sm:$0xff] %v2277
      %2294 = vst [vmem:[#allocation2 + $0x60] sm:$0xff] %v2278
      %2295 = vst [vmem:[#allocation2 + $0x68] sm:$0xff] %v2279
      %2296 = vst [vmem:[#allocation2 + $0x70] sm:$0xff] %v2280
      %2297 = vst [vmem:[#allocation2 + $0x78] sm:$0xff] %v2281
      %v2298 = vld [vmem:[#allocation3] sm:$0x1]
      %v2299 = vunpack.c.l.bf16 %v2129
      %v2300 = vunpack.c.h.bf16 %v2129
      %v2301 = vunpack.c.l.bf16 %v2130
      %v2302 = vunpack.c.h.bf16 %v2130
      %v2303 = vunpack.c.l.bf16 %v2131
      %v2304 = vunpack.c.h.bf16 %v2131
      %v2305 = vunpack.c.l.bf16 %v2132
      %v2306 = vunpack.c.h.bf16 %v2132
      %v2307 = vunpack.c.l.bf16 %v2133
      %v2308 = vunpack.c.h.bf16 %v2133
      %v2309 = vunpack.c.l.bf16 %v2134
      %v2310 = vunpack.c.h.bf16 %v2134
      %v2311 = vunpack.c.l.bf16 %v2135
      %v2312 = vunpack.c.h.bf16 %v2135
      %v2313 = vunpack.c.l.bf16 %v2136
      %v2314 = vunpack.c.h.bf16 %v2136
      %v2315 = vadd.f32 %v2299, %v2300
      %v2316 = vadd.f32 %v2315, %v2301
      %v2317 = vadd.f32 %v2316, %v2302
      %v2318 = vadd.f32 %v2317, %v2303
      %v2319 = vadd.f32 %v2318, %v2304
      %v2320 = vadd.f32 %v2319, %v2305
      %v2321 = vadd.f32 %v2320, %v2306
      %v2322 = vadd.f32 %v2321, %v2307
      %v2323 = vadd.f32 %v2322, %v2308
      %v2324 = vadd.f32 %v2323, %v2309
      %v2325 = vadd.f32 %v2324, %v2310
      %v2326 = vadd.f32 %v2325, %v2311
      %v2327 = vadd.f32 %v2326, %v2312
      %v2328 = vadd.f32 %v2327, %v2313
      %v2329 = vadd.f32 %v2328, %v2314
      %v2330 = vrot.slane %v2329, 4
      %v2331 = vadd.f32 %v2329, %v2330
      %v2332 = vrot.slane %v2331, 2
      %v2333 = vadd.f32 %v2331, %v2332
      %v2334 = vrot.slane %v2333, 1
      %v2335 = vadd.f32 %v2333, %v2334
      %v2336 = vadd.f32 %v2298, %v2335
      %2337 = vst [vmem:[#allocation3] sm:$0x1] %v2336
      %p2338 = scmp.eq.s32.totalorder %s32, 1
      // Predicated region
      $region65: #{global_attn_forward.4} parent=59 // pred_check
        %p2339 = pneg %p2338
      $region66: #{global_attn_forward.4} parent=59 // pred_check_branch
        %2341 = sbr.rel (%p2339) target = $region68
      $region67: #{global_attn_forward.4} parent=59 // pred_region
        %v2342 = vld [vmem:[#allocation2] sm:$0xff]
        %v2343 = vld [vmem:[#allocation2 + $0x8] sm:$0xff]
        %v2344 = vld [vmem:[#allocation2 + $0x10] sm:$0xff]
        %v2345 = vld [vmem:[#allocation2 + $0x18] sm:$0xff]
        %v2346 = vld [vmem:[#allocation2 + $0x20] sm:$0xff]
        %v2347 = vld [vmem:[#allocation2 + $0x28] sm:$0xff]
        %v2348 = vld [vmem:[#allocation2 + $0x30] sm:$0xff]
        %v2349 = vld [vmem:[#allocation2 + $0x38] sm:$0xff]
        %v2350 = vld [vmem:[#allocation2 + $0x40] sm:$0xff]
        %v2351 = vld [vmem:[#allocation2 + $0x48] sm:$0xff]
        %v2352 = vld [vmem:[#allocation2 + $0x50] sm:$0xff]
        %v2353 = vld [vmem:[#allocation2 + $0x58] sm:$0xff]
        %v2354 = vld [vmem:[#allocation2 + $0x60] sm:$0xff]
        %v2355 = vld [vmem:[#allocation2 + $0x68] sm:$0xff]
        %v2356 = vld [vmem:[#allocation2 + $0x70] sm:$0xff]
        %v2357 = vld [vmem:[#allocation2 + $0x78] sm:$0xff]
        %2358 = vst [vmem:[%s558] sm:$0xff] %v2342
        %2359 = vst [vmem:[%s558 + $0x8] sm:$0xff] %v2343
        %2360 = vst [vmem:[%s558 + $0x10] sm:$0xff] %v2344
        %2361 = vst [vmem:[%s558 + $0x18] sm:$0xff] %v2345
        %2362 = vst [vmem:[%s558 + $0x20] sm:$0xff] %v2346
        %2363 = vst [vmem:[%s558 + $0x28] sm:$0xff] %v2347
        %2364 = vst [vmem:[%s558 + $0x30] sm:$0xff] %v2348
        %2365 = vst [vmem:[%s558 + $0x38] sm:$0xff] %v2349
        %2366 = vst [vmem:[%s558 + $0x40] sm:$0xff] %v2350
        %2367 = vst [vmem:[%s558 + $0x48] sm:$0xff] %v2351
        %2368 = vst [vmem:[%s558 + $0x50] sm:$0xff] %v2352
        %2369 = vst [vmem:[%s558 + $0x58] sm:$0xff] %v2353
        %2370 = vst [vmem:[%s558 + $0x60] sm:$0xff] %v2354
        %2371 = vst [vmem:[%s558 + $0x68] sm:$0xff] %v2355
        %2372 = vst [vmem:[%s558 + $0x70] sm:$0xff] %v2356
        %2373 = vst [vmem:[%s558 + $0x78] sm:$0xff] %v2357
        %v2374 = vld [vmem:[#allocation3] sm:$0x1]
        %2375 = vst [vmem:[%s561] sm:$0x1] %v2374
      $region68: #{global_attn_forward.4} parent=59 // pred_fallthru
        _
      %s2376 = smul.u32 %s31, 2
      %s2377 = sadd.s32 %s2376, %s32
      %s2378 = smul.u32 16, %s2377
      %p2379 = scmp.lt.s32.totalorder %s2378, 63
      %s2380 = scalar_select %p2379, %s2378, 63
      %s2381 = smul.addr %s2380, 4
      %s2382 = scalar_lea.vmem %s11, %s2381
      %s2383 = smul.u32 %s31, 2
      %s2384 = sadd.s32 %s2383, %s32
      %s2385 = smul.u32 16, %s2384
      %p2386 = scmp.lt.s32.totalorder %s2385, 63
      %s2387 = scalar_select %p2386, %s2385, 63
      %s2388 = smul.addr %s2387, 4
      %s2389 = scalar_lea.vmem %s12, %s2388
      %p2390 = scmp.lt.s32.totalorder %s31, 1
      %s2391 = scalar_select %p2390, %s31, 1
      %s2392 = smul.addr %s2391, 16
      %s2393 = smul.addr %s2392, 8
      %s2394 = scalar_lea.vmem %s13, %s2393
      %p2395 = scmp.lt.s32.totalorder %s31, 1
      %s2396 = scalar_select %p2395, %s31, 1
      %s2397 = scalar_lea.vmem %s14, %s2396
      // Predicated region
      $region69: #{global_attn_forward.4} parent=59 // pred_check
        %p2398 = pneg %p289
      $region70: #{global_attn_forward.4} parent=59 // pred_check_branch
        %2400 = sbr.rel (%p2398) target = $region72
      $region71: #{global_attn_forward.4} parent=59 // pred_region
        %s2401 = smul.u32 %s31, 2
        %s2402 = sadd.s32 %s2401, %s32
        %s2403 = smul.u32 16, %s2402
      $region72: #{global_attn_forward.4} parent=59 // pred_fallthru
        _
      // Predicated region
      $region73: #{global_attn_forward.4} parent=59 // pred_check
        %p2404 = pneg %p319
      $region74: #{global_attn_forward.4} parent=59 // pred_check_branch
        %2406 = sbr.rel (%p2404) target = $region76
      $region75: #{global_attn_forward.4} parent=59 // pred_region
        %s2407 = smul.u32 %s31, 2
        %s2408 = sadd.s32 %s2407, %s32
        %s2409 = smul.u32 16, %s2408
      $region76: #{global_attn_forward.4} parent=59 // pred_fallthru
        _
      // Predicated region
      $region77: #{global_attn_forward.4} parent=59 // pred_check
        %p2410 = pneg %p345
      $region78: #{global_attn_forward.4} parent=59 // pred_check_branch
        %2412 = sbr.rel (%p2410) target = $region80
      $region79: #{global_attn_forward.4} parent=59 // pred_region
        _
      $region80: #{global_attn_forward.4} parent=59 // pred_fallthru
        _
      // Predicated region
      $region81: #{global_attn_forward.4} parent=59 // pred_check
        %p2413 = pneg %p371
      $region82: #{global_attn_forward.4} parent=59 // pred_check_branch
        %2415 = sbr.rel (%p2413) target = $region84
      $region83: #{global_attn_forward.4} parent=59 // pred_region
        _
      $region84: #{global_attn_forward.4} parent=59 // pred_fallthru
        _
    $region60: #{global_attn_forward.4} parent=5 // pred_fallthru
      _
    %p2416 = scmp.le.s32.totalorder 2, %s22
    // Predicated region
    $region85: #{global_attn_forward.4} parent=5 // pred_check
      %p2417 = pneg %p2416
    $region86: #{global_attn_forward.4} parent=5 // pred_check_branch
      %2419 = sbr.rel (%p2417) target = $region88
    $region87: #{global_attn_forward.4} parent=5 // pred_region
      %s2420 = ssub.s32 %s22, 2
      // Predicated region
      $region89: #{global_attn_forward.4} parent=87 // pred_check
        %p2421 = pneg %p295
      $region90: #{global_attn_forward.4} parent=87 // pred_check_branch
        %2423 = sbr.rel (%p2421) target = $region92
      $region91: #{global_attn_forward.4} parent=87 // pred_region
        %s2424 = smul.u32 %s33, 2
        %s2425 = sadd.s32 %s2424, %s34
        %s2426 = smul.u32 16, %s2425
        %p2427 = scmp.lt.s32.totalorder %s2426, 63
        %s2428 = scalar_select %p2427, %s2426, 63
        %s2429 = smul.addr %s2428, 4
        %s2430 = scalar_lea.vmem %s11, %s2429
      $region92: #{global_attn_forward.4} parent=87 // pred_fallthru
        _
      // Predicated region
      $region93: #{global_attn_forward.4} parent=87 // pred_check
        %p2431 = pneg %p325
      $region94: #{global_attn_forward.4} parent=87 // pred_check_branch
        %2433 = sbr.rel (%p2431) target = $region96
      $region95: #{global_attn_forward.4} parent=87 // pred_region
        %s2434 = smul.u32 %s33, 2
        %s2435 = sadd.s32 %s2434, %s34
        %s2436 = smul.u32 16, %s2435
        %p2437 = scmp.lt.s32.totalorder %s2436, 63
        %s2438 = scalar_select %p2437, %s2436, 63
        %s2439 = smul.addr %s2438, 4
        %s2440 = scalar_lea.vmem %s12, %s2439
      $region96: #{global_attn_forward.4} parent=87 // pred_fallthru
        _
      // Predicated region
      $region97: #{global_attn_forward.4} parent=87 // pred_check
        %p2441 = pneg %p351
      $region98: #{global_attn_forward.4} parent=87 // pred_check_branch
        %2443 = sbr.rel (%p2441) target = $region100
      $region99: #{global_attn_forward.4} parent=87 // pred_region
        %p2444 = scmp.lt.s32.totalorder %s33, 1
        %s2445 = scalar_select %p2444, %s33, 1
        %s2446 = smul.addr %s2445, 16
        %s2447 = smul.addr %s2446, 8
        %s2448 = scalar_lea.vmem %s13, %s2447
      $region100: #{global_attn_forward.4} parent=87 // pred_fallthru
        _
      // Predicated region
      $region101: #{global_attn_forward.4} parent=87 // pred_check
        %p2449 = pneg %p377
      $region102: #{global_attn_forward.4} parent=87 // pred_check_branch
        %2451 = sbr.rel (%p2449) target = $region104
      $region103: #{global_attn_forward.4} parent=87 // pred_region
        %p2452 = scmp.lt.s32.totalorder %s33, 1
        %s2453 = scalar_select %p2452, %s33, 1
        %s2454 = scalar_lea.vmem %s14, %s2453
      $region104: #{global_attn_forward.4} parent=87 // pred_fallthru
        _
    $region88: #{global_attn_forward.4} parent=5 // pred_fallthru
      _
  $region6: #{global_attn_forward.4} parent=0 // loop_footer
    %s26 = sadd.s32 1, %s22
  $region7: #{global_attn_forward.4} parent=0 // loop_footer_branch
    %21 = sbr.rel target = $region3
  $region8: #{global_attn_forward.4} parent=0 // loop_exit
    _

</llo_original>
